<compile_context>
chip_gen: v5e
topology: v5e:2x2
jax: 0.10.0
libtpu: 0.0.40
codegen_flags: <defaults>
</compile_context>

<pallas_src>
import jax
import jax.numpy as jnp
import numpy as np
from jax.experimental import pallas as pl
from jax.experimental.pallas import tpu as pltpu

_VMEM_LIMIT = 32 * 1024 * 1024  # safe on v5e/v6e/v7x (v7x physical VMEM is 64 MiB)


# ------------------------------ tile pickers ---------------------------------
def _pick_row_tile(rows):
    """Largest of {1024,512,256,128} dividing `rows` (prefer >=2 tiles), else rows."""
    for cand in (1024, 512, 256, 128):
        if rows % cand == 0 and rows // cand >= 2:
            return cand
    for cand in (1024, 512, 256, 128):
        if rows % cand == 0:
            return cand
    return rows


def _pick_n_tile(n):
    """Two N-chunks when cleanly possible (keeps both v7x TensorCores busy)."""
    half = n // 2
    if n % 2 == 0 and half % 8 == 0:
        return half
    return n


# ------------------- 1) hoisted input projection kernel ----------------------
def _input_proj_kernel(x_ref, w_ref, b_ref, o_ref):
    o_ref[...] = (jnp.dot(x_ref[...], w_ref[...],
                          preferred_element_type=jnp.float32)
                  + b_ref[...]).astype(o_ref.dtype)


def input_projection(x_rows, w_ih_t, bias):
    R, C = x_rows.shape
    G = w_ih_t.shape[1]                      # 4H
    tr = _pick_row_tile(R)
    return pl.pallas_call(
        _input_proj_kernel,
        out_shape=jax.ShapeDtypeStruct((R, G), jnp.float32),
        grid=(R // tr,),
        in_specs=[
            pl.BlockSpec((tr, C), lambda r: (r, 0)),
            pl.BlockSpec((C, G), lambda r: (0, 0)),
            pl.BlockSpec((1, G), lambda r: (0, 0)),
        ],
        out_specs=pl.BlockSpec((tr, G), lambda r: (r, 0)),
        compiler_params=pltpu.CompilerParams(
            dimension_semantics=("parallel",),
            vmem_limit_bytes=_VMEM_LIMIT),
    )(x_rows, w_ih_t, bias)


# --------------------------- 2) LSTM recurrence -------------------------------
def _lstm_recurrence_kernel(xp_ref, whh_ref, h0_ref, c0_ref,
                            y_ref, hn_ref, cn_ref):
    T = xp_ref.shape[0]
    H = whh_ref.shape[0]

    def step(t, carry):
        h, c = carry
        # X_proj already contains x@W_ih^T + b_ih + b_hh; only the recurrent
        # matmul stays on the serial path (bf16 operands, f32 accumulate).
        gates = xp_ref[t] + jnp.dot(h.astype(whh_ref.dtype), whh_ref[...],
                                    preferred_element_type=jnp.float32)
        # PyTorch gate order: i, f, g, o.  (The packed (N, 4H) gate layout keeps
        # the recurrent matmul lane-dense; the slices below are lane sub-slices.)
        i_g = jax.nn.sigmoid(gates[:, 0:H])
        f_g = jax.nn.sigmoid(gates[:, H:2 * H])
        g_g = jnp.tanh(gates[:, 2 * H:3 * H])
        o_g = jax.nn.sigmoid(gates[:, 3 * H:4 * H])
        c_new = f_g * c + i_g * g_g
        h_new = o_g * jnp.tanh(c_new)
        y_ref[t] = h_new.astype(y_ref.dtype)
        return h_new, c_new

    h_fin, c_fin = jax.lax.fori_loop(
        0, T, step,
        (h0_ref[...].astype(jnp.float32), c0_ref[...].astype(jnp.float32)),
        unroll=min(T, 8))
    # final state written exactly once (no per-step hn/cn stores)
    hn_ref[...] = h_fin.astype(hn_ref.dtype)
    cn_ref[...] = c_fin.astype(cn_ref.dtype)


def lstm_recurrence(xp_tng, w_hh_t_bf16, h0, c0):
    T, N, G = xp_tng.shape
    H = w_hh_t_bf16.shape[0]
    tn = _pick_n_tile(N)
    return pl.pallas_call(
        _lstm_recurrence_kernel,
        out_shape=(jax.ShapeDtypeStruct((T, N, H), jnp.float32),
                   jax.ShapeDtypeStruct((N, H), jnp.float32),
                   jax.ShapeDtypeStruct((N, H), jnp.float32)),
        grid=(N // tn,),
        in_specs=[
            pl.BlockSpec((T, tn, G), lambda i: (0, i, 0)),   # X_proj N-chunk
            pl.BlockSpec((H, G), lambda i: (0, 0)),          # W_hh^T (bf16)
            pl.BlockSpec((tn, H), lambda i: (i, 0)),         # h0 chunk
            pl.BlockSpec((tn, H), lambda i: (i, 0)),         # c0 chunk
        ],
        out_specs=[
            pl.BlockSpec((T, tn, H), lambda i: (0, i, 0)),   # y
            pl.BlockSpec((tn, H), lambda i: (i, 0)),         # h_n
            pl.BlockSpec((tn, H), lambda i: (i, 0)),         # c_n
        ],
        compiler_params=pltpu.CompilerParams(
            dimension_semantics=("parallel",),               # independent N-chunks
            vmem_limit_bytes=_VMEM_LIMIT),
    )(xp_tng, w_hh_t_bf16, h0, c0)


# ---------------- 3) 1x1 conv + per-channel batch statistics ------------------
def _conv_stats_kernel(y_ref, wc_ref, bc_ref, z_ref, s1_ref, s2_ref):
    r = pl.program_id(0)
    # lane-dense (O, tile_r): the big rows axis sits on the 128-lane dimension.
    z = jnp.einsum("oh,rh->or", wc_ref[...], y_ref[...],
                   preferred_element_type=jnp.float32) + bc_ref[...]
    z_ref[...] = z

    @pl.when(r == 0)
    def _():
        s1_ref[...] = jnp.zeros_like(s1_ref)
        s2_ref[...] = jnp.zeros_like(s2_ref)

    s1_ref[...] += jnp.sum(z, axis=1, keepdims=True)
    s2_ref[...] += jnp.sum(z * z, axis=1, keepdims=True)


def conv1x1_with_stats(y_rows, wc, bc):
    R, H = y_rows.shape
    O = wc.shape[0]
    tr = _pick_row_tile(R)
    return pl.pallas_call(
        _conv_stats_kernel,
        out_shape=(jax.ShapeDtypeStruct((O, R), jnp.float32),   # z (lane-dense)
                   jax.ShapeDtypeStruct((O, 1), jnp.float32),   # sum
                   jax.ShapeDtypeStruct((O, 1), jnp.float32)),  # sum of squares
        grid=(R // tr,),
        in_specs=[
            pl.BlockSpec((tr, H), lambda r: (r, 0)),
            pl.BlockSpec((O, H), lambda r: (0, 0)),
            pl.BlockSpec((O, 1), lambda r: (0, 0)),
        ],
        out_specs=[
            pl.BlockSpec((O, tr), lambda r: (0, r)),
            pl.BlockSpec((O, 1), lambda r: (0, 0)),             # resident accumulator
            pl.BlockSpec((O, 1), lambda r: (0, 0)),             # resident accumulator
        ],
        compiler_params=pltpu.CompilerParams(
            dimension_semantics=("arbitrary",),                 # stats accumulate
            vmem_limit_bytes=_VMEM_LIMIT),
    )(y_rows, wc, bc)


# ------------------------- 4) BN normalize + ReLU -----------------------------
def _bn_relu_kernel(z_ref, scale_ref, shift_ref, o_ref):
    o_ref[...] = jnp.maximum(z_ref[...] * scale_ref[...] + shift_ref[...], 0.0)


def bn_relu(z, scale, shift):
    O, R = z.shape
    tr = _pick_row_tile(R)
    return pl.pallas_call(
        _bn_relu_kernel,
        out_shape=jax.ShapeDtypeStruct((O, R), jnp.float32),
        grid=(R // tr,),
        in_specs=[
            pl.BlockSpec((O, tr), lambda r: (0, r)),
            pl.BlockSpec((O, 1), lambda r: (0, 0)),
            pl.BlockSpec((O, 1), lambda r: (0, 0)),
        ],
        out_specs=pl.BlockSpec((O, tr), lambda r: (0, r)),
        compiler_params=pltpu.CompilerParams(
            dimension_semantics=("parallel",),
            vmem_limit_bytes=_VMEM_LIMIT),
    )(z, scale, shift)


# ------------------------------ wrapper ---------------------------------------
def tlstm_block_forward(x, rnn_state, params):
    B, C, T, F = x.shape
    h0, c0 = rnn_state                          # each (1, B*F, H)
    N = B * F
    H = params["w_hh"].shape[1]
    O = params["conv_w"].shape[0]

    # layout glue: same permutes/reshapes as the PyTorch module
    x_ = jnp.transpose(x, (0, 3, 2, 1)).reshape(N, T, C)      # (B*F, T, C)
    x_tnc = jnp.transpose(x_, (1, 0, 2))                      # (T, N, C)
    x_rows = x_tnc.reshape(T * N, C)                          # row = t*N + b*F + f

    w_ih_t = params["w_ih"].T                                 # (C, 4H)
    bias = (params["b_ih"] + params["b_hh"]).reshape(1, 4 * H)
    w_hh_t = params["w_hh"].T.astype(jnp.bfloat16)            # (H, 4H) bf16 MXU operand

    # 1) hoisted input projection (one large matmul over all T*N rows)
    xp = input_projection(x_rows, w_ih_t, bias).reshape(T, N, 4 * H)

    # 2) recurrence (only h @ W_hh^T per step; N-chunks run in parallel)
    y, hn, cn = lstm_recurrence(xp, w_hh_t, h0[0], c0[0])     # y: (T, N, H)

    # 3) 1x1 conv + batch statistics, lane-dense (O, T*N) output
    y_rows = y.reshape(T * N, H)
    wc = params["conv_w"].reshape(O, H)
    z, s1, s2 = conv1x1_with_stats(y_rows, wc, params["conv_b"].reshape(O, 1))

    # 4) BN (training-mode batch stats, biased variance) + ReLU
    rows = float(T * N)
    mean = s1 / rows
    var = s2 / rows - mean * mean
    scale = params["bn_gamma"].reshape(O, 1) * jax.lax.rsqrt(var + 1e-5)
    shift = params["bn_beta"].reshape(O, 1) - mean * scale
    out_or = bn_relu(z, scale, shift)                         # (O, T*N)

    out = out_or.reshape(O, T, B, F).transpose(2, 0, 1, 3)    # (B, O, T, F)
    return out, (hn[None], cn[None])


# ------------------------- pure-JAX reference ---------------------------------
def reference_forward(x, rnn_state, params):
    B, C, T, F = x.shape
    H = params["w_hh"].shape[1]
    N = B * F
    x_ = jnp.transpose(x, (0, 3, 2, 1)).reshape(N, T, C)
    h0, c0 = rnn_state
    Wih, Whh = params["w_ih"], params["w_hh"]
    b = params["b_ih"] + params["b_hh"]
    xs = jnp.transpose(x_, (1, 0, 2))                         # (T, N, C)

    def step(carry, xt):
        h, c = carry
        gates = xt @ Wih.T + h @ Whh.T + b
        i = jax.nn.sigmoid(gates[:, :H]); f = jax.nn.sigmoid(gates[:, H:2 * H])
        g = jnp.tanh(gates[:, 2 * H:3 * H]); o = jax.nn.sigmoid(gates[:, 3 * H:])
        c2 = f * c + i * g
        h2 = o * jnp.tanh(c2)
        return (h2, c2), h2

    (hn, cn), ys = jax.lax.scan(step, (h0[0], c0[0]), xs)     # ys: (T, N, H)
    y1 = jnp.transpose(ys, (1, 0, 2)).reshape(B, F, T, H)
    y2 = jnp.transpose(y1, (0, 3, 2, 1))                      # (B, H, T, F)
    Wc = params["conv_w"].reshape(-1, H)
    z = jnp.einsum("oh,bhtf->botf", Wc, y2) + params["conv_b"][None, :, None, None]
    mean = jnp.mean(z, axis=(0, 2, 3), keepdims=True)
    var = jnp.mean((z - mean) ** 2, axis=(0, 2, 3), keepdims=True)
    zn = (z - mean) * jax.lax.rsqrt(var + 1e-5)
    out = jnp.maximum(zn * params["bn_gamma"][None, :, None, None]
                      + params["bn_beta"][None, :, None, None], 0.0)
    return out, (hn[None], cn[None])


if __name__ == "__main__":
    B, C, T, F = 2, 4, 8, 16          # in_channels=4, seq=8, freq=16
    H, O = 32, 8                      # hidden_size=32, out_channels=8

    key = jax.random.PRNGKey(0)
    keys = jax.random.split(key, 9)
    k = 1.0 / np.sqrt(H)
    params = dict(
        w_ih=jax.random.uniform(keys[0], (4 * H, C), jnp.float32, -k, k),
        w_hh=jax.random.uniform(keys[1], (4 * H, H), jnp.float32, -k, k),
        b_ih=jax.random.uniform(keys[2], (4 * H,), jnp.float32, -k, k),
        b_hh=jax.random.uniform(keys[3], (4 * H,), jnp.float32, -k, k),
        conv_w=jax.random.uniform(keys[4], (O, H, 1, 1), jnp.float32, -k, k),
        conv_b=jax.random.uniform(keys[5], (O,), jnp.float32, -k, k),
        bn_gamma=jnp.ones((O,), jnp.float32),
        bn_beta=jnp.zeros((O,), jnp.float32),
    )
    x = jax.random.normal(keys[6], (B, C, T, F), jnp.float32)
    h0 = jax.random.normal(keys[7], (1, B * F, H), jnp.float32)
    c0 = jax.random.normal(keys[8], (1, B * F, H), jnp.float32)

    fwd = jax.jit(tlstm_block_forward)
    out, (hn, cn) = fwd(x, (h0, c0), params)
    jax.block_until_ready((out, hn, cn))

    ref_out, (ref_hn, ref_cn) = reference_forward(x, (h0, c0), params)
    np.testing.assert_allclose(np.asarray(out), np.asarray(ref_out), rtol=2e-2, atol=2e-2)
    np.testing.assert_allclose(np.asarray(hn), np.asarray(ref_hn), rtol=2e-2, atol=2e-2)
    np.testing.assert_allclose(np.asarray(cn), np.asarray(ref_cn), rtol=2e-2, atol=2e-2)
    print("KERNEL_OK")
</pallas_src>

<mosaic_0001>
module attributes {stable_mosaic.version = 11 : i64} {
  func.func @_input_proj_kernel(%arg0: i32, %arg1: memref<128x4xf32, #tpu.memory_space<vmem>>, %arg2: memref<4x128xf32, #tpu.memory_space<vmem>>, %arg3: memref<1x128xf32, #tpu.memory_space<vmem>>, %arg4: memref<128x128xf32, #tpu.memory_space<vmem>>) attributes {dimension_semantics = [#tpu.dimension_semantics<parallel>], iteration_bounds = array<i64: 2>, scalar_prefetch = 0 : i64, scratch_operands = 0 : i64, tpu.core_type = #tpu.core_type<tc>, window_params = [{transform_indices = @transform_0, window_bounds = array<i64: 128, 4>}, {pipeline_mode = #tpu.pipeline_mode<synchronous>, transform_indices = @transform_1, window_bounds = array<i64: 4, 128>}, {pipeline_mode = #tpu.pipeline_mode<synchronous>, transform_indices = @transform_2, window_bounds = array<i64: 1, 128>}, {transform_indices = @transform_3, window_bounds = array<i64: 128, 128>}]} {
    %c0 = arith.constant 0 : index
    %c0_0 = arith.constant 0 : index
    %0 = vector.load %arg1[%c0, %c0_0] : memref<128x4xf32, #tpu.memory_space<vmem>>, vector<128x4xf32>
    %c0_1 = arith.constant 0 : index
    %c0_2 = arith.constant 0 : index
    %1 = vector.load %arg2[%c0_1, %c0_2] : memref<4x128xf32, #tpu.memory_space<vmem>>, vector<4x128xf32>
    %cst = arith.constant dense<0.000000e+00> : vector<128x128xf32>
    %2 = tpu.matmul %0, %1, %cst {dimension_numbers = #tpu.dot_dimension_numbers<[1], [0], [0], [1], [0, 0, 1, 1], [], []>} : vector<128x4xf32>, vector<4x128xf32>, vector<128x128xf32> -> vector<128x128xf32>
    %c0_3 = arith.constant 0 : index
    %c0_4 = arith.constant 0 : index
    %3 = vector.load %arg3[%c0_3, %c0_4] : memref<1x128xf32, #tpu.memory_space<vmem>>, vector<1x128xf32>
    %4 = vector.broadcast %3 : vector<1x128xf32> to vector<128x128xf32>
    %5 = arith.addf %2, %4 : vector<128x128xf32>
    %c0_5 = arith.constant 0 : index
    %c0_6 = arith.constant 0 : index
    %6 = vector.load %arg4[%c0_5, %c0_6] : memref<128x128xf32, #tpu.memory_space<vmem>>, vector<128x128xf32>
    tpu.vector_store %arg4[%c0_5, %c0_6], %5 {strides = array<i32>} : memref<128x128xf32, #tpu.memory_space<vmem>>, vector<128x128xf32>,
    return
  }
  func.func @transform_0(%arg0: i32) -> (i32, i32) {
    %c0_i32 = arith.constant 0 : i32
    %c0_i32_0 = arith.constant 0 : i32
    return %arg0, %c0_i32 : i32, i32
  }
  func.func @transform_1(%arg0: i32) -> (i32, i32) {
    %c0_i32 = arith.constant 0 : i32
    %c0_i32_0 = arith.constant 0 : i32
    %c0_i32_1 = arith.constant 0 : i32
    return %c0_i32, %c0_i32_0 : i32, i32
  }
  func.func @transform_2(%arg0: i32) -> (i32, i32) {
    %c0_i32 = arith.constant 0 : i32
    %c0_i32_0 = arith.constant 0 : i32
    %c0_i32_1 = arith.constant 0 : i32
    return %c0_i32, %c0_i32_0 : i32, i32
  }
  func.func @transform_3(%arg0: i32) -> (i32, i32) {
    %c0_i32 = arith.constant 0 : i32
    %c0_i32_0 = arith.constant 0 : i32
    return %arg0, %c0_i32 : i32, i32
  }
}

module attributes {stable_mosaic.version = 11 : i64} {
  func.func @_conv_stats_kernel(%arg0: i32, %arg1: memref<128x32xf32, #tpu.memory_space<vmem>>, %arg2: memref<8x32xf32, #tpu.memory_space<vmem>>, %arg3: memref<8x1xf32, #tpu.memory_space<vmem>>, %arg4: memref<8x128xf32, #tpu.memory_space<vmem>>, %arg5: memref<8x1xf32, #tpu.memory_space<vmem>>, %arg6: memref<8x1xf32, #tpu.memory_space<vmem>>) attributes {dimension_semantics = [#tpu.dimension_semantics<arbitrary>], iteration_bounds = array<i64: 2>, scalar_prefetch = 0 : i64, scratch_operands = 0 : i64, tpu.core_type = #tpu.core_type<tc>, window_params = [{transform_indices = @transform_0, window_bounds = array<i64: 128, 32>}, {pipeline_mode = #tpu.pipeline_mode<synchronous>, transform_indices = @transform_1, window_bounds = array<i64: 8, 32>}, {pipeline_mode = #tpu.pipeline_mode<synchronous>, transform_indices = @transform_2, window_bounds = array<i64: 8, 1>}, {transform_indices = @transform_3, window_bounds = array<i64: 8, 128>}, {pipeline_mode = #tpu.pipeline_mode<synchronous>, transform_indices = @transform_4, window_bounds = array<i64: 8, 1>}, {pipeline_mode = #tpu.pipeline_mode<synchronous>, transform_indices = @transform_5, window_bounds = array<i64: 8, 1>}]} {
    %c0 = arith.constant 0 : index
    %c0_0 = arith.constant 0 : index
    %0 = vector.load %arg2[%c0, %c0_0] : memref<8x32xf32, #tpu.memory_space<vmem>>, vector<8x32xf32>
    %c0_1 = arith.constant 0 : index
    %c0_2 = arith.constant 0 : index
    %1 = vector.load %arg1[%c0_1, %c0_2] : memref<128x32xf32, #tpu.memory_space<vmem>>, vector<128x32xf32>
    "tpu.trace_start"() <{level = 10 : i32, message = "oh,rh->or"}> : () -> ()
    %cst = arith.constant dense<0.000000e+00> : vector<8x128xf32>
    %2 = tpu.matmul %0, %1, %cst {dimension_numbers = #tpu.dot_dimension_numbers<[1], [1], [0], [0], [0, 0, 1, 0], [], []>} : vector<8x32xf32>, vector<128x32xf32>, vector<8x128xf32> -> vector<8x128xf32>
    "tpu.trace_stop"() : () -> ()
    %c0_3 = arith.constant 0 : index
    %c0_4 = arith.constant 0 : index
    %3 = vector.load %arg3[%c0_3, %c0_4] : memref<8x1xf32, #tpu.memory_space<vmem>>, vector<8x1xf32>
    %4 = vector.broadcast %3 : vector<8x1xf32> to vector<8x128xf32>
    %5 = arith.addf %2, %4 : vector<8x128xf32>
    %c0_5 = arith.constant 0 : index
    %c0_6 = arith.constant 0 : index
    %6 = vector.load %arg4[%c0_5, %c0_6] : memref<8x128xf32, #tpu.memory_space<vmem>>, vector<8x128xf32>
    tpu.vector_store %arg4[%c0_5, %c0_6], %5 {strides = array<i32>} : memref<8x128xf32, #tpu.memory_space<vmem>>, vector<8x128xf32>,
    %c0_i32 = arith.constant 0 : i32
    %7 = arith.cmpi eq, %arg0, %c0_i32 : i32
    %8 = arith.extui %7 : i1 to i32
    %c0_i32_7 = arith.constant 0 : i32
    %9 = arith.cmpi ne, %8, %c0_i32_7 : i32
    scf.if %9 {
      %cst_18 = arith.constant 0.000000e+00 : f32
      %21 = vector.broadcast %cst_18 : f32 to vector<8x1xf32>
      %c0_19 = arith.constant 0 : index
      %c0_20 = arith.constant 0 : index
      %22 = vector.load %arg5[%c0_19, %c0_20] : memref<8x1xf32, #tpu.memory_space<vmem>>, vector<8x1xf32>
      tpu.vector_store %arg5[%c0_19, %c0_20], %21 {strides = array<i32>} : memref<8x1xf32, #tpu.memory_space<vmem>>, vector<8x1xf32>,
      %cst_21 = arith.constant 0.000000e+00 : f32
      %23 = vector.broadcast %cst_21 : f32 to vector<8x1xf32>
      %c0_22 = arith.constant 0 : index
      %c0_23 = arith.constant 0 : index
      %24 = vector.load %arg6[%c0_22, %c0_23] : memref<8x1xf32, #tpu.memory_space<vmem>>, vector<8x1xf32>
      tpu.vector_store %arg6[%c0_22, %c0_23], %23 {strides = array<i32>} : memref<8x1xf32, #tpu.memory_space<vmem>>, vector<8x1xf32>,
    } else {
    }
    %c0_8 = arith.constant 0 : index
    %c0_9 = arith.constant 0 : index
    %10 = vector.load %arg5[%c0_8, %c0_9] : memref<8x1xf32, #tpu.memory_space<vmem>>, vector<8x1xf32>
    %cst_10 = arith.constant dense<0.000000e+00> : vector<8xf32>
    %11 = vector.multi_reduction <add>, %5, %cst_10 [1] : vector<8x128xf32> to vector<8xf32>
    %12 = vector.shape_cast %11 : vector<8xf32> to vector<8x1xf32>
    %13 = arith.addf %10, %12 : vector<8x1xf32>
    %c0_11 = arith.constant 0 : index
    %c0_12 = arith.constant 0 : index
    %14 = vector.load %arg5[%c0_11, %c0_12] : memref<8x1xf32, #tpu.memory_space<vmem>>, vector<8x1xf32>
    tpu.vector_store %arg5[%c0_11, %c0_12], %13 {strides = array<i32>} : memref<8x1xf32, #tpu.memory_space<vmem>>, vector<8x1xf32>,
    %c0_13 = arith.constant 0 : index
    %c0_14 = arith.constant 0 : index
    %15 = vector.load %arg6[%c0_13, %c0_14] : memref<8x1xf32, #tpu.memory_space<vmem>>, vector<8x1xf32>
    %16 = arith.mulf %5, %5 : vector<8x128xf32>
    %cst_15 = arith.constant dense<0.000000e+00> : vector<8xf32>
    %17 = vector.multi_reduction <add>, %16, %cst_15 [1] : vector<8x128xf32> to vector<8xf32>
    %18 = vector.shape_cast %17 : vector<8xf32> to vector<8x1xf32>
    %19 = arith.addf %15, %18 : vector<8x1xf32>
    %c0_16 = arith.constant 0 : index
    %c0_17 = arith.constant 0 : index
    %20 = vector.load %arg6[%c0_16, %c0_17] : memref<8x1xf32, #tpu.memory_space<vmem>>, vector<8x1xf32>
    tpu.vector_store %arg6[%c0_16, %c0_17], %19 {strides = array<i32>} : memref<8x1xf32, #tpu.memory_space<vmem>>, vector<8x1xf32>,
    return
  }
  func.func @transform_0(%arg0: i32) -> (i32, i32) {
    %c0_i32 = arith.constant 0 : i32
    %c0_i32_0 = arith.constant 0 : i32
    return %arg0, %c0_i32 : i32, i32
  }
  func.func @transform_1(%arg0: i32) -> (i32, i32) {
    %c0_i32 = arith.constant 0 : i32
    %c0_i32_0 = arith.constant 0 : i32
    %c0_i32_1 = arith.constant 0 : i32
    return %c0_i32, %c0_i32_0 : i32, i32
  }
  func.func @transform_2(%arg0: i32) -> (i32, i32) {
    %c0_i32 = arith.constant 0 : i32
    %c0_i32_0 = arith.constant 0 : i32
    %c0_i32_1 = arith.constant 0 : i32
    return %c0_i32, %c0_i32_0 : i32, i32
  }
  func.func @transform_3(%arg0: i32) -> (i32, i32) {
    %c0_i32 = arith.constant 0 : i32
    %c0_i32_0 = arith.constant 0 : i32
    return %c0_i32, %arg0 : i32, i32
  }
  func.func @transform_4(%arg0: i32) -> (i32, i32) {
    %c0_i32 = arith.constant 0 : i32
    %c0_i32_0 = arith.constant 0 : i32
    %c0_i32_1 = arith.constant 0 : i32
    return %c0_i32, %c0_i32_0 : i32, i32
  }
  func.func @transform_5(%arg0: i32) -> (i32, i32) {
    %c0_i32 = arith.constant 0 : i32
    %c0_i32_0 = arith.constant 0 : i32
    %c0_i32_1 = arith.constant 0 : i32
    return %c0_i32, %c0_i32_0 : i32, i32
  }
}

module attributes {stable_mosaic.version = 11 : i64} {
  func.func @_lstm_recurrence_kernel(%arg0: i32, %arg1: memref<8x16x128xf32, #tpu.memory_space<vmem>>, %arg2: memref<32x128xbf16, #tpu.memory_space<vmem>>, %arg3: memref<16x32xf32, #tpu.memory_space<vmem>>, %arg4: memref<16x32xf32, #tpu.memory_space<vmem>>, %arg5: memref<8x16x32xf32, #tpu.memory_space<vmem>>, %arg6: memref<16x32xf32, #tpu.memory_space<vmem>>, %arg7: memref<16x32xf32, #tpu.memory_space<vmem>>) attributes {dimension_semantics = [#tpu.dimension_semantics<parallel>], iteration_bounds = array<i64: 2>, scalar_prefetch = 0 : i64, scratch_operands = 0 : i64, tpu.core_type = #tpu.core_type<tc>, window_params = [{transform_indices = @transform_0, window_bounds = array<i64: 8, 16, 128>}, {pipeline_mode = #tpu.pipeline_mode<synchronous>, transform_indices = @transform_1, window_bounds = array<i64: 32, 128>}, {transform_indices = @transform_2, window_bounds = array<i64: 16, 32>}, {transform_indices = @transform_3, window_bounds = array<i64: 16, 32>}, {transform_indices = @transform_4, window_bounds = array<i64: 8, 16, 32>}, {transform_indices = @transform_5, window_bounds = array<i64: 16, 32>}, {transform_indices = @transform_6, window_bounds = array<i64: 16, 32>}]} {
    %c0 = arith.constant 0 : index
    %c0_0 = arith.constant 0 : index
    %0 = vector.load %arg3[%c0, %c0_0] : memref<16x32xf32, #tpu.memory_space<vmem>>, vector<16x32xf32>
    %c0_1 = arith.constant 0 : index
    %c0_2 = arith.constant 0 : index
    %1 = vector.load %arg4[%c0_1, %c0_2] : memref<16x32xf32, #tpu.memory_space<vmem>>, vector<16x32xf32>
    %c0_i32 = arith.constant 0 : i32
    %2 = arith.index_cast %c0_i32 : i32 to index
    %c0_3 = arith.constant 0 : index
    %c0_4 = arith.constant 0 : index
    %3 = vector.load %arg1[%2, %c0_3, %c0_4] : memref<8x16x128xf32, #tpu.memory_space<vmem>>, vector<1x16x128xf32>
    %4 = vector.shape_cast %3 : vector<1x16x128xf32> to vector<16x128xf32>
    %5 = arith.truncf %0 : vector<16x32xf32> to vector<16x32xbf16>
    %c0_5 = arith.constant 0 : index
    %c0_6 = arith.constant 0 : index
    %6 = vector.load %arg2[%c0_5, %c0_6] : memref<32x128xbf16, #tpu.memory_space<vmem>>, vector<32x128xbf16>
    %cst = arith.constant dense<0.000000e+00> : vector<16x128xf32>
    %7 = tpu.matmul %5, %6, %cst {dimension_numbers = #tpu.dot_dimension_numbers<[1], [0], [0], [1], [0, 0, 1, 1], [], []>} : vector<16x32xbf16>, vector<32x128xbf16>, vector<16x128xf32> -> vector<16x128xf32>
    %8 = arith.addf %4, %7 : vector<16x128xf32>
    %9 = vector.extract_strided_slice %8 {offsets = [0, 0], sizes = [16, 32], strides = [1, 1]} : vector<16x128xf32> to vector<16x32xf32>
    %10 = arith.negf %9 : vector<16x32xf32>
    %11 = math.exp %10 : vector<16x32xf32>
    %cst_7 = arith.constant 1.000000e+00 : f32
    %12 = vector.broadcast %cst_7 : f32 to vector<16x32xf32>
    %13 = arith.addf %12, %11 : vector<16x32xf32>
    %14 = arith.divf %12, %13 : vector<16x32xf32>
    %15 = vector.extract_strided_slice %8 {offsets = [0, 32], sizes = [16, 32], strides = [1, 1]} : vector<16x128xf32> to vector<16x32xf32>
    %16 = arith.negf %15 : vector<16x32xf32>
    %17 = math.exp %16 : vector<16x32xf32>
    %cst_8 = arith.constant 1.000000e+00 : f32
    %18 = vector.broadcast %cst_8 : f32 to vector<16x32xf32>
    %19 = arith.addf %18, %17 : vector<16x32xf32>
    %20 = arith.divf %18, %19 : vector<16x32xf32>
    %21 = vector.extract_strided_slice %8 {offsets = [0, 64], sizes = [16, 32], strides = [1, 1]} : vector<16x128xf32> to vector<16x32xf32>
    %22 = math.tanh %21 : vector<16x32xf32>
    %23 = vector.extract_strided_slice %8 {offsets = [0, 96], sizes = [16, 32], strides = [1, 1]} : vector<16x128xf32> to vector<16x32xf32>
    %24 = arith.negf %23 : vector<16x32xf32>
    %25 = math.exp %24 : vector<16x32xf32>
    %cst_9 = arith.constant 1.000000e+00 : f32
    %26 = vector.broadcast %cst_9 : f32 to vector<16x32xf32>
    %27 = arith.addf %26, %25 : vector<16x32xf32>
    %28 = arith.divf %26, %27 : vector<16x32xf32>
    %29 = arith.mulf %20, %1 : vector<16x32xf32>
    %30 = arith.mulf %14, %22 : vector<16x32xf32>
    %31 = arith.addf %29, %30 : vector<16x32xf32>
    %32 = math.tanh %31 : vector<16x32xf32>
    %33 = arith.mulf %28, %32 : vector<16x32xf32>
    %34 = arith.index_cast %c0_i32 : i32 to index
    %c0_10 = arith.constant 0 : index
    %c0_11 = arith.constant 0 : index
    %35 = vector.load %arg5[%34, %c0_10, %c0_11] : memref<8x16x32xf32, #tpu.memory_space<vmem>>, vector<1x16x32xf32>
    %36 = vector.shape_cast %35 : vector<1x16x32xf32> to vector<16x32xf32>
    %37 = vector.shape_cast %33 : vector<16x32xf32> to vector<1x16x32xf32>
    tpu.vector_store %arg5[%34, %c0_10, %c0_11], %37 {strides = array<i32>} : memref<8x16x32xf32, #tpu.memory_space<vmem>>, vector<1x16x32xf32>,
    %c1_i32 = arith.constant 1 : i32
    %38 = arith.index_cast %c1_i32 : i32 to index
    %c0_12 = arith.constant 0 : index
    %c0_13 = arith.constant 0 : index
    %39 = vector.load %arg1[%38, %c0_12, %c0_13] : memref<8x16x128xf32, #tpu.memory_space<vmem>>, vector<1x16x128xf32>
    %40 = vector.shape_cast %39 : vector<1x16x128xf32> to vector<16x128xf32>
    %41 = arith.truncf %33 : vector<16x32xf32> to vector<16x32xbf16>
    %c0_14 = arith.constant 0 : index
    %c0_15 = arith.constant 0 : index
    %42 = vector.load %arg2[%c0_14, %c0_15] : memref<32x128xbf16, #tpu.memory_space<vmem>>, vector<32x128xbf16>
    %cst_16 = arith.constant dense<0.000000e+00> : vector<16x128xf32>
    %43 = tpu.matmul %41, %42, %cst_16 {dimension_numbers = #tpu.dot_dimension_numbers<[1], [0], [0], [1], [0, 0, 1, 1], [], []>} : vector<16x32xbf16>, vector<32x128xbf16>, vector<16x128xf32> -> vector<16x128xf32>
    %44 = arith.addf %40, %43 : vector<16x128xf32>
    %45 = vector.extract_strided_slice %44 {offsets = [0, 0], sizes = [16, 32], strides = [1, 1]} : vector<16x128xf32> to vector<16x32xf32>
    %46 = arith.negf %45 : vector<16x32xf32>
    %47 = math.exp %46 : vector<16x32xf32>
    %cst_17 = arith.constant 1.000000e+00 : f32
    %48 = vector.broadcast %cst_17 : f32 to vector<16x32xf32>
    %49 = arith.addf %48, %47 : vector<16x32xf32>
    %50 = arith.divf %48, %49 : vector<16x32xf32>
    %51 = vector.extract_strided_slice %44 {offsets = [0, 32], sizes = [16, 32], strides = [1, 1]} : vector<16x128xf32> to vector<16x32xf32>
    %52 = arith.negf %51 : vector<16x32xf32>
    %53 = math.exp %52 : vector<16x32xf32>
    %cst_18 = arith.constant 1.000000e+00 : f32
    %54 = vector.broadcast %cst_18 : f32 to vector<16x32xf32>
    %55 = arith.addf %54, %53 : vector<16x32xf32>
    %56 = arith.divf %54, %55 : vector<16x32xf32>
    %57 = vector.extract_strided_slice %44 {offsets = [0, 64], sizes = [16, 32], strides = [1, 1]} : vector<16x128xf32> to vector<16x32xf32>
    %58 = math.tanh %57 : vector<16x32xf32>
    %59 = vector.extract_strided_slice %44 {offsets = [0, 96], sizes = [16, 32], strides = [1, 1]} : vector<16x128xf32> to vector<16x32xf32>
    %60 = arith.negf %59 : vector<16x32xf32>
    %61 = math.exp %60 : vector<16x32xf32>
    %cst_19 = arith.constant 1.000000e+00 : f32
    %62 = vector.broadcast %cst_19 : f32 to vector<16x32xf32>
    %63 = arith.addf %62, %61 : vector<16x32xf32>
    %64 = arith.divf %62, %63 : vector<16x32xf32>
    %65 = arith.mulf %56, %31 : vector<16x32xf32>
    %66 = arith.mulf %50, %58 : vector<16x32xf32>
    %67 = arith.addf %65, %66 : vector<16x32xf32>
    %68 = math.tanh %67 : vector<16x32xf32>
    %69 = arith.mulf %64, %68 : vector<16x32xf32>
    %70 = arith.index_cast %c1_i32 : i32 to index
    %c0_20 = arith.constant 0 : index
    %c0_21 = arith.constant 0 : index
    %71 = vector.load %arg5[%70, %c0_20, %c0_21] : memref<8x16x32xf32, #tpu.memory_space<vmem>>, vector<1x16x32xf32>
    %72 = vector.shape_cast %71 : vector<1x16x32xf32> to vector<16x32xf32>
    %73 = vector.shape_cast %69 : vector<16x32xf32> to vector<1x16x32xf32>
    tpu.vector_store %arg5[%70, %c0_20, %c0_21], %73 {strides = array<i32>} : memref<8x16x32xf32, #tpu.memory_space<vmem>>, vector<1x16x32xf32>,
    %c2_i32 = arith.constant 2 : i32
    %74 = arith.index_cast %c2_i32 : i32 to index
    %c0_22 = arith.constant 0 : index
    %c0_23 = arith.constant 0 : index
    %75 = vector.load %arg1[%74, %c0_22, %c0_23] : memref<8x16x128xf32, #tpu.memory_space<vmem>>, vector<1x16x128xf32>
    %76 = vector.shape_cast %75 : vector<1x16x128xf32> to vector<16x128xf32>
    %77 = arith.truncf %69 : vector<16x32xf32> to vector<16x32xbf16>
    %c0_24 = arith.constant 0 : index
    %c0_25 = arith.constant 0 : index
    %78 = vector.load %arg2[%c0_24, %c0_25] : memref<32x128xbf16, #tpu.memory_space<vmem>>, vector<32x128xbf16>
    %cst_26 = arith.constant dense<0.000000e+00> : vector<16x128xf32>
    %79 = tpu.matmul %77, %78, %cst_26 {dimension_numbers = #tpu.dot_dimension_numbers<[1], [0], [0], [1], [0, 0, 1, 1], [], []>} : vector<16x32xbf16>, vector<32x128xbf16>, vector<16x128xf32> -> vector<16x128xf32>
    %80 = arith.addf %76, %79 : vector<16x128xf32>
    %81 = vector.extract_strided_slice %80 {offsets = [0, 0], sizes = [16, 32], strides = [1, 1]} : vector<16x128xf32> to vector<16x32xf32>
    %82 = arith.negf %81 : vector<16x32xf32>
    %83 = math.exp %82 : vector<16x32xf32>
    %cst_27 = arith.constant 1.000000e+00 : f32
    %84 = vector.broadcast %cst_27 : f32 to vector<16x32xf32>
    %85 = arith.addf %84, %83 : vector<16x32xf32>
    %86 = arith.divf %84, %85 : vector<16x32xf32>
    %87 = vector.extract_strided_slice %80 {offsets = [0, 32], sizes = [16, 32], strides = [1, 1]} : vector<16x128xf32> to vector<16x32xf32>
    %88 = arith.negf %87 : vector<16x32xf32>
    %89 = math.exp %88 : vector<16x32xf32>
    %cst_28 = arith.constant 1.000000e+00 : f32
    %90 = vector.broadcast %cst_28 : f32 to vector<16x32xf32>
    %91 = arith.addf %90, %89 : vector<16x32xf32>
    %92 = arith.divf %90, %91 : vector<16x32xf32>
    %93 = vector.extract_strided_slice %80 {offsets = [0, 64], sizes = [16, 32], strides = [1, 1]} : vector<16x128xf32> to vector<16x32xf32>
    %94 = math.tanh %93 : vector<16x32xf32>
    %95 = vector.extract_strided_slice %80 {offsets = [0, 96], sizes = [16, 32], strides = [1, 1]} : vector<16x128xf32> to vector<16x32xf32>
    %96 = arith.negf %95 : vector<16x32xf32>
    %97 = math.exp %96 : vector<16x32xf32>
    %cst_29 = arith.constant 1.000000e+00 : f32
    %98 = vector.broadcast %cst_29 : f32 to vector<16x32xf32>
    %99 = arith.addf %98, %97 : vector<16x32xf32>
    %100 = arith.divf %98, %99 : vector<16x32xf32>
    %101 = arith.mulf %92, %67 : vector<16x32xf32>
    %102 = arith.mulf %86, %94 : vector<16x32xf32>
    %103 = arith.addf %101, %102 : vector<16x32xf32>
    %104 = math.tanh %103 : vector<16x32xf32>
    %105 = arith.mulf %100, %104 : vector<16x32xf32>
    %106 = arith.index_cast %c2_i32 : i32 to index
    %c0_30 = arith.constant 0 : index
    %c0_31 = arith.constant 0 : index
    %107 = vector.load %arg5[%106, %c0_30, %c0_31] : memref<8x16x32xf32, #tpu.memory_space<vmem>>, vector<1x16x32xf32>
    %108 = vector.shape_cast %107 : vector<1x16x32xf32> to vector<16x32xf32>
    %109 = vector.shape_cast %105 : vector<16x32xf32> to vector<1x16x32xf32>
    tpu.vector_store %arg5[%106, %c0_30, %c0_31], %109 {strides = array<i32>} : memref<8x16x32xf32, #tpu.memory_space<vmem>>, vector<1x16x32xf32>,
    %c3_i32 = arith.constant 3 : i32
    %110 = arith.index_cast %c3_i32 : i32 to index
    %c0_32 = arith.constant 0 : index
    %c0_33 = arith.constant 0 : index
    %111 = vector.load %arg1[%110, %c0_32, %c0_33] : memref<8x16x128xf32, #tpu.memory_space<vmem>>, vector<1x16x128xf32>
    %112 = vector.shape_cast %111 : vector<1x16x128xf32> to vector<16x128xf32>
    %113 = arith.truncf %105 : vector<16x32xf32> to vector<16x32xbf16>
    %c0_34 = arith.constant 0 : index
    %c0_35 = arith.constant 0 : index
    %114 = vector.load %arg2[%c0_34, %c0_35] : memref<32x128xbf16, #tpu.memory_space<vmem>>, vector<32x128xbf16>
    %cst_36 = arith.constant dense<0.000000e+00> : vector<16x128xf32>
    %115 = tpu.matmul %113, %114, %cst_36 {dimension_numbers = #tpu.dot_dimension_numbers<[1], [0], [0], [1], [0, 0, 1, 1], [], []>} : vector<16x32xbf16>, vector<32x128xbf16>, vector<16x128xf32> -> vector<16x128xf32>
    %116 = arith.addf %112, %115 : vector<16x128xf32>
    %117 = vector.extract_strided_slice %116 {offsets = [0, 0], sizes = [16, 32], strides = [1, 1]} : vector<16x128xf32> to vector<16x32xf32>
    %118 = arith.negf %117 : vector<16x32xf32>
    %119 = math.exp %118 : vector<16x32xf32>
    %cst_37 = arith.constant 1.000000e+00 : f32
    %120 = vector.broadcast %cst_37 : f32 to vector<16x32xf32>
    %121 = arith.addf %120, %119 : vector<16x32xf32>
    %122 = arith.divf %120, %121 : vector<16x32xf32>
    %123 = vector.extract_strided_slice %116 {offsets = [0, 32], sizes = [16, 32], strides = [1, 1]} : vector<16x128xf32> to vector<16x32xf32>
    %124 = arith.negf %123 : vector<16x32xf32>
    %125 = math.exp %124 : vector<16x32xf32>
    %cst_38 = arith.constant 1.000000e+00 : f32
    %126 = vector.broadcast %cst_38 : f32 to vector<16x32xf32>
    %127 = arith.addf %126, %125 : vector<16x32xf32>
    %128 = arith.divf %126, %127 : vector<16x32xf32>
    %129 = vector.extract_strided_slice %116 {offsets = [0, 64], sizes = [16, 32], strides = [1, 1]} : vector<16x128xf32> to vector<16x32xf32>
    %130 = math.tanh %129 : vector<16x32xf32>
    %131 = vector.extract_strided_slice %116 {offsets = [0, 96], sizes = [16, 32], strides = [1, 1]} : vector<16x128xf32> to vector<16x32xf32>
    %132 = arith.negf %131 : vector<16x32xf32>
    %133 = math.exp %132 : vector<16x32xf32>
    %cst_39 = arith.constant 1.000000e+00 : f32
    %134 = vector.broadcast %cst_39 : f32 to vector<16x32xf32>
    %135 = arith.addf %134, %133 : vector<16x32xf32>
    %136 = arith.divf %134, %135 : vector<16x32xf32>
    %137 = arith.mulf %128, %103 : vector<16x32xf32>
    %138 = arith.mulf %122, %130 : vector<16x32xf32>
    %139 = arith.addf %137, %138 : vector<16x32xf32>
    %140 = math.tanh %139 : vector<16x32xf32>
    %141 = arith.mulf %136, %140 : vector<16x32xf32>
    %142 = arith.index_cast %c3_i32 : i32 to index
    %c0_40 = arith.constant 0 : index
    %c0_41 = arith.constant 0 : index
    %143 = vector.load %arg5[%142, %c0_40, %c0_41] : memref<8x16x32xf32, #tpu.memory_space<vmem>>, vector<1x16x32xf32>
    %144 = vector.shape_cast %143 : vector<1x16x32xf32> to vector<16x32xf32>
    %145 = vector.shape_cast %141 : vector<16x32xf32> to vector<1x16x32xf32>
    tpu.vector_store %arg5[%142, %c0_40, %c0_41], %145 {strides = array<i32>} : memref<8x16x32xf32, #tpu.memory_space<vmem>>, vector<1x16x32xf32>,
    %c4_i32 = arith.constant 4 : i32
    %146 = arith.index_cast %c4_i32 : i32 to index
    %c0_42 = arith.constant 0 : index
    %c0_43 = arith.constant 0 : index
    %147 = vector.load %arg1[%146, %c0_42, %c0_43] : memref<8x16x128xf32, #tpu.memory_space<vmem>>, vector<1x16x128xf32>
    %148 = vector.shape_cast %147 : vector<1x16x128xf32> to vector<16x128xf32>
    %149 = arith.truncf %141 : vector<16x32xf32> to vector<16x32xbf16>
    %c0_44 = arith.constant 0 : index
    %c0_45 = arith.constant 0 : index
    %150 = vector.load %arg2[%c0_44, %c0_45] : memref<32x128xbf16, #tpu.memory_space<vmem>>, vector<32x128xbf16>
    %cst_46 = arith.constant dense<0.000000e+00> : vector<16x128xf32>
    %151 = tpu.matmul %149, %150, %cst_46 {dimension_numbers = #tpu.dot_dimension_numbers<[1], [0], [0], [1], [0, 0, 1, 1], [], []>} : vector<16x32xbf16>, vector<32x128xbf16>, vector<16x128xf32> -> vector<16x128xf32>
    %152 = arith.addf %148, %151 : vector<16x128xf32>
    %153 = vector.extract_strided_slice %152 {offsets = [0, 0], sizes = [16, 32], strides = [1, 1]} : vector<16x128xf32> to vector<16x32xf32>
    %154 = arith.negf %153 : vector<16x32xf32>
    %155 = math.exp %154 : vector<16x32xf32>
    %cst_47 = arith.constant 1.000000e+00 : f32
    %156 = vector.broadcast %cst_47 : f32 to vector<16x32xf32>
    %157 = arith.addf %156, %155 : vector<16x32xf32>
    %158 = arith.divf %156, %157 : vector<16x32xf32>
    %159 = vector.extract_strided_slice %152 {offsets = [0, 32], sizes = [16, 32], strides = [1, 1]} : vector<16x128xf32> to vector<16x32xf32>
    %160 = arith.negf %159 : vector<16x32xf32>
    %161 = math.exp %160 : vector<16x32xf32>
    %cst_48 = arith.constant 1.000000e+00 : f32
    %162 = vector.broadcast %cst_48 : f32 to vector<16x32xf32>
    %163 = arith.addf %162, %161 : vector<16x32xf32>
    %164 = arith.divf %162, %163 : vector<16x32xf32>
    %165 = vector.extract_strided_slice %152 {offsets = [0, 64], sizes = [16, 32], strides = [1, 1]} : vector<16x128xf32> to vector<16x32xf32>
    %166 = math.tanh %165 : vector<16x32xf32>
    %167 = vector.extract_strided_slice %152 {offsets = [0, 96], sizes = [16, 32], strides = [1, 1]} : vector<16x128xf32> to vector<16x32xf32>
    %168 = arith.negf %167 : vector<16x32xf32>
    %169 = math.exp %168 : vector<16x32xf32>
    %cst_49 = arith.constant 1.000000e+00 : f32
    %170 = vector.broadcast %cst_49 : f32 to vector<16x32xf32>
    %171 = arith.addf %170, %169 : vector<16x32xf32>
    %172 = arith.divf %170, %171 : vector<16x32xf32>
    %173 = arith.mulf %164, %139 : vector<16x32xf32>
    %174 = arith.mulf %158, %166 : vector<16x32xf32>
    %175 = arith.addf %173, %174 : vector<16x32xf32>
    %176 = math.tanh %175 : vector<16x32xf32>
    %177 = arith.mulf %172, %176 : vector<16x32xf32>
    %178 = arith.index_cast %c4_i32 : i32 to index
    %c0_50 = arith.constant 0 : index
    %c0_51 = arith.constant 0 : index
    %179 = vector.load %arg5[%178, %c0_50, %c0_51] : memref<8x16x32xf32, #tpu.memory_space<vmem>>, vector<1x16x32xf32>
    %180 = vector.shape_cast %179 : vector<1x16x32xf32> to vector<16x32xf32>
    %181 = vector.shape_cast %177 : vector<16x32xf32> to vector<1x16x32xf32>
    tpu.vector_store %arg5[%178, %c0_50, %c0_51], %181 {strides = array<i32>} : memref<8x16x32xf32, #tpu.memory_space<vmem>>, vector<1x16x32xf32>,
    %c5_i32 = arith.constant 5 : i32
    %182 = arith.index_cast %c5_i32 : i32 to index
    %c0_52 = arith.constant 0 : index
    %c0_53 = arith.constant 0 : index
    %183 = vector.load %arg1[%182, %c0_52, %c0_53] : memref<8x16x128xf32, #tpu.memory_space<vmem>>, vector<1x16x128xf32>
    %184 = vector.shape_cast %183 : vector<1x16x128xf32> to vector<16x128xf32>
    %185 = arith.truncf %177 : vector<16x32xf32> to vector<16x32xbf16>
    %c0_54 = arith.constant 0 : index
    %c0_55 = arith.constant 0 : index
    %186 = vector.load %arg2[%c0_54, %c0_55] : memref<32x128xbf16, #tpu.memory_space<vmem>>, vector<32x128xbf16>
    %cst_56 = arith.constant dense<0.000000e+00> : vector<16x128xf32>
    %187 = tpu.matmul %185, %186, %cst_56 {dimension_numbers = #tpu.dot_dimension_numbers<[1], [0], [0], [1], [0, 0, 1, 1], [], []>} : vector<16x32xbf16>, vector<32x128xbf16>, vector<16x128xf32> -> vector<16x128xf32>
    %188 = arith.addf %184, %187 : vector<16x128xf32>
    %189 = vector.extract_strided_slice %188 {offsets = [0, 0], sizes = [16, 32], strides = [1, 1]} : vector<16x128xf32> to vector<16x32xf32>
    %190 = arith.negf %189 : vector<16x32xf32>
    %191 = math.exp %190 : vector<16x32xf32>
    %cst_57 = arith.constant 1.000000e+00 : f32
    %192 = vector.broadcast %cst_57 : f32 to vector<16x32xf32>
    %193 = arith.addf %192, %191 : vector<16x32xf32>
    %194 = arith.divf %192, %193 : vector<16x32xf32>
    %195 = vector.extract_strided_slice %188 {offsets = [0, 32], sizes = [16, 32], strides = [1, 1]} : vector<16x128xf32> to vector<16x32xf32>
    %196 = arith.negf %195 : vector<16x32xf32>
    %197 = math.exp %196 : vector<16x32xf32>
    %cst_58 = arith.constant 1.000000e+00 : f32
    %198 = vector.broadcast %cst_58 : f32 to vector<16x32xf32>
    %199 = arith.addf %198, %197 : vector<16x32xf32>
    %200 = arith.divf %198, %199 : vector<16x32xf32>
    %201 = vector.extract_strided_slice %188 {offsets = [0, 64], sizes = [16, 32], strides = [1, 1]} : vector<16x128xf32> to vector<16x32xf32>
    %202 = math.tanh %201 : vector<16x32xf32>
    %203 = vector.extract_strided_slice %188 {offsets = [0, 96], sizes = [16, 32], strides = [1, 1]} : vector<16x128xf32> to vector<16x32xf32>
    %204 = arith.negf %203 : vector<16x32xf32>
    %205 = math.exp %204 : vector<16x32xf32>
    %cst_59 = arith.constant 1.000000e+00 : f32
    %206 = vector.broadcast %cst_59 : f32 to vector<16x32xf32>
    %207 = arith.addf %206, %205 : vector<16x32xf32>
    %208 = arith.divf %206, %207 : vector<16x32xf32>
    %209 = arith.mulf %200, %175 : vector<16x32xf32>
    %210 = arith.mulf %194, %202 : vector<16x32xf32>
    %211 = arith.addf %209, %210 : vector<16x32xf32>
    %212 = math.tanh %211 : vector<16x32xf32>
    %213 = arith.mulf %208, %212 : vector<16x32xf32>
    %214 = arith.index_cast %c5_i32 : i32 to index
    %c0_60 = arith.constant 0 : index
    %c0_61 = arith.constant 0 : index
    %215 = vector.load %arg5[%214, %c0_60, %c0_61] : memref<8x16x32xf32, #tpu.memory_space<vmem>>, vector<1x16x32xf32>
    %216 = vector.shape_cast %215 : vector<1x16x32xf32> to vector<16x32xf32>
    %217 = vector.shape_cast %213 : vector<16x32xf32> to vector<1x16x32xf32>
    tpu.vector_store %arg5[%214, %c0_60, %c0_61], %217 {strides = array<i32>} : memref<8x16x32xf32, #tpu.memory_space<vmem>>, vector<1x16x32xf32>,
    %c6_i32 = arith.constant 6 : i32
    %218 = arith.index_cast %c6_i32 : i32 to index
    %c0_62 = arith.constant 0 : index
    %c0_63 = arith.constant 0 : index
    %219 = vector.load %arg1[%218, %c0_62, %c0_63] : memref<8x16x128xf32, #tpu.memory_space<vmem>>, vector<1x16x128xf32>
    %220 = vector.shape_cast %219 : vector<1x16x128xf32> to vector<16x128xf32>
    %221 = arith.truncf %213 : vector<16x32xf32> to vector<16x32xbf16>
    %c0_64 = arith.constant 0 : index
    %c0_65 = arith.constant 0 : index
    %222 = vector.load %arg2[%c0_64, %c0_65] : memref<32x128xbf16, #tpu.memory_space<vmem>>, vector<32x128xbf16>
    %cst_66 = arith.constant dense<0.000000e+00> : vector<16x128xf32>
    %223 = tpu.matmul %221, %222, %cst_66 {dimension_numbers = #tpu.dot_dimension_numbers<[1], [0], [0], [1], [0, 0, 1, 1], [], []>} : vector<16x32xbf16>, vector<32x128xbf16>, vector<16x128xf32> -> vector<16x128xf32>
    %224 = arith.addf %220, %223 : vector<16x128xf32>
    %225 = vector.extract_strided_slice %224 {offsets = [0, 0], sizes = [16, 32], strides = [1, 1]} : vector<16x128xf32> to vector<16x32xf32>
    %226 = arith.negf %225 : vector<16x32xf32>
    %227 = math.exp %226 : vector<16x32xf32>
    %cst_67 = arith.constant 1.000000e+00 : f32
    %228 = vector.broadcast %cst_67 : f32 to vector<16x32xf32>
    %229 = arith.addf %228, %227 : vector<16x32xf32>
    %230 = arith.divf %228, %229 : vector<16x32xf32>
    %231 = vector.extract_strided_slice %224 {offsets = [0, 32], sizes = [16, 32], strides = [1, 1]} : vector<16x128xf32> to vector<16x32xf32>
    %232 = arith.negf %231 : vector<16x32xf32>
    %233 = math.exp %232 : vector<16x32xf32>
    %cst_68 = arith.constant 1.000000e+00 : f32
    %234 = vector.broadcast %cst_68 : f32 to vector<16x32xf32>
    %235 = arith.addf %234, %233 : vector<16x32xf32>
    %236 = arith.divf %234, %235 : vector<16x32xf32>
    %237 = vector.extract_strided_slice %224 {offsets = [0, 64], sizes = [16, 32], strides = [1, 1]} : vector<16x128xf32> to vector<16x32xf32>
    %238 = math.tanh %237 : vector<16x32xf32>
    %239 = vector.extract_strided_slice %224 {offsets = [0, 96], sizes = [16, 32], strides = [1, 1]} : vector<16x128xf32> to vector<16x32xf32>
    %240 = arith.negf %239 : vector<16x32xf32>
    %241 = math.exp %240 : vector<16x32xf32>
    %cst_69 = arith.constant 1.000000e+00 : f32
    %242 = vector.broadcast %cst_69 : f32 to vector<16x32xf32>
    %243 = arith.addf %242, %241 : vector<16x32xf32>
    %244 = arith.divf %242, %243 : vector<16x32xf32>
    %245 = arith.mulf %236, %211 : vector<16x32xf32>
    %246 = arith.mulf %230, %238 : vector<16x32xf32>
    %247 = arith.addf %245, %246 : vector<16x32xf32>
    %248 = math.tanh %247 : vector<16x32xf32>
    %249 = arith.mulf %244, %248 : vector<16x32xf32>
    %250 = arith.index_cast %c6_i32 : i32 to index
    %c0_70 = arith.constant 0 : index
    %c0_71 = arith.constant 0 : index
    %251 = vector.load %arg5[%250, %c0_70, %c0_71] : memref<8x16x32xf32, #tpu.memory_space<vmem>>, vector<1x16x32xf32>
    %252 = vector.shape_cast %251 : vector<1x16x32xf32> to vector<16x32xf32>
    %253 = vector.shape_cast %249 : vector<16x32xf32> to vector<1x16x32xf32>
    tpu.vector_store %arg5[%250, %c0_70, %c0_71], %253 {strides = array<i32>} : memref<8x16x32xf32, #tpu.memory_space<vmem>>, vector<1x16x32xf32>,
    %c7_i32 = arith.constant 7 : i32
    %254 = arith.index_cast %c7_i32 : i32 to index
    %c0_72 = arith.constant 0 : index
    %c0_73 = arith.constant 0 : index
    %255 = vector.load %arg1[%254, %c0_72, %c0_73] : memref<8x16x128xf32, #tpu.memory_space<vmem>>, vector<1x16x128xf32>
    %256 = vector.shape_cast %255 : vector<1x16x128xf32> to vector<16x128xf32>
    %257 = arith.truncf %249 : vector<16x32xf32> to vector<16x32xbf16>
    %c0_74 = arith.constant 0 : index
    %c0_75 = arith.constant 0 : index
    %258 = vector.load %arg2[%c0_74, %c0_75] : memref<32x128xbf16, #tpu.memory_space<vmem>>, vector<32x128xbf16>
    %cst_76 = arith.constant dense<0.000000e+00> : vector<16x128xf32>
    %259 = tpu.matmul %257, %258, %cst_76 {dimension_numbers = #tpu.dot_dimension_numbers<[1], [0], [0], [1], [0, 0, 1, 1], [], []>} : vector<16x32xbf16>, vector<32x128xbf16>, vector<16x128xf32> -> vector<16x128xf32>
    %260 = arith.addf %256, %259 : vector<16x128xf32>
    %261 = vector.extract_strided_slice %260 {offsets = [0, 0], sizes = [16, 32], strides = [1, 1]} : vector<16x128xf32> to vector<16x32xf32>
    %262 = arith.negf %261 : vector<16x32xf32>
    %263 = math.exp %262 : vector<16x32xf32>
    %cst_77 = arith.constant 1.000000e+00 : f32
    %264 = vector.broadcast %cst_77 : f32 to vector<16x32xf32>
    %265 = arith.addf %264, %263 : vector<16x32xf32>
    %266 = arith.divf %264, %265 : vector<16x32xf32>
    %267 = vector.extract_strided_slice %260 {offsets = [0, 32], sizes = [16, 32], strides = [1, 1]} : vector<16x128xf32> to vector<16x32xf32>
    %268 = arith.negf %267 : vector<16x32xf32>
    %269 = math.exp %268 : vector<16x32xf32>
    %cst_78 = arith.constant 1.000000e+00 : f32
    %270 = vector.broadcast %cst_78 : f32 to vector<16x32xf32>
    %271 = arith.addf %270, %269 : vector<16x32xf32>
    %272 = arith.divf %270, %271 : vector<16x32xf32>
    %273 = vector.extract_strided_slice %260 {offsets = [0, 64], sizes = [16, 32], strides = [1, 1]} : vector<16x128xf32> to vector<16x32xf32>
    %274 = math.tanh %273 : vector<16x32xf32>
    %275 = vector.extract_strided_slice %260 {offsets = [0, 96], sizes = [16, 32], strides = [1, 1]} : vector<16x128xf32> to vector<16x32xf32>
    %276 = arith.negf %275 : vector<16x32xf32>
    %277 = math.exp %276 : vector<16x32xf32>
    %cst_79 = arith.constant 1.000000e+00 : f32
    %278 = vector.broadcast %cst_79 : f32 to vector<16x32xf32>
    %279 = arith.addf %278, %277 : vector<16x32xf32>
    %280 = arith.divf %278, %279 : vector<16x32xf32>
    %281 = arith.mulf %272, %247 : vector<16x32xf32>
    %282 = arith.mulf %266, %274 : vector<16x32xf32>
    %283 = arith.addf %281, %282 : vector<16x32xf32>
    %284 = math.tanh %283 : vector<16x32xf32>
    %285 = arith.mulf %280, %284 : vector<16x32xf32>
    %286 = arith.index_cast %c7_i32 : i32 to index
    %c0_80 = arith.constant 0 : index
    %c0_81 = arith.constant 0 : index
    %287 = vector.load %arg5[%286, %c0_80, %c0_81] : memref<8x16x32xf32, #tpu.memory_space<vmem>>, vector<1x16x32xf32>
    %288 = vector.shape_cast %287 : vector<1x16x32xf32> to vector<16x32xf32>
    %289 = vector.shape_cast %285 : vector<16x32xf32> to vector<1x16x32xf32>
    tpu.vector_store %arg5[%286, %c0_80, %c0_81], %289 {strides = array<i32>} : memref<8x16x32xf32, #tpu.memory_space<vmem>>, vector<1x16x32xf32>,
    %c8_i32 = arith.constant 8 : i32
    %c0_82 = arith.constant 0 : index
    %c0_83 = arith.constant 0 : index
    %290 = vector.load %arg6[%c0_82, %c0_83] : memref<16x32xf32, #tpu.memory_space<vmem>>, vector<16x32xf32>
    tpu.vector_store %arg6[%c0_82, %c0_83], %285 {strides = array<i32>} : memref<16x32xf32, #tpu.memory_space<vmem>>, vector<16x32xf32>,
    %c0_84 = arith.constant 0 : index
    %c0_85 = arith.constant 0 : index
    %291 = vector.load %arg7[%c0_84, %c0_85] : memref<16x32xf32, #tpu.memory_space<vmem>>, vector<16x32xf32>
    tpu.vector_store %arg7[%c0_84, %c0_85], %283 {strides = array<i32>} : memref<16x32xf32, #tpu.memory_space<vmem>>, vector<16x32xf32>,
    return
  }
  func.func @transform_0(%arg0: i32) -> (i32, i32, i32) {
    %c0_i32 = arith.constant 0 : i32
    %c0_i32_0 = arith.constant 0 : i32
    %c0_i32_1 = arith.constant 0 : i32
    return %c0_i32, %arg0, %c0_i32_0 : i32, i32, i32
  }
  func.func @transform_1(%arg0: i32) -> (i32, i32) {
    %c0_i32 = arith.constant 0 : i32
    %c0_i32_0 = arith.constant 0 : i32
    %c0_i32_1 = arith.constant 0 : i32
    return %c0_i32, %c0_i32_0 : i32, i32
  }
  func.func @transform_2(%arg0: i32) -> (i32, i32) {
    %c0_i32 = arith.constant 0 : i32
    %c0_i32_0 = arith.constant 0 : i32
    return %arg0, %c0_i32 : i32, i32
  }
  func.func @transform_3(%arg0: i32) -> (i32, i32) {
    %c0_i32 = arith.constant 0 : i32
    %c0_i32_0 = arith.constant 0 : i32
    return %arg0, %c0_i32 : i32, i32
  }
  func.func @transform_4(%arg0: i32) -> (i32, i32, i32) {
    %c0_i32 = arith.constant 0 : i32
    %c0_i32_0 = arith.constant 0 : i32
    %c0_i32_1 = arith.constant 0 : i32
    return %c0_i32, %arg0, %c0_i32_0 : i32, i32, i32
  }
  func.func @transform_5(%arg0: i32) -> (i32, i32) {
    %c0_i32 = arith.constant 0 : i32
    %c0_i32_0 = arith.constant 0 : i32
    return %arg0, %c0_i32 : i32, i32
  }
  func.func @transform_6(%arg0: i32) -> (i32, i32) {
    %c0_i32 = arith.constant 0 : i32
    %c0_i32_0 = arith.constant 0 : i32
    return %arg0, %c0_i32 : i32, i32
  }
}

module attributes {stable_mosaic.version = 11 : i64} {
  func.func @_bn_relu_kernel(%arg0: i32, %arg1: memref<8x128xf32, #tpu.memory_space<vmem>>, %arg2: memref<8x1xf32, #tpu.memory_space<vmem>>, %arg3: memref<8x1xf32, #tpu.memory_space<vmem>>, %arg4: memref<8x128xf32, #tpu.memory_space<vmem>>) attributes {dimension_semantics = [#tpu.dimension_semantics<parallel>], iteration_bounds = array<i64: 2>, scalar_prefetch = 0 : i64, scratch_operands = 0 : i64, tpu.core_type = #tpu.core_type<tc>, window_params = [{transform_indices = @transform_0, window_bounds = array<i64: 8, 128>}, {pipeline_mode = #tpu.pipeline_mode<synchronous>, transform_indices = @transform_1, window_bounds = array<i64: 8, 1>}, {pipeline_mode = #tpu.pipeline_mode<synchronous>, transform_indices = @transform_2, window_bounds = array<i64: 8, 1>}, {transform_indices = @transform_3, window_bounds = array<i64: 8, 128>}]} {
    %c0 = arith.constant 0 : index
    %c0_0 = arith.constant 0 : index
    %0 = vector.load %arg1[%c0, %c0_0] : memref<8x128xf32, #tpu.memory_space<vmem>>, vector<8x128xf32>
    %c0_1 = arith.constant 0 : index
    %c0_2 = arith.constant 0 : index
    %1 = vector.load %arg2[%c0_1, %c0_2] : memref<8x1xf32, #tpu.memory_space<vmem>>, vector<8x1xf32>
    %2 = vector.broadcast %1 : vector<8x1xf32> to vector<8x128xf32>
    %3 = arith.mulf %0, %2 : vector<8x128xf32>
    %c0_3 = arith.constant 0 : index
    %c0_4 = arith.constant 0 : index
    %4 = vector.load %arg3[%c0_3, %c0_4] : memref<8x1xf32, #tpu.memory_space<vmem>>, vector<8x1xf32>
    %5 = vector.broadcast %4 : vector<8x1xf32> to vector<8x128xf32>
    %6 = arith.addf %3, %5 : vector<8x128xf32>
    %cst = arith.constant 0.000000e+00 : f32
    %7 = vector.broadcast %cst : f32 to vector<8x128xf32>
    %8 = arith.maximumf %6, %7 : vector<8x128xf32>
    %c0_5 = arith.constant 0 : index
    %c0_6 = arith.constant 0 : index
    %9 = vector.load %arg4[%c0_5, %c0_6] : memref<8x128xf32, #tpu.memory_space<vmem>>, vector<8x128xf32>
    tpu.vector_store %arg4[%c0_5, %c0_6], %8 {strides = array<i32>} : memref<8x128xf32, #tpu.memory_space<vmem>>, vector<8x128xf32>,
    return
  }
  func.func @transform_0(%arg0: i32) -> (i32, i32) {
    %c0_i32 = arith.constant 0 : i32
    %c0_i32_0 = arith.constant 0 : i32
    return %c0_i32, %arg0 : i32, i32
  }
  func.func @transform_1(%arg0: i32) -> (i32, i32) {
    %c0_i32 = arith.constant 0 : i32
    %c0_i32_0 = arith.constant 0 : i32
    %c0_i32_1 = arith.constant 0 : i32
    return %c0_i32, %c0_i32_0 : i32, i32
  }
  func.func @transform_2(%arg0: i32) -> (i32, i32) {
    %c0_i32 = arith.constant 0 : i32
    %c0_i32_0 = arith.constant 0 : i32
    %c0_i32_1 = arith.constant 0 : i32
    return %c0_i32, %c0_i32_0 : i32, i32
  }
  func.func @transform_3(%arg0: i32) -> (i32, i32) {
    %c0_i32 = arith.constant 0 : i32
    %c0_i32_0 = arith.constant 0 : i32
    return %c0_i32, %arg0 : i32, i32
  }
}

</mosaic_0001>

<llo_original>
// kernel: tlstm_block_forward.4
$region0: #{tlstm_block_forward.4}
  #allocation0 [shape = 'u32[]', space=smem, size = 0x4, offset = 0x4, fixed_abs, tag = 'smem constant byte address 0x4 - core index']
  #allocation1 [shape = 'u32[72,128]{1,0:T(1,128)}', space=vmem, size = 0x9000, scoped, tag = 'internal scratch']
  %s0 = inlined_call_operand.vmem [shape: f32[256,4], index: 0, kind: input, shape index: {}]
  %s1 = inlined_call_operand.vmem [shape: f32[4,128], index: 1, kind: input, shape index: {}]
  %s2 = inlined_call_operand.vmem [shape: f32[1,128], index: 2, kind: input, shape index: {}]
  %s3 = inlined_call_operand.vmem [shape: f32[256,128], index: 3, kind: output, shape index: {}]
  %s4 = sld [smem:[#allocation0]]
  $region45: #{tlstm_block_forward.4} parent=0
    _
  %s6 = ssub.s32 1, %s4
  %s7 = scalar_select 0, %s6, %s4
  loop: start=0, step=1, limit=4
  $region2: #{tlstm_block_forward.4} parent=0 // loop_pre_header
    _
  $region3: #{tlstm_block_forward.4} parent=0 // loop_header
    %s9 = sphi 0, %s13
    %p10 = scmp.ge.s32.totalorder %s9, 4
    %s19 = sphi 0, %s21
    %s22 = sphi 0, %s19
    %s23 = sphi 0, %s22
    %s39 = sphi 0, %s23
    %s43 = sphi 0, %s43
    %s45 = sphi 0, %s43
    %s46 = sphi 0, %s45
    %s60 = sphi 0, %s46
    %s64 = sphi 0, %s64
    %s66 = sphi 0, %s64
    %s67 = sphi 0, %s66
    %s81 = sphi 0, %s67
    %s87 = sphi 0, %s89
    %s90 = sphi 0, %s87
    %s91 = sphi 0, %s90
    %s107 = sphi 0, %s91
  $region4: #{tlstm_block_forward.4} parent=0 // loop_header_branch
    %12 = sbr.rel (%p10) target = $region8
  $region5: #{tlstm_block_forward.4} parent=0 // loop_body
    %s14 = ssub.s32 %s9, 1
    %s15 = ssub.s32 %s9, 2
    %s16 = sadd.s32 %s9, 1
    %s17 = ssub.s32 %s9, %s16
    %p18 = scmp.eq.s32.totalorder %s17, 0
    %s20 = sadd.s32 %s19, 1
    %s21 = scalar_select %p18, %s19, %s20
    %p24 = pneg %p18
    %p25 = scmp.eq.s32.totalorder %s9, 1
    %p26 = por %p24, %p25
    %p27 = scmp.ne.s32.totalorder %s19, %s22
    %p28 = scmp.eq.s32.totalorder %s9, 0
    %p29 = por %p27, %p28
    %p30 = scmp.ne.s32.totalorder %s19, %s22
    %p31 = scmp.eq.s32.totalorder %s14, 1
    %p32 = por %p30, %p31
    %p33 = scmp.ne.s32.totalorder %s22, %s23
    %p34 = scmp.eq.s32.totalorder %s14, 0
    %p35 = por %p33, %p34
    %p36 = scmp.ne.s32.totalorder %s22, %s23
    %p37 = scmp.eq.s32.totalorder %s15, 1
    %p38 = por %p36, %p37
    %p40 = scmp.ne.s32.totalorder %s23, %s39
    %p41 = scmp.eq.s32.totalorder %s15, 0
    %p42 = por %p40, %p41
    %s44 = sadd.s32 %s43, 1
    %p47 = scmp.eq.s32.totalorder %s9, 1
    %p48 = scmp.ne.s32.totalorder %s43, %s45
    %p49 = scmp.eq.s32.totalorder %s9, 0
    %p50 = por %p48, %p49
    %p51 = scmp.ne.s32.totalorder %s43, %s45
    %p52 = scmp.eq.s32.totalorder %s14, 1
    %p53 = por %p51, %p52
    %p54 = scmp.ne.s32.totalorder %s45, %s46
    %p55 = scmp.eq.s32.totalorder %s14, 0
    %p56 = por %p54, %p55
    %p57 = scmp.ne.s32.totalorder %s45, %s46
    %p58 = scmp.eq.s32.totalorder %s15, 1
    %p59 = por %p57, %p58
    %p61 = scmp.ne.s32.totalorder %s46, %s60
    %p62 = scmp.eq.s32.totalorder %s15, 0
    %p63 = por %p61, %p62
    %s65 = sadd.s32 %s64, 1
    %p68 = scmp.eq.s32.totalorder %s9, 1
    %p69 = scmp.ne.s32.totalorder %s64, %s66
    %p70 = scmp.eq.s32.totalorder %s9, 0
    %p71 = por %p69, %p70
    %p72 = scmp.ne.s32.totalorder %s64, %s66
    %p73 = scmp.eq.s32.totalorder %s14, 1
    %p74 = por %p72, %p73
    %p75 = scmp.ne.s32.totalorder %s66, %s67
    %p76 = scmp.eq.s32.totalorder %s14, 0
    %p77 = por %p75, %p76
    %p78 = scmp.ne.s32.totalorder %s66, %s67
    %p79 = scmp.eq.s32.totalorder %s15, 1
    %p80 = por %p78, %p79
    %p82 = scmp.ne.s32.totalorder %s67, %s81
    %p83 = scmp.eq.s32.totalorder %s15, 0
    %p84 = por %p82, %p83
    %s85 = ssub.s32 %s9, %s16
    %p86 = scmp.eq.s32.totalorder %s85, 0
    %s88 = sadd.s32 %s87, 1
    %s89 = scalar_select %p86, %s87, %s88
    %p92 = pneg %p86
    %p93 = scmp.eq.s32.totalorder %s9, 1
    %p94 = por %p92, %p93
    %p95 = scmp.ne.s32.totalorder %s87, %s90
    %p96 = scmp.eq.s32.totalorder %s9, 0
    %p97 = por %p95, %p96
    %p98 = scmp.ne.s32.totalorder %s87, %s90
    %p99 = scmp.eq.s32.totalorder %s14, 1
    %p100 = por %p98, %p99
    %p101 = scmp.ne.s32.totalorder %s90, %s91
    %p102 = scmp.eq.s32.totalorder %s14, 0
    %p103 = por %p101, %p102
    %p104 = scmp.ne.s32.totalorder %s90, %s91
    %p105 = scmp.eq.s32.totalorder %s15, 1
    %p106 = por %p104, %p105
    %p108 = scmp.ne.s32.totalorder %s91, %s107
    %p109 = scmp.eq.s32.totalorder %s15, 0
    %p110 = por %p108, %p109
    %p111 = scmp.le.s32.totalorder 1, %s9
    %p112 = scmp.lt.s32.totalorder %s9, 3
    %p113 = pnand %p111, %p112
    %p114 = pneg %p113
    // Predicated region
    $region9: #{tlstm_block_forward.4} parent=5 // pred_check
      _
    $region10: #{tlstm_block_forward.4} parent=5 // pred_check_branch
      %116 = sbr.rel (%p113) target = $region12
    $region11: #{tlstm_block_forward.4} parent=5 // pred_region
      %s117 = ssub.s32 %s9, 1
      // Predicated region
      $region13: #{tlstm_block_forward.4} parent=11 // pred_check
        %p118 = pneg %p56
      $region14: #{tlstm_block_forward.4} parent=11 // pred_check_branch
        %120 = sbr.rel (%p118) target = $region16
      $region15: #{tlstm_block_forward.4} parent=11 // pred_region
        _
      $region16: #{tlstm_block_forward.4} parent=11 // pred_fallthru
        _
      // Predicated region
      $region17: #{tlstm_block_forward.4} parent=11 // pred_check
        %p121 = pneg %p77
      $region18: #{tlstm_block_forward.4} parent=11 // pred_check_branch
        %123 = sbr.rel (%p121) target = $region20
      $region19: #{tlstm_block_forward.4} parent=11 // pred_region
        _
      $region20: #{tlstm_block_forward.4} parent=11 // pred_fallthru
        _
    $region12: #{tlstm_block_forward.4} parent=5 // pred_fallthru
      _
    %p124 = scmp.lt.s32.totalorder %s9, 2
    // Predicated region
    $region21: #{tlstm_block_forward.4} parent=5 // pred_check
      %p125 = pneg %p124
    $region22: #{tlstm_block_forward.4} parent=5 // pred_check_branch
      %127 = sbr.rel (%p125) target = $region24
    $region23: #{tlstm_block_forward.4} parent=5 // pred_region
      // Predicated region
      $region25: #{tlstm_block_forward.4} parent=23 // pred_check
        %p128 = pneg %p29
      $region26: #{tlstm_block_forward.4} parent=23 // pred_check_branch
        %130 = sbr.rel (%p128) target = $region28
      $region27: #{tlstm_block_forward.4} parent=23 // pred_region
        %s131 = smul.u32 16, %s9
        %p132 = scmp.lt.s32.totalorder %s131, 31
        %s133 = scalar_select %p132, %s131, 31
        %s134 = smul.addr %s133, 8
        %s135 = scalar_lea.vmem %s0, %s134
        %s136 = smul.u32 16, %s9
      $region28: #{tlstm_block_forward.4} parent=23 // pred_fallthru
        _
    $region24: #{tlstm_block_forward.4} parent=5 // pred_fallthru
      _
    %p137 = scmp.le.s32.totalorder 1, %s9
    %p138 = scmp.lt.s32.totalorder %s9, 3
    %p139 = pnand %p137, %p138
    %p140 = pneg %p139
    // Predicated region
    $region29: #{tlstm_block_forward.4} parent=5 // pred_check
      _
    $region30: #{tlstm_block_forward.4} parent=5 // pred_check_branch
      %142 = sbr.rel (%p139) target = $region32
    $region31: #{tlstm_block_forward.4} parent=5 // pred_region
      %s143 = ssub.s32 %s9, 1
      %s144 = smul.u32 16, %s14
      %p145 = scmp.lt.s32.totalorder %s144, 31
      %s146 = scalar_select %p145, %s144, 31
      %s147 = smul.addr %s146, 8
      %s148 = scalar_lea.vmem %s0, %s147
      %p149 = pneg %p35
      %p150 = pneg %p32
      %p151 = pneg %p56
      %p152 = pneg %p53
      %p153 = pneg %p77
      %p154 = pneg %p74
      %p155 = pneg %p103
      %p156 = pneg %p100
      %s157 = smul.u32 16, %s14
      %p158 = scmp.lt.s32.totalorder %s157, 31
      %s159 = scalar_select %p158, %s157, 31
      %s160 = smul.addr %s159, 8
      %s161 = scalar_lea.vmem %s3, %s160
      %s162 = smul.u32 16, %s14
      %p163 = scmp.lt.s32.totalorder %s162, 31
      %s164 = scalar_select %p163, %s162, 31
      %s165 = smul.addr %s164, 8
      %s166 = scalar_lea.vmem %s0, %s165
      %s167 = smul.u32 16, %s14
      %s168 = smul.u32 16, %s14
      %p169 = scmp.lt.s32.totalorder %s168, 31
      %s170 = scalar_select %p169, %s168, 31
      %s171 = smul.addr %s170, 8
      %s172 = scalar_lea.vmem %s3, %s171
      %s173 = smul.u32 16, %s14
      %v174 = vld [vmem:[%s166] sm:$0xff]
      %v175 = vld [vmem:[%s166 + $0x8] sm:$0xff]
      %v176 = vld [vmem:[%s166 + $0x10] sm:$0xff]
      %v177 = vld [vmem:[%s166 + $0x18] sm:$0xff]
      %v178 = vld [vmem:[%s166 + $0x20] sm:$0xff]
      %v179 = vld [vmem:[%s166 + $0x28] sm:$0xff]
      %v180 = vld [vmem:[%s166 + $0x30] sm:$0xff]
      %v181 = vld [vmem:[%s166 + $0x38] sm:$0xff]
      %v182 = vld [vmem:[%s166 + $0x40] sm:$0xff]
      %v183 = vld [vmem:[%s166 + $0x48] sm:$0xff]
      %v184 = vld [vmem:[%s166 + $0x50] sm:$0xff]
      %v185 = vld [vmem:[%s166 + $0x58] sm:$0xff]
      %v186 = vld [vmem:[%s166 + $0x60] sm:$0xff]
      %v187 = vld [vmem:[%s166 + $0x68] sm:$0xff]
      %v188 = vld [vmem:[%s166 + $0x70] sm:$0xff]
      %v189 = vld [vmem:[%s166 + $0x78] sm:$0xff]
      %v190 = vld [vmem:[%s1] sm:$0xf]
      %v191 = vld [vmem:[%s2] sm:$0x1]
      %v193 = vperm.slane %v191, 0
      %vm195 = vcmask 31744
      %v197 = vsel %vm195, %v174, 0
      %v200 = vsel %vm195, %v175, 0
      %v203 = vsel %vm195, %v176, 0
      %v206 = vsel %vm195, %v177, 0
      %v209 = vsel %vm195, %v178, 0
      %v212 = vsel %vm195, %v179, 0
      %v215 = vsel %vm195, %v180, 0
      %v218 = vsel %vm195, %v181, 0
      %v221 = vsel %vm195, %v182, 0
      %v224 = vsel %vm195, %v183, 0
      %v227 = vsel %vm195, %v184, 0
      %v230 = vsel %vm195, %v185, 0
      %v233 = vsel %vm195, %v186, 0
      %v236 = vsel %vm195, %v187, 0
      %v239 = vsel %vm195, %v188, 0
      %v242 = vsel %vm195, %v189, 0
      %vm244 = vcmask 1043456
      %v246 = vsel %vm244, %v190, 0
      %248 = vmatpush.msra.mxu0 0.0
      %249 = vmatpush.msra.mxu0 0.0
      %250 = vmatpush.msra.mxu0 0.0
      %251 = vmatpush.msra.mxu0 0.0
      %252 = vmatpush.msra.mxu0 0.0
      %253 = vmatpush.msra.mxu0 0.0
      %254 = vmatpush.msra.mxu0 0.0
      %255 = vmatpush.msra.mxu0 0.0
      %256 = vmatpush.msra.mxu0 0.0
      %257 = vmatpush.msra.mxu0 0.0
      %258 = vmatpush.msra.mxu0 0.0
      %259 = vmatpush.msra.mxu0 0.0
      %260 = vmatpush.msra.mxu0 0.0
      %261 = vmatpush.msra.mxu0 0.0
      %262 = vmatpush.msra.mxu0 0.0
      %263 = vmatpush.msra.mxu0 %v246
      %264 = vmatmul.f32.gmra.mxu0 %v197
      %v265 = vpop.f32.mrf.mxu0
      %v266 = vadd.f32 %v193, %v265
      %267 = vmatmul.f32.gmra.mxu0 %v200
      %v268 = vpop.f32.mrf.mxu0
      %v269 = vadd.f32 %v193, %v268
      %270 = vmatmul.f32.gmra.mxu0 %v203
      %v271 = vpop.f32.mrf.mxu0
      %v272 = vadd.f32 %v193, %v271
      %273 = vmatmul.f32.gmra.mxu0 %v206
      %v274 = vpop.f32.mrf.mxu0
      %v275 = vadd.f32 %v193, %v274
      %276 = vmatmul.f32.gmra.mxu0 %v209
      %v277 = vpop.f32.mrf.mxu0
      %v278 = vadd.f32 %v193, %v277
      %279 = vmatmul.f32.gmra.mxu0 %v212
      %v280 = vpop.f32.mrf.mxu0
      %v281 = vadd.f32 %v193, %v280
      %282 = vmatmul.f32.gmra.mxu0 %v215
      %v283 = vpop.f32.mrf.mxu0
      %v284 = vadd.f32 %v193, %v283
      %285 = vmatmul.f32.gmra.mxu0 %v218
      %v286 = vpop.f32.mrf.mxu0
      %v287 = vadd.f32 %v193, %v286
      %288 = vmatmul.f32.gmra.mxu0 %v221
      %v289 = vpop.f32.mrf.mxu0
      %v290 = vadd.f32 %v193, %v289
      %291 = vmatmul.f32.gmra.mxu0 %v224
      %v292 = vpop.f32.mrf.mxu0
      %v293 = vadd.f32 %v193, %v292
      %294 = vmatmul.f32.gmra.mxu0 %v227
      %v295 = vpop.f32.mrf.mxu0
      %v296 = vadd.f32 %v193, %v295
      %297 = vmatmul.f32.gmra.mxu0 %v230
      %v298 = vpop.f32.mrf.mxu0
      %v299 = vadd.f32 %v193, %v298
      %300 = vmatmul.f32.gmra.mxu0 %v233
      %v301 = vpop.f32.mrf.mxu0
      %v302 = vadd.f32 %v193, %v301
      %303 = vmatmul.f32.gmra.mxu0 %v236
      %v304 = vpop.f32.mrf.mxu0
      %v305 = vadd.f32 %v193, %v304
      %306 = vmatmul.f32.gmra.mxu0 %v239
      %v307 = vpop.f32.mrf.mxu0
      %v308 = vadd.f32 %v193, %v307
      %309 = vmatmul.f32.gmra.mxu0 %v242
      %v310 = vpop.f32.mrf.mxu0
      %v311 = vadd.f32 %v193, %v310
      %312 = vdwg.mxu0
      %313 = vst [vmem:[%s172] sm:$0xff] %v266
      %314 = vst [vmem:[%s172 + $0x8] sm:$0xff] %v269
      %315 = vst [vmem:[%s172 + $0x10] sm:$0xff] %v272
      %316 = vst [vmem:[%s172 + $0x18] sm:$0xff] %v275
      %317 = vst [vmem:[%s172 + $0x20] sm:$0xff] %v278
      %318 = vst [vmem:[%s172 + $0x28] sm:$0xff] %v281
      %319 = vst [vmem:[%s172 + $0x30] sm:$0xff] %v284
      %320 = vst [vmem:[%s172 + $0x38] sm:$0xff] %v287
      %321 = vst [vmem:[%s172 + $0x40] sm:$0xff] %v290
      %322 = vst [vmem:[%s172 + $0x48] sm:$0xff] %v293
      %323 = vst [vmem:[%s172 + $0x50] sm:$0xff] %v296
      %324 = vst [vmem:[%s172 + $0x58] sm:$0xff] %v299
      %325 = vst [vmem:[%s172 + $0x60] sm:$0xff] %v302
      %326 = vst [vmem:[%s172 + $0x68] sm:$0xff] %v305
      %327 = vst [vmem:[%s172 + $0x70] sm:$0xff] %v308
      %328 = vst [vmem:[%s172 + $0x78] sm:$0xff] %v311
      %s329 = smul.u32 16, %s14
      %p330 = scmp.lt.s32.totalorder %s329, 31
      %s331 = scalar_select %p330, %s329, 31
      %s332 = smul.addr %s331, 8
      %s333 = scalar_lea.vmem %s3, %s332
      // Predicated region
      $region33: #{tlstm_block_forward.4} parent=31 // pred_check
        %p334 = pneg %p100
      $region34: #{tlstm_block_forward.4} parent=31 // pred_check_branch
        %336 = sbr.rel (%p334) target = $region36
      $region35: #{tlstm_block_forward.4} parent=31 // pred_region
        %s337 = smul.u32 16, %s14
      $region36: #{tlstm_block_forward.4} parent=31 // pred_fallthru
        _
    $region32: #{tlstm_block_forward.4} parent=5 // pred_fallthru
      _
    %p338 = scmp.le.s32.totalorder 2, %s9
    // Predicated region
    $region37: #{tlstm_block_forward.4} parent=5 // pred_check
      %p339 = pneg %p338
    $region38: #{tlstm_block_forward.4} parent=5 // pred_check_branch
      %341 = sbr.rel (%p339) target = $region40
    $region39: #{tlstm_block_forward.4} parent=5 // pred_region
      %s342 = ssub.s32 %s9, 2
      // Predicated region
      $region41: #{tlstm_block_forward.4} parent=39 // pred_check
        %p343 = pneg %p106
      $region42: #{tlstm_block_forward.4} parent=39 // pred_check_branch
        %345 = sbr.rel (%p343) target = $region44
      $region43: #{tlstm_block_forward.4} parent=39 // pred_region
        %s346 = smul.u32 16, %s15
        %p347 = scmp.lt.s32.totalorder %s346, 31
        %s348 = scalar_select %p347, %s346, 31
        %s349 = smul.addr %s348, 8
        %s350 = scalar_lea.vmem %s3, %s349
      $region44: #{tlstm_block_forward.4} parent=39 // pred_fallthru
        _
    $region40: #{tlstm_block_forward.4} parent=5 // pred_fallthru
      _
  $region6: #{tlstm_block_forward.4} parent=0 // loop_footer
    %s13 = sadd.s32 1, %s9
  $region7: #{tlstm_block_forward.4} parent=0 // loop_footer_branch
    %8 = sbr.rel target = $region3
  $region8: #{tlstm_block_forward.4} parent=0 // loop_exit
    _

// kernel: tlstm_block_forward.6
$region0: #{tlstm_block_forward.6}
  #allocation0 [shape = 'u32[]', space=smem, size = 0x4, offset = 0x4, fixed_abs, tag = 'smem constant byte address 0x4 - core index']
  #allocation1 [shape = 'u32[72,128]{1,0:T(1,128)}', space=vmem, size = 0x9000, scoped, tag = 'internal scratch']
  %s0 = inlined_call_operand.vmem [shape: f32[256,32], index: 0, kind: input, shape index: {}]
  %s1 = inlined_call_operand.vmem [shape: f32[8,32], index: 1, kind: input, shape index: {}]
  %s2 = inlined_call_operand.vmem [shape: f32[8,1], index: 2, kind: input, shape index: {}]
  %s3 = inlined_call_operand.vmem [shape: f32[8,256], index: 3, kind: output, shape index: {0}]
  %s4 = inlined_call_operand.vmem [shape: f32[8,1], index: 4, kind: output, shape index: {1}]
  %s5 = inlined_call_operand.vmem [shape: f32[8,1], index: 5, kind: output, shape index: {2}]
  %6 = xla_tuple %s3, %s4, %s5
  %s7 = sld [smem:[#allocation0]]
  $region65: #{tlstm_block_forward.6} parent=0
    _
  %s9 = ssub.s32 1, %s7
  %s10 = scalar_select 0, %s9, %s7
  loop: start=0, step=1, limit=4
  $region2: #{tlstm_block_forward.6} parent=0 // loop_pre_header
    _
  $region3: #{tlstm_block_forward.6} parent=0 // loop_header
    %s12 = sphi 0, %s16
    %p13 = scmp.ge.s32.totalorder %s12, 4
    %s22 = sphi 0, %s24
    %s25 = sphi 0, %s22
    %s26 = sphi 0, %s25
    %s42 = sphi 0, %s26
    %s46 = sphi 0, %s46
    %s48 = sphi 0, %s46
    %s49 = sphi 0, %s48
    %s63 = sphi 0, %s49
    %s67 = sphi 0, %s67
    %s69 = sphi 0, %s67
    %s70 = sphi 0, %s69
    %s84 = sphi 0, %s70
    %s90 = sphi 0, %s92
    %s93 = sphi 0, %s90
    %s94 = sphi 0, %s93
    %s110 = sphi 0, %s94
    %s114 = sphi 0, %s114
    %s116 = sphi 0, %s114
    %s117 = sphi 0, %s116
    %s131 = sphi 0, %s117
    %s135 = sphi 0, %s135
    %s137 = sphi 0, %s135
    %s138 = sphi 0, %s137
    %s152 = sphi 0, %s138
  $region4: #{tlstm_block_forward.6} parent=0 // loop_header_branch
    %15 = sbr.rel (%p13) target = $region8
  $region5: #{tlstm_block_forward.6} parent=0 // loop_body
    %s17 = ssub.s32 %s12, 1
    %s18 = ssub.s32 %s12, 2
    %s19 = sadd.s32 %s12, 1
    %s20 = ssub.s32 %s12, %s19
    %p21 = scmp.eq.s32.totalorder %s20, 0
    %s23 = sadd.s32 %s22, 1
    %s24 = scalar_select %p21, %s22, %s23
    %p27 = pneg %p21
    %p28 = scmp.eq.s32.totalorder %s12, 1
    %p29 = por %p27, %p28
    %p30 = scmp.ne.s32.totalorder %s22, %s25
    %p31 = scmp.eq.s32.totalorder %s12, 0
    %p32 = por %p30, %p31
    %p33 = scmp.ne.s32.totalorder %s22, %s25
    %p34 = scmp.eq.s32.totalorder %s17, 1
    %p35 = por %p33, %p34
    %p36 = scmp.ne.s32.totalorder %s25, %s26
    %p37 = scmp.eq.s32.totalorder %s17, 0
    %p38 = por %p36, %p37
    %p39 = scmp.ne.s32.totalorder %s25, %s26
    %p40 = scmp.eq.s32.totalorder %s18, 1
    %p41 = por %p39, %p40
    %p43 = scmp.ne.s32.totalorder %s26, %s42
    %p44 = scmp.eq.s32.totalorder %s18, 0
    %p45 = por %p43, %p44
    %s47 = sadd.s32 %s46, 1
    %p50 = scmp.eq.s32.totalorder %s12, 1
    %p51 = scmp.ne.s32.totalorder %s46, %s48
    %p52 = scmp.eq.s32.totalorder %s12, 0
    %p53 = por %p51, %p52
    %p54 = scmp.ne.s32.totalorder %s46, %s48
    %p55 = scmp.eq.s32.totalorder %s17, 1
    %p56 = por %p54, %p55
    %p57 = scmp.ne.s32.totalorder %s48, %s49
    %p58 = scmp.eq.s32.totalorder %s17, 0
    %p59 = por %p57, %p58
    %p60 = scmp.ne.s32.totalorder %s48, %s49
    %p61 = scmp.eq.s32.totalorder %s18, 1
    %p62 = por %p60, %p61
    %p64 = scmp.ne.s32.totalorder %s49, %s63
    %p65 = scmp.eq.s32.totalorder %s18, 0
    %p66 = por %p64, %p65
    %s68 = sadd.s32 %s67, 1
    %p71 = scmp.eq.s32.totalorder %s12, 1
    %p72 = scmp.ne.s32.totalorder %s67, %s69
    %p73 = scmp.eq.s32.totalorder %s12, 0
    %p74 = por %p72, %p73
    %p75 = scmp.ne.s32.totalorder %s67, %s69
    %p76 = scmp.eq.s32.totalorder %s17, 1
    %p77 = por %p75, %p76
    %p78 = scmp.ne.s32.totalorder %s69, %s70
    %p79 = scmp.eq.s32.totalorder %s17, 0
    %p80 = por %p78, %p79
    %p81 = scmp.ne.s32.totalorder %s69, %s70
    %p82 = scmp.eq.s32.totalorder %s18, 1
    %p83 = por %p81, %p82
    %p85 = scmp.ne.s32.totalorder %s70, %s84
    %p86 = scmp.eq.s32.totalorder %s18, 0
    %p87 = por %p85, %p86
    %s88 = ssub.s32 %s12, %s19
    %p89 = scmp.eq.s32.totalorder %s88, 0
    %s91 = sadd.s32 %s90, 1
    %s92 = scalar_select %p89, %s90, %s91
    %p95 = pneg %p89
    %p96 = scmp.eq.s32.totalorder %s12, 1
    %p97 = por %p95, %p96
    %p98 = scmp.ne.s32.totalorder %s90, %s93
    %p99 = scmp.eq.s32.totalorder %s12, 0
    %p100 = por %p98, %p99
    %p101 = scmp.ne.s32.totalorder %s90, %s93
    %p102 = scmp.eq.s32.totalorder %s17, 1
    %p103 = por %p101, %p102
    %p104 = scmp.ne.s32.totalorder %s93, %s94
    %p105 = scmp.eq.s32.totalorder %s17, 0
    %p106 = por %p104, %p105
    %p107 = scmp.ne.s32.totalorder %s93, %s94
    %p108 = scmp.eq.s32.totalorder %s18, 1
    %p109 = por %p107, %p108
    %p111 = scmp.ne.s32.totalorder %s94, %s110
    %p112 = scmp.eq.s32.totalorder %s18, 0
    %p113 = por %p111, %p112
    %s115 = sadd.s32 %s114, 1
    %p118 = scmp.eq.s32.totalorder %s12, 1
    %p119 = scmp.ne.s32.totalorder %s114, %s116
    %p120 = scmp.eq.s32.totalorder %s12, 0
    %p121 = por %p119, %p120
    %p122 = scmp.ne.s32.totalorder %s114, %s116
    %p123 = scmp.eq.s32.totalorder %s17, 1
    %p124 = por %p122, %p123
    %p125 = scmp.ne.s32.totalorder %s116, %s117
    %p126 = scmp.eq.s32.totalorder %s17, 0
    %p127 = por %p125, %p126
    %p128 = scmp.ne.s32.totalorder %s116, %s117
    %p129 = scmp.eq.s32.totalorder %s18, 1
    %p130 = por %p128, %p129
    %p132 = scmp.ne.s32.totalorder %s117, %s131
    %p133 = scmp.eq.s32.totalorder %s18, 0
    %p134 = por %p132, %p133
    %s136 = sadd.s32 %s135, 1
    %p139 = scmp.eq.s32.totalorder %s12, 1
    %p140 = scmp.ne.s32.totalorder %s135, %s137
    %p141 = scmp.eq.s32.totalorder %s12, 0
    %p142 = por %p140, %p141
    %p143 = scmp.ne.s32.totalorder %s135, %s137
    %p144 = scmp.eq.s32.totalorder %s17, 1
    %p145 = por %p143, %p144
    %p146 = scmp.ne.s32.totalorder %s137, %s138
    %p147 = scmp.eq.s32.totalorder %s17, 0
    %p148 = por %p146, %p147
    %p149 = scmp.ne.s32.totalorder %s137, %s138
    %p150 = scmp.eq.s32.totalorder %s18, 1
    %p151 = por %p149, %p150
    %p153 = scmp.ne.s32.totalorder %s138, %s152
    %p154 = scmp.eq.s32.totalorder %s18, 0
    %p155 = por %p153, %p154
    %p156 = scmp.le.s32.totalorder 1, %s12
    %p157 = scmp.lt.s32.totalorder %s12, 3
    %p158 = pnand %p156, %p157
    %p159 = pneg %p158
    // Predicated region
    $region9: #{tlstm_block_forward.6} parent=5 // pred_check
      _
    $region10: #{tlstm_block_forward.6} parent=5 // pred_check_branch
      %161 = sbr.rel (%p158) target = $region12
    $region11: #{tlstm_block_forward.6} parent=5 // pred_region
      %s162 = ssub.s32 %s12, 1
      // Predicated region
      $region13: #{tlstm_block_forward.6} parent=11 // pred_check
        %p163 = pneg %p59
      $region14: #{tlstm_block_forward.6} parent=11 // pred_check_branch
        %165 = sbr.rel (%p163) target = $region16
      $region15: #{tlstm_block_forward.6} parent=11 // pred_region
        _
      $region16: #{tlstm_block_forward.6} parent=11 // pred_fallthru
        _
      // Predicated region
      $region17: #{tlstm_block_forward.6} parent=11 // pred_check
        %p166 = pneg %p80
      $region18: #{tlstm_block_forward.6} parent=11 // pred_check_branch
        %168 = sbr.rel (%p166) target = $region20
      $region19: #{tlstm_block_forward.6} parent=11 // pred_region
        _
      $region20: #{tlstm_block_forward.6} parent=11 // pred_fallthru
        _
    $region12: #{tlstm_block_forward.6} parent=5 // pred_fallthru
      _
    %p169 = scmp.lt.s32.totalorder %s12, 2
    // Predicated region
    $region21: #{tlstm_block_forward.6} parent=5 // pred_check
      %p170 = pneg %p169
    $region22: #{tlstm_block_forward.6} parent=5 // pred_check_branch
      %172 = sbr.rel (%p170) target = $region24
    $region23: #{tlstm_block_forward.6} parent=5 // pred_region
      // Predicated region
      $region25: #{tlstm_block_forward.6} parent=23 // pred_check
        %p173 = pneg %p32
      $region26: #{tlstm_block_forward.6} parent=23 // pred_check_branch
        %175 = sbr.rel (%p173) target = $region28
      $region27: #{tlstm_block_forward.6} parent=23 // pred_region
        %s176 = smul.u32 16, %s12
        %p177 = scmp.lt.s32.totalorder %s176, 31
        %s178 = scalar_select %p177, %s176, 31
        %s179 = smul.addr %s178, 8
        %s180 = scalar_lea.vmem %s0, %s179
        %s181 = smul.u32 16, %s12
      $region28: #{tlstm_block_forward.6} parent=23 // pred_fallthru
        _
    $region24: #{tlstm_block_forward.6} parent=5 // pred_fallthru
      _
    %p182 = scmp.le.s32.totalorder 1, %s12
    %p183 = scmp.lt.s32.totalorder %s12, 3
    %p184 = pnand %p182, %p183
    %p185 = pneg %p184
    // Predicated region
    $region29: #{tlstm_block_forward.6} parent=5 // pred_check
      _
    $region30: #{tlstm_block_forward.6} parent=5 // pred_check_branch
      %187 = sbr.rel (%p184) target = $region32
    $region31: #{tlstm_block_forward.6} parent=5 // pred_region
      %s188 = ssub.s32 %s12, 1
      %s189 = smul.u32 16, %s17
      %p190 = scmp.lt.s32.totalorder %s189, 31
      %s191 = scalar_select %p190, %s189, 31
      %s192 = smul.addr %s191, 8
      %s193 = scalar_lea.vmem %s0, %s192
      %p194 = pneg %p38
      %p195 = pneg %p35
      %p196 = pneg %p59
      %p197 = pneg %p56
      %p198 = pneg %p80
      %p199 = pneg %p77
      %p200 = pneg %p106
      %p201 = pneg %p103
      %p202 = scmp.lt.s32.totalorder %s17, 1
      %s203 = scalar_select %p202, %s17, 1
      %s204 = smul.addr %s203, 8
      %s205 = scalar_lea.vmem %s3, %s204
      %p206 = pneg %p127
      %p207 = pneg %p124
      %p208 = pneg %p148
      %p209 = pneg %p145
      %s210 = smul.u32 16, %s17
      %p211 = scmp.lt.s32.totalorder %s210, 31
      %s212 = scalar_select %p211, %s210, 31
      %s213 = smul.addr %s212, 8
      %s214 = scalar_lea.vmem %s0, %s213
      %s215 = smul.u32 16, %s17
      %p216 = scmp.lt.s32.totalorder %s17, 1
      %s217 = scalar_select %p216, %s17, 1
      %s218 = smul.addr %s217, 8
      %s219 = scalar_lea.vmem %s3, %s218
      %v220 = vld [vmem:[%s1] sm:$0xff]
      %v221 = vld [vmem:[%s214] sm:$0xff]
      %v222 = vld [vmem:[%s214 + $0x8] sm:$0xff]
      %v223 = vld [vmem:[%s214 + $0x10] sm:$0xff]
      %v224 = vld [vmem:[%s214 + $0x18] sm:$0xff]
      %v225 = vld [vmem:[%s214 + $0x20] sm:$0xff]
      %v226 = vld [vmem:[%s214 + $0x28] sm:$0xff]
      %v227 = vld [vmem:[%s214 + $0x30] sm:$0xff]
      %v228 = vld [vmem:[%s214 + $0x38] sm:$0xff]
      %v229 = vld [vmem:[%s214 + $0x40] sm:$0xff]
      %v230 = vld [vmem:[%s214 + $0x48] sm:$0xff]
      %v231 = vld [vmem:[%s214 + $0x50] sm:$0xff]
      %v232 = vld [vmem:[%s214 + $0x58] sm:$0xff]
      %v233 = vld [vmem:[%s214 + $0x60] sm:$0xff]
      %v234 = vld [vmem:[%s214 + $0x68] sm:$0xff]
      %v235 = vld [vmem:[%s214 + $0x70] sm:$0xff]
      %v236 = vld [vmem:[%s214 + $0x78] sm:$0xff]
      %v237 = vld [vmem:[%s2] sm:$0xff]
      %239 = vset.pattern.permute.xlu0 0
      %240 = vperm.xlu0 %239, %v237
      %v241 = vpop.permute.xlu0 %240
      %vm243 = vcmask 261120
      %v245 = vsel %vm243, %v220, 0
      %v248 = vsel %vm243, %v221, 0
      %v251 = vsel %vm243, %v222, 0
      %v254 = vsel %vm243, %v223, 0
      %v257 = vsel %vm243, %v224, 0
      %v260 = vsel %vm243, %v225, 0
      %v263 = vsel %vm243, %v226, 0
      %v266 = vsel %vm243, %v227, 0
      %v269 = vsel %vm243, %v228, 0
      %v272 = vsel %vm243, %v229, 0
      %v275 = vsel %vm243, %v230, 0
      %v278 = vsel %vm243, %v231, 0
      %v281 = vsel %vm243, %v232, 0
      %v284 = vsel %vm243, %v233, 0
      %v287 = vsel %vm243, %v234, 0
      %v290 = vsel %vm243, %v235, 0
      %v293 = vsel %vm243, %v236, 0
      %295 = vmatpush.xpose.msra.mxu0 %v293
      %296 = vmatpush.xpose.msra.mxu0 %v290
      %297 = vmatpush.xpose.msra.mxu0 %v287
      %298 = vmatpush.xpose.msra.mxu0 %v284
      %299 = vmatpush.xpose.msra.mxu0 %v281
      %300 = vmatpush.xpose.msra.mxu0 %v278
      %301 = vmatpush.xpose.msra.mxu0 %v275
      %302 = vmatpush.xpose.msra.mxu0 %v272
      %303 = vmatpush.xpose.msra.mxu0 %v269
      %304 = vmatpush.xpose.msra.mxu0 %v266
      %305 = vmatpush.xpose.msra.mxu0 %v263
      %306 = vmatpush.xpose.msra.mxu0 %v260
      %307 = vmatpush.xpose.msra.mxu0 %v257
      %308 = vmatpush.xpose.msra.mxu0 %v254
      %309 = vmatpush.xpose.msra.mxu0 %v251
      %310 = vmatpush.xpose.msra.mxu0 %v248
      %311 = vmatmul.f32.gmra.mxu0 %v245
      %v312 = vpop.f32.mrf.mxu0
      %v313 = vadd.f32 %v241, %v312
      %314 = vdwg.mxu0
      %315 = vst [vmem:[%s219] sm:$0xff] %v313
      %p316 = scmp.eq.s32.totalorder %s17, 0
      // Predicated region
      $region33: #{tlstm_block_forward.6} parent=31 // pred_check
        %p317 = pneg %p316
      $region34: #{tlstm_block_forward.6} parent=31 // pred_check_branch
        %319 = sbr.rel (%p317) target = $region36
      $region35: #{tlstm_block_forward.6} parent=31 // pred_region
        %vm320 = vcmask 7168
        %321 = vst.msk [vmem:[%s4] sm:$0xff] %vm320, 0.0
        %322 = vst.msk [vmem:[%s5] sm:$0xff] %vm320, 0.0
      $region36: #{tlstm_block_forward.6} parent=31 // pred_fallthru
        _
      %v323 = vld [vmem:[%s4] sm:$0xff]
      %324 = vadd.xlane.f32.xlu0 %v313
      %v325 = vpop.xlane.xlu0 %324
      %v326 = vadd.f32 %v323, %v325
      %vm327 = vcmask 7168
      %328 = vst.msk [vmem:[%s4] sm:$0xff] %vm327, %v326
      %v329 = vld [vmem:[%s5] sm:$0xff]
      %v330 = vmul.f32 %v313, %v313
      %331 = vadd.xlane.f32.xlu0 %v330
      %v332 = vpop.xlane.xlu0 %331
      %v333 = vadd.f32 %v329, %v332
      %334 = vst.msk [vmem:[%s5] sm:$0xff] %vm327, %v333
      %p335 = scmp.lt.s32.totalorder %s17, 1
      %s336 = scalar_select %p335, %s17, 1
      %s337 = smul.addr %s336, 8
      %s338 = scalar_lea.vmem %s3, %s337
      // Predicated region
      $region37: #{tlstm_block_forward.6} parent=31 // pred_check
        %p339 = pneg %p103
      $region38: #{tlstm_block_forward.6} parent=31 // pred_check_branch
        %341 = sbr.rel (%p339) target = $region40
      $region39: #{tlstm_block_forward.6} parent=31 // pred_region
        _
      $region40: #{tlstm_block_forward.6} parent=31 // pred_fallthru
        _
      // Predicated region
      $region41: #{tlstm_block_forward.6} parent=31 // pred_check
        %p342 = pneg %p124
      $region42: #{tlstm_block_forward.6} parent=31 // pred_check_branch
        %344 = sbr.rel (%p342) target = $region44
      $region43: #{tlstm_block_forward.6} parent=31 // pred_region
        _
      $region44: #{tlstm_block_forward.6} parent=31 // pred_fallthru
        _
      // Predicated region
      $region45: #{tlstm_block_forward.6} parent=31 // pred_check
        %p345 = pneg %p145
      $region46: #{tlstm_block_forward.6} parent=31 // pred_check_branch
        %347 = sbr.rel (%p345) target = $region48
      $region47: #{tlstm_block_forward.6} parent=31 // pred_region
        _
      $region48: #{tlstm_block_forward.6} parent=31 // pred_fallthru
        _
      // Predicated region
      $region49: #{tlstm_block_forward.6} parent=31 // pred_check
        %p348 = pneg %p124
      $region50: #{tlstm_block_forward.6} parent=31 // pred_check_branch
        %350 = sbr.rel (%p348) target = $region52
      $region51: #{tlstm_block_forward.6} parent=31 // pred_region
        _
      $region52: #{tlstm_block_forward.6} parent=31 // pred_fallthru
        _
      // Predicated region
      $region53: #{tlstm_block_forward.6} parent=31 // pred_check
        %p351 = pneg %p145
      $region54: #{tlstm_block_forward.6} parent=31 // pred_check_branch
        %353 = sbr.rel (%p351) target = $region56
      $region55: #{tlstm_block_forward.6} parent=31 // pred_region
        _
      $region56: #{tlstm_block_forward.6} parent=31 // pred_fallthru
        _
    $region32: #{tlstm_block_forward.6} parent=5 // pred_fallthru
      _
    %p354 = scmp.le.s32.totalorder 2, %s12
    // Predicated region
    $region57: #{tlstm_block_forward.6} parent=5 // pred_check
      %p355 = pneg %p354
    $region58: #{tlstm_block_forward.6} parent=5 // pred_check_branch
      %357 = sbr.rel (%p355) target = $region60
    $region59: #{tlstm_block_forward.6} parent=5 // pred_region
      %s358 = ssub.s32 %s12, 2
      // Predicated region
      $region61: #{tlstm_block_forward.6} parent=59 // pred_check
        %p359 = pneg %p109
      $region62: #{tlstm_block_forward.6} parent=59 // pred_check_branch
        %361 = sbr.rel (%p359) target = $region64
      $region63: #{tlstm_block_forward.6} parent=59 // pred_region
        %p362 = scmp.lt.s32.totalorder %s18, 1
        %s363 = scalar_select %p362, %s18, 1
        %s364 = smul.addr %s363, 8
        %s365 = scalar_lea.vmem %s3, %s364
      $region64: #{tlstm_block_forward.6} parent=59 // pred_fallthru
        _
    $region60: #{tlstm_block_forward.6} parent=5 // pred_fallthru
      _
  $region6: #{tlstm_block_forward.6} parent=0 // loop_footer
    %s16 = sadd.s32 1, %s12
  $region7: #{tlstm_block_forward.6} parent=0 // loop_footer_branch
    %11 = sbr.rel target = $region3
  $region8: #{tlstm_block_forward.6} parent=0 // loop_exit
    _

// kernel: tlstm_block_forward.7
$region0: #{tlstm_block_forward.7}
  #allocation0 [shape = 'u32[]', space=smem, size = 0x4, offset = 0x4, fixed_abs, tag = 'smem constant byte address 0x4 - core index']
  #allocation1 [shape = 'u32[72,128]{1,0:T(1,128)}', space=vmem, size = 0x9000, scoped, tag = 'internal scratch']
  %s0 = inlined_call_operand.vmem [shape: f32[8,256], index: 0, kind: input, shape index: {}]
  %s1 = inlined_call_operand.vmem [shape: f32[8,1], index: 1, kind: input, shape index: {}]
  %s2 = inlined_call_operand.vmem [shape: f32[8,1], index: 2, kind: input, shape index: {}]
  %s3 = inlined_call_operand.vmem [shape: f32[8,256], index: 3, kind: output, shape index: {}]
  %s4 = sld [smem:[#allocation0]]
  $region45: #{tlstm_block_forward.7} parent=0
    _
  %s6 = ssub.s32 1, %s4
  %s7 = scalar_select 0, %s6, %s4
  loop: start=0, step=1, limit=4
  $region2: #{tlstm_block_forward.7} parent=0 // loop_pre_header
    _
  $region3: #{tlstm_block_forward.7} parent=0 // loop_header
    %s9 = sphi 0, %s13
    %p10 = scmp.ge.s32.totalorder %s9, 4
    %s19 = sphi 0, %s21
    %s22 = sphi 0, %s19
    %s23 = sphi 0, %s22
    %s39 = sphi 0, %s23
    %s43 = sphi 0, %s43
    %s45 = sphi 0, %s43
    %s46 = sphi 0, %s45
    %s60 = sphi 0, %s46
    %s64 = sphi 0, %s64
    %s66 = sphi 0, %s64
    %s67 = sphi 0, %s66
    %s81 = sphi 0, %s67
    %s87 = sphi 0, %s89
    %s90 = sphi 0, %s87
    %s91 = sphi 0, %s90
    %s107 = sphi 0, %s91
  $region4: #{tlstm_block_forward.7} parent=0 // loop_header_branch
    %12 = sbr.rel (%p10) target = $region8
  $region5: #{tlstm_block_forward.7} parent=0 // loop_body
    %s14 = ssub.s32 %s9, 1
    %s15 = ssub.s32 %s9, 2
    %s16 = sadd.s32 %s9, 1
    %s17 = ssub.s32 %s9, %s16
    %p18 = scmp.eq.s32.totalorder %s17, 0
    %s20 = sadd.s32 %s19, 1
    %s21 = scalar_select %p18, %s19, %s20
    %p24 = pneg %p18
    %p25 = scmp.eq.s32.totalorder %s9, 1
    %p26 = por %p24, %p25
    %p27 = scmp.ne.s32.totalorder %s19, %s22
    %p28 = scmp.eq.s32.totalorder %s9, 0
    %p29 = por %p27, %p28
    %p30 = scmp.ne.s32.totalorder %s19, %s22
    %p31 = scmp.eq.s32.totalorder %s14, 1
    %p32 = por %p30, %p31
    %p33 = scmp.ne.s32.totalorder %s22, %s23
    %p34 = scmp.eq.s32.totalorder %s14, 0
    %p35 = por %p33, %p34
    %p36 = scmp.ne.s32.totalorder %s22, %s23
    %p37 = scmp.eq.s32.totalorder %s15, 1
    %p38 = por %p36, %p37
    %p40 = scmp.ne.s32.totalorder %s23, %s39
    %p41 = scmp.eq.s32.totalorder %s15, 0
    %p42 = por %p40, %p41
    %s44 = sadd.s32 %s43, 1
    %p47 = scmp.eq.s32.totalorder %s9, 1
    %p48 = scmp.ne.s32.totalorder %s43, %s45
    %p49 = scmp.eq.s32.totalorder %s9, 0
    %p50 = por %p48, %p49
    %p51 = scmp.ne.s32.totalorder %s43, %s45
    %p52 = scmp.eq.s32.totalorder %s14, 1
    %p53 = por %p51, %p52
    %p54 = scmp.ne.s32.totalorder %s45, %s46
    %p55 = scmp.eq.s32.totalorder %s14, 0
    %p56 = por %p54, %p55
    %p57 = scmp.ne.s32.totalorder %s45, %s46
    %p58 = scmp.eq.s32.totalorder %s15, 1
    %p59 = por %p57, %p58
    %p61 = scmp.ne.s32.totalorder %s46, %s60
    %p62 = scmp.eq.s32.totalorder %s15, 0
    %p63 = por %p61, %p62
    %s65 = sadd.s32 %s64, 1
    %p68 = scmp.eq.s32.totalorder %s9, 1
    %p69 = scmp.ne.s32.totalorder %s64, %s66
    %p70 = scmp.eq.s32.totalorder %s9, 0
    %p71 = por %p69, %p70
    %p72 = scmp.ne.s32.totalorder %s64, %s66
    %p73 = scmp.eq.s32.totalorder %s14, 1
    %p74 = por %p72, %p73
    %p75 = scmp.ne.s32.totalorder %s66, %s67
    %p76 = scmp.eq.s32.totalorder %s14, 0
    %p77 = por %p75, %p76
    %p78 = scmp.ne.s32.totalorder %s66, %s67
    %p79 = scmp.eq.s32.totalorder %s15, 1
    %p80 = por %p78, %p79
    %p82 = scmp.ne.s32.totalorder %s67, %s81
    %p83 = scmp.eq.s32.totalorder %s15, 0
    %p84 = por %p82, %p83
    %s85 = ssub.s32 %s9, %s16
    %p86 = scmp.eq.s32.totalorder %s85, 0
    %s88 = sadd.s32 %s87, 1
    %s89 = scalar_select %p86, %s87, %s88
    %p92 = pneg %p86
    %p93 = scmp.eq.s32.totalorder %s9, 1
    %p94 = por %p92, %p93
    %p95 = scmp.ne.s32.totalorder %s87, %s90
    %p96 = scmp.eq.s32.totalorder %s9, 0
    %p97 = por %p95, %p96
    %p98 = scmp.ne.s32.totalorder %s87, %s90
    %p99 = scmp.eq.s32.totalorder %s14, 1
    %p100 = por %p98, %p99
    %p101 = scmp.ne.s32.totalorder %s90, %s91
    %p102 = scmp.eq.s32.totalorder %s14, 0
    %p103 = por %p101, %p102
    %p104 = scmp.ne.s32.totalorder %s90, %s91
    %p105 = scmp.eq.s32.totalorder %s15, 1
    %p106 = por %p104, %p105
    %p108 = scmp.ne.s32.totalorder %s91, %s107
    %p109 = scmp.eq.s32.totalorder %s15, 0
    %p110 = por %p108, %p109
    %p111 = scmp.le.s32.totalorder 1, %s9
    %p112 = scmp.lt.s32.totalorder %s9, 3
    %p113 = pnand %p111, %p112
    %p114 = pneg %p113
    // Predicated region
    $region9: #{tlstm_block_forward.7} parent=5 // pred_check
      _
    $region10: #{tlstm_block_forward.7} parent=5 // pred_check_branch
      %116 = sbr.rel (%p113) target = $region12
    $region11: #{tlstm_block_forward.7} parent=5 // pred_region
      %s117 = ssub.s32 %s9, 1
      // Predicated region
      $region13: #{tlstm_block_forward.7} parent=11 // pred_check
        %p118 = pneg %p56
      $region14: #{tlstm_block_forward.7} parent=11 // pred_check_branch
        %120 = sbr.rel (%p118) target = $region16
      $region15: #{tlstm_block_forward.7} parent=11 // pred_region
        _
      $region16: #{tlstm_block_forward.7} parent=11 // pred_fallthru
        _
      // Predicated region
      $region17: #{tlstm_block_forward.7} parent=11 // pred_check
        %p121 = pneg %p77
      $region18: #{tlstm_block_forward.7} parent=11 // pred_check_branch
        %123 = sbr.rel (%p121) target = $region20
      $region19: #{tlstm_block_forward.7} parent=11 // pred_region
        _
      $region20: #{tlstm_block_forward.7} parent=11 // pred_fallthru
        _
    $region12: #{tlstm_block_forward.7} parent=5 // pred_fallthru
      _
    %p124 = scmp.lt.s32.totalorder %s9, 2
    // Predicated region
    $region21: #{tlstm_block_forward.7} parent=5 // pred_check
      %p125 = pneg %p124
    $region22: #{tlstm_block_forward.7} parent=5 // pred_check_branch
      %127 = sbr.rel (%p125) target = $region24
    $region23: #{tlstm_block_forward.7} parent=5 // pred_region
      // Predicated region
      $region25: #{tlstm_block_forward.7} parent=23 // pred_check
        %p128 = pneg %p29
      $region26: #{tlstm_block_forward.7} parent=23 // pred_check_branch
        %130 = sbr.rel (%p128) target = $region28
      $region27: #{tlstm_block_forward.7} parent=23 // pred_region
        %p131 = scmp.lt.s32.totalorder %s9, 1
        %s132 = scalar_select %p131, %s9, 1
        %s133 = smul.addr %s132, 8
        %s134 = scalar_lea.vmem %s0, %s133
      $region28: #{tlstm_block_forward.7} parent=23 // pred_fallthru
        _
    $region24: #{tlstm_block_forward.7} parent=5 // pred_fallthru
      _
    %p135 = scmp.le.s32.totalorder 1, %s9
    %p136 = scmp.lt.s32.totalorder %s9, 3
    %p137 = pnand %p135, %p136
    %p138 = pneg %p137
    // Predicated region
    $region29: #{tlstm_block_forward.7} parent=5 // pred_check
      _
    $region30: #{tlstm_block_forward.7} parent=5 // pred_check_branch
      %140 = sbr.rel (%p137) target = $region32
    $region31: #{tlstm_block_forward.7} parent=5 // pred_region
      %s141 = ssub.s32 %s9, 1
      %p142 = scmp.lt.s32.totalorder %s14, 1
      %s143 = scalar_select %p142, %s14, 1
      %s144 = smul.addr %s143, 8
      %s145 = scalar_lea.vmem %s0, %s144
      %p146 = pneg %p35
      %p147 = pneg %p32
      %p148 = pneg %p56
      %p149 = pneg %p53
      %p150 = pneg %p77
      %p151 = pneg %p74
      %p152 = pneg %p103
      %p153 = pneg %p100
      %p154 = scmp.lt.s32.totalorder %s14, 1
      %s155 = scalar_select %p154, %s14, 1
      %s156 = smul.addr %s155, 8
      %s157 = scalar_lea.vmem %s3, %s156
      %p158 = scmp.lt.s32.totalorder %s14, 1
      %s159 = scalar_select %p158, %s14, 1
      %s160 = smul.addr %s159, 8
      %s161 = scalar_lea.vmem %s0, %s160
      %p162 = scmp.lt.s32.totalorder %s14, 1
      %s163 = scalar_select %p162, %s14, 1
      %s164 = smul.addr %s163, 8
      %s165 = scalar_lea.vmem %s3, %s164
      %v166 = vld [vmem:[%s161] sm:$0xff]
      %v167 = vld [vmem:[%s1] sm:$0xff]
      %169 = vset.pattern.permute.xlu0 0
      %170 = vperm.xlu0 %169, %v167
      %v171 = vpop.permute.xlu0 %170
      %v173 = vmul.f32 %v166, %v171
      %v174 = vld [vmem:[%s2] sm:$0xff]
      %176 = vset.pattern.permute.xlu0 0
      %177 = vperm.xlu0 %176, %v174
      %v178 = vpop.permute.xlu0 %177
      %v180 = vadd.f32 %v173, %v178
      %v181 = vmax.f32 %v180, 0.0
      %182 = vst [vmem:[%s165] sm:$0xff] %v181
      %p183 = scmp.lt.s32.totalorder %s14, 1
      %s184 = scalar_select %p183, %s14, 1
      %s185 = smul.addr %s184, 8
      %s186 = scalar_lea.vmem %s3, %s185
      // Predicated region
      $region33: #{tlstm_block_forward.7} parent=31 // pred_check
        %p187 = pneg %p100
      $region34: #{tlstm_block_forward.7} parent=31 // pred_check_branch
        %189 = sbr.rel (%p187) target = $region36
      $region35: #{tlstm_block_forward.7} parent=31 // pred_region
        _
      $region36: #{tlstm_block_forward.7} parent=31 // pred_fallthru
        _
    $region32: #{tlstm_block_forward.7} parent=5 // pred_fallthru
      _
    %p190 = scmp.le.s32.totalorder 2, %s9
    // Predicated region
    $region37: #{tlstm_block_forward.7} parent=5 // pred_check
      %p191 = pneg %p190
    $region38: #{tlstm_block_forward.7} parent=5 // pred_check_branch
      %193 = sbr.rel (%p191) target = $region40
    $region39: #{tlstm_block_forward.7} parent=5 // pred_region
      %s194 = ssub.s32 %s9, 2
      // Predicated region
      $region41: #{tlstm_block_forward.7} parent=39 // pred_check
        %p195 = pneg %p106
      $region42: #{tlstm_block_forward.7} parent=39 // pred_check_branch
        %197 = sbr.rel (%p195) target = $region44
      $region43: #{tlstm_block_forward.7} parent=39 // pred_region
        %p198 = scmp.lt.s32.totalorder %s15, 1
        %s199 = scalar_select %p198, %s15, 1
        %s200 = smul.addr %s199, 8
        %s201 = scalar_lea.vmem %s3, %s200
      $region44: #{tlstm_block_forward.7} parent=39 // pred_fallthru
        _
    $region40: #{tlstm_block_forward.7} parent=5 // pred_fallthru
      _
  $region6: #{tlstm_block_forward.7} parent=0 // loop_footer
    %s13 = sadd.s32 1, %s9
  $region7: #{tlstm_block_forward.7} parent=0 // loop_footer_branch
    %8 = sbr.rel target = $region3
  $region8: #{tlstm_block_forward.7} parent=0 // loop_exit
    _

// kernel: tlstm_block_forward.5
$region0: #{tlstm_block_forward.5}
  #allocation0 [shape = 'u32[]', space=smem, size = 0x4, offset = 0x4, fixed_abs, tag = 'smem constant byte address 0x4 - core index']
  #allocation1 [shape = 'u32[72,128]{1,0:T(1,128)}', space=vmem, size = 0x9000, scoped, tag = 'internal scratch']
  %s0 = inlined_call_operand.vmem [shape: f32[8,32,128], index: 0, kind: input, shape index: {}]
  %s1 = inlined_call_operand.vmem [shape: bf16[32,128], index: 1, kind: input, shape index: {}]
  %s2 = inlined_call_operand.vmem [shape: f32[32,32], index: 2, kind: input, shape index: {}]
  %s3 = inlined_call_operand.vmem [shape: f32[32,32], index: 3, kind: input, shape index: {}]
  %s4 = inlined_call_operand.vmem [shape: f32[8,32,32], index: 4, kind: output, shape index: {0}]
  %s5 = inlined_call_operand.hbm [shape: f32[32,32], index: 5, kind: output, shape index: {1}]
  %s6 = inlined_call_operand.hbm [shape: f32[32,32], index: 6, kind: output, shape index: {2}]
  %7 = xla_tuple %s4, %s5, %s6
  %s8 = sld [smem:[#allocation0]]
  $region137: #{tlstm_block_forward.5} parent=0
    _
  %s10 = ssub.s32 1, %s8
  %s11 = scalar_select 0, %s10, %s8
  $region1: #{tlstm_block_forward.5} parent=0
    #allocation2 [shape = 'u8[131072]{0}', space=vmem, size = 0x20000, scoped, tag = 'input window, operand 0']
    #allocation3 [shape = 'u8[131072]{0}', space=vmem, size = 0x20000, scoped, tag = 'output window, operand 0']
    #allocation4 [shape = 'u8[16384]{0}', space=vmem, size = 0x4000, scoped, tag = 'output window, operand 1']
    #allocation5 [shape = 's32[2]{0}', space=sflag, size = 0x8, scoped, tag = 'scoped memory for tlstm_block_forward.5']
    #allocation6 [shape = 'u8[16384]{0}', space=vmem, size = 0x4000, scoped, tag = 'output window, operand 2']
    #allocation7 [shape = 's32[2]{0}', space=sflag, size = 0x8, scoped, tag = 'scoped memory for tlstm_block_forward.5']
    %12 = vsyncpa [#allocation5], 0
    %s13 = scalar_lea.sflag [#allocation5], 1
    %14 = vsyncpa %s13, 0
    %15 = vsyncpa [#allocation7], 0
    %s16 = scalar_lea.sflag [#allocation7], 1
    %17 = vsyncpa %s16, 0
    loop: start=0, step=1, limit=4
    $region2: #{tlstm_block_forward.5} parent=1 // loop_pre_header
      _
    $region3: #{tlstm_block_forward.5} parent=1 // loop_header
      %s19 = sphi 0, %s23
      %p20 = scmp.ge.s32.totalorder %s19, 4
      %s29 = sphi 0, %s31
      %s32 = sphi 0, %s29
      %s33 = sphi 0, %s32
      %s49 = sphi 0, %s33
      %s53 = sphi 0, %s53
      %s55 = sphi 0, %s53
      %s56 = sphi 0, %s55
      %s70 = sphi 0, %s56
      %s76 = sphi 0, %s78
      %s79 = sphi 0, %s76
      %s80 = sphi 0, %s79
      %s96 = sphi 0, %s80
      %s102 = sphi 0, %s104
      %s105 = sphi 0, %s102
      %s106 = sphi 0, %s105
      %s122 = sphi 0, %s106
      %s128 = sphi 0, %s130
      %s131 = sphi 0, %s128
      %s132 = sphi 0, %s131
      %s148 = sphi 0, %s132
      %s154 = sphi 0, %s156
      %s157 = sphi 0, %s154
      %s158 = sphi 0, %s157
      %s174 = sphi 0, %s158
      %s180 = sphi 0, %s182
      %s183 = sphi 0, %s180
      %s184 = sphi 0, %s183
      %s200 = sphi 0, %s184
    $region4: #{tlstm_block_forward.5} parent=1 // loop_header_branch
      %22 = sbr.rel (%p20) target = $region8
    $region5: #{tlstm_block_forward.5} parent=1 // loop_body
      %s24 = ssub.s32 %s19, 1
      %s25 = ssub.s32 %s19, 2
      %s26 = sadd.s32 %s19, 1
      %s27 = ssub.s32 %s19, %s26
      %p28 = scmp.eq.s32.totalorder %s27, 0
      %s30 = sadd.s32 %s29, 1
      %s31 = scalar_select %p28, %s29, %s30
      %p34 = pneg %p28
      %p35 = scmp.eq.s32.totalorder %s19, 1
      %p36 = por %p34, %p35
      %p37 = scmp.ne.s32.totalorder %s29, %s32
      %p38 = scmp.eq.s32.totalorder %s19, 0
      %p39 = por %p37, %p38
      %p40 = scmp.ne.s32.totalorder %s29, %s32
      %p41 = scmp.eq.s32.totalorder %s24, 1
      %p42 = por %p40, %p41
      %p43 = scmp.ne.s32.totalorder %s32, %s33
      %p44 = scmp.eq.s32.totalorder %s24, 0
      %p45 = por %p43, %p44
      %p46 = scmp.ne.s32.totalorder %s32, %s33
      %p47 = scmp.eq.s32.totalorder %s25, 1
      %p48 = por %p46, %p47
      %p50 = scmp.ne.s32.totalorder %s33, %s49
      %p51 = scmp.eq.s32.totalorder %s25, 0
      %p52 = por %p50, %p51
      %s54 = sadd.s32 %s53, 1
      %p57 = scmp.eq.s32.totalorder %s19, 1
      %p58 = scmp.ne.s32.totalorder %s53, %s55
      %p59 = scmp.eq.s32.totalorder %s19, 0
      %p60 = por %p58, %p59
      %p61 = scmp.ne.s32.totalorder %s53, %s55
      %p62 = scmp.eq.s32.totalorder %s24, 1
      %p63 = por %p61, %p62
      %p64 = scmp.ne.s32.totalorder %s55, %s56
      %p65 = scmp.eq.s32.totalorder %s24, 0
      %p66 = por %p64, %p65
      %p67 = scmp.ne.s32.totalorder %s55, %s56
      %p68 = scmp.eq.s32.totalorder %s25, 1
      %p69 = por %p67, %p68
      %p71 = scmp.ne.s32.totalorder %s56, %s70
      %p72 = scmp.eq.s32.totalorder %s25, 0
      %p73 = por %p71, %p72
      %s74 = ssub.s32 %s19, %s26
      %p75 = scmp.eq.s32.totalorder %s74, 0
      %s77 = sadd.s32 %s76, 1
      %s78 = scalar_select %p75, %s76, %s77
      %p81 = pneg %p75
      %p82 = scmp.eq.s32.totalorder %s19, 1
      %p83 = por %p81, %p82
      %p84 = scmp.ne.s32.totalorder %s76, %s79
      %p85 = scmp.eq.s32.totalorder %s19, 0
      %p86 = por %p84, %p85
      %p87 = scmp.ne.s32.totalorder %s76, %s79
      %p88 = scmp.eq.s32.totalorder %s24, 1
      %p89 = por %p87, %p88
      %p90 = scmp.ne.s32.totalorder %s79, %s80
      %p91 = scmp.eq.s32.totalorder %s24, 0
      %p92 = por %p90, %p91
      %p93 = scmp.ne.s32.totalorder %s79, %s80
      %p94 = scmp.eq.s32.totalorder %s25, 1
      %p95 = por %p93, %p94
      %p97 = scmp.ne.s32.totalorder %s80, %s96
      %p98 = scmp.eq.s32.totalorder %s25, 0
      %p99 = por %p97, %p98
      %s100 = ssub.s32 %s19, %s26
      %p101 = scmp.eq.s32.totalorder %s100, 0
      %s103 = sadd.s32 %s102, 1
      %s104 = scalar_select %p101, %s102, %s103
      %p107 = pneg %p101
      %p108 = scmp.eq.s32.totalorder %s19, 1
      %p109 = por %p107, %p108
      %p110 = scmp.ne.s32.totalorder %s102, %s105
      %p111 = scmp.eq.s32.totalorder %s19, 0
      %p112 = por %p110, %p111
      %p113 = scmp.ne.s32.totalorder %s102, %s105
      %p114 = scmp.eq.s32.totalorder %s24, 1
      %p115 = por %p113, %p114
      %p116 = scmp.ne.s32.totalorder %s105, %s106
      %p117 = scmp.eq.s32.totalorder %s24, 0
      %p118 = por %p116, %p117
      %p119 = scmp.ne.s32.totalorder %s105, %s106
      %p120 = scmp.eq.s32.totalorder %s25, 1
      %p121 = por %p119, %p120
      %p123 = scmp.ne.s32.totalorder %s106, %s122
      %p124 = scmp.eq.s32.totalorder %s25, 0
      %p125 = por %p123, %p124
      %s126 = ssub.s32 %s19, %s26
      %p127 = scmp.eq.s32.totalorder %s126, 0
      %s129 = sadd.s32 %s128, 1
      %s130 = scalar_select %p127, %s128, %s129
      %p133 = pneg %p127
      %p134 = scmp.eq.s32.totalorder %s19, 1
      %p135 = por %p133, %p134
      %p136 = scmp.ne.s32.totalorder %s128, %s131
      %p137 = scmp.eq.s32.totalorder %s19, 0
      %p138 = por %p136, %p137
      %p139 = scmp.ne.s32.totalorder %s128, %s131
      %p140 = scmp.eq.s32.totalorder %s24, 1
      %p141 = por %p139, %p140
      %p142 = scmp.ne.s32.totalorder %s131, %s132
      %p143 = scmp.eq.s32.totalorder %s24, 0
      %p144 = por %p142, %p143
      %p145 = scmp.ne.s32.totalorder %s131, %s132
      %p146 = scmp.eq.s32.totalorder %s25, 1
      %p147 = por %p145, %p146
      %p149 = scmp.ne.s32.totalorder %s132, %s148
      %p150 = scmp.eq.s32.totalorder %s25, 0
      %p151 = por %p149, %p150
      %s152 = ssub.s32 %s19, %s26
      %p153 = scmp.eq.s32.totalorder %s152, 0
      %s155 = sadd.s32 %s154, 1
      %s156 = scalar_select %p153, %s154, %s155
      %p159 = pneg %p153
      %p160 = scmp.eq.s32.totalorder %s19, 1
      %p161 = por %p159, %p160
      %p162 = scmp.ne.s32.totalorder %s154, %s157
      %p163 = scmp.eq.s32.totalorder %s19, 0
      %p164 = por %p162, %p163
      %p165 = scmp.ne.s32.totalorder %s154, %s157
      %p166 = scmp.eq.s32.totalorder %s24, 1
      %p167 = por %p165, %p166
      %p168 = scmp.ne.s32.totalorder %s157, %s158
      %p169 = scmp.eq.s32.totalorder %s24, 0
      %p170 = por %p168, %p169
      %p171 = scmp.ne.s32.totalorder %s157, %s158
      %p172 = scmp.eq.s32.totalorder %s25, 1
      %p173 = por %p171, %p172
      %p175 = scmp.ne.s32.totalorder %s158, %s174
      %p176 = scmp.eq.s32.totalorder %s25, 0
      %p177 = por %p175, %p176
      %s178 = ssub.s32 %s19, %s26
      %p179 = scmp.eq.s32.totalorder %s178, 0
      %s181 = sadd.s32 %s180, 1
      %s182 = scalar_select %p179, %s180, %s181
      %p185 = pneg %p179
      %p186 = scmp.eq.s32.totalorder %s19, 1
      %p187 = por %p185, %p186
      %p188 = scmp.ne.s32.totalorder %s180, %s183
      %p189 = scmp.eq.s32.totalorder %s19, 0
      %p190 = por %p188, %p189
      %p191 = scmp.ne.s32.totalorder %s180, %s183
      %p192 = scmp.eq.s32.totalorder %s24, 1
      %p193 = por %p191, %p192
      %p194 = scmp.ne.s32.totalorder %s183, %s184
      %p195 = scmp.eq.s32.totalorder %s24, 0
      %p196 = por %p194, %p195
      %p197 = scmp.ne.s32.totalorder %s183, %s184
      %p198 = scmp.eq.s32.totalorder %s25, 1
      %p199 = por %p197, %p198
      %p201 = scmp.ne.s32.totalorder %s184, %s200
      %p202 = scmp.eq.s32.totalorder %s25, 0
      %p203 = por %p201, %p202
      %p204 = scmp.le.s32.totalorder 1, %s19
      %p205 = scmp.lt.s32.totalorder %s19, 3
      %p206 = pnand %p204, %p205
      %p207 = pneg %p206
      // Predicated region
      $region9: #{tlstm_block_forward.5} parent=5 // pred_check
        _
      $region10: #{tlstm_block_forward.5} parent=5 // pred_check_branch
        %209 = sbr.rel (%p206) target = $region12
      $region11: #{tlstm_block_forward.5} parent=5 // pred_region
        %s210 = ssub.s32 %s19, 1
        // Predicated region
        $region13: #{tlstm_block_forward.5} parent=11 // pred_check
          %p211 = pneg %p66
        $region14: #{tlstm_block_forward.5} parent=11 // pred_check_branch
          %213 = sbr.rel (%p211) target = $region16
        $region15: #{tlstm_block_forward.5} parent=11 // pred_region
          _
        $region16: #{tlstm_block_forward.5} parent=11 // pred_fallthru
          _
      $region12: #{tlstm_block_forward.5} parent=5 // pred_fallthru
        _
      %p214 = scmp.lt.s32.totalorder %s19, 2
      // Predicated region
      $region17: #{tlstm_block_forward.5} parent=5 // pred_check
        %p215 = pneg %p214
      $region18: #{tlstm_block_forward.5} parent=5 // pred_check_branch
        %217 = sbr.rel (%p215) target = $region20
      $region19: #{tlstm_block_forward.5} parent=5 // pred_region
        // Predicated region
        $region21: #{tlstm_block_forward.5} parent=19 // pred_check
          %p218 = pneg %p39
        $region22: #{tlstm_block_forward.5} parent=19 // pred_check_branch
          %220 = sbr.rel (%p218) target = $region24
        $region23: #{tlstm_block_forward.5} parent=19 // pred_region
          %s221 = sand.u32 %s29, 1
          %s222 = sand.u32 %s29, 1
          %s223 = smul.addr %s222, 128
          %s224 = scalar_lea.vmem [#allocation2], %s223
          %s225 = smul.u32 2, %s19
          %s226 = smul.addr %s225, 8
          %s227 = scalar_lea.vmem %s0, %s226
          // Predicated region
          $region25: #{tlstm_block_forward.5} parent=23 // pred_check
            _
          $region26: #{tlstm_block_forward.5} parent=23 // pred_check_branch
            %229 = sbr.rel (0) target = $region28
          $region27: #{tlstm_block_forward.5} parent=23 // pred_region
            // Predicated region
            $region29: #{tlstm_block_forward.5} parent=27 // pred_check
              _
            $region30: #{tlstm_block_forward.5} parent=27 // pred_check_branch
              %231 = sbr.rel (0) target = $region32
            $region31: #{tlstm_block_forward.5} parent=27 // pred_region
              // Predicated region
              $region44: #{tlstm_block_forward.5} parent=31 // pred_check
                _
              $region45: #{tlstm_block_forward.5} parent=31 // pred_check_branch
                %277 = sbr.rel (0) target = $region47
              $region46: #{tlstm_block_forward.5} parent=31 // pred_region
                loop: start=0, step=1, limit=1
                $region48: #{tlstm_block_forward.5} parent=46 // loop_pre_header
                  _
                $region49: #{tlstm_block_forward.5} parent=46 // loop_header
                  %s279 = sphi 0, %s283
                  %p280 = scmp.ge.s32.totalorder %s279, 1
                  %s284 = sphi %s227, %s227
                  %s285 = sphi %s224, %s224
                $region50: #{tlstm_block_forward.5} parent=46 // loop_header_branch
                  %282 = sbr.rel (%p280) target = $region54
                $region51: #{tlstm_block_forward.5} parent=46 // loop_body
                  %v286 = vld [vmem:[%s284] sm:$0xff]
                  %287 = vst [vmem:[%s285] sm:$0xff] %v286
                  %v288 = vld [vmem:[%s284 + $0x8] sm:$0xff]
                  %289 = vst [vmem:[%s285 + $0x8] sm:$0xff] %v288
                  %v290 = vld [vmem:[%s284 + $0x20] sm:$0xff]
                  %291 = vst [vmem:[%s285 + $0x10] sm:$0xff] %v290
                  %v292 = vld [vmem:[%s284 + $0x28] sm:$0xff]
                  %293 = vst [vmem:[%s285 + $0x18] sm:$0xff] %v292
                  %v294 = vld [vmem:[%s284 + $0x40] sm:$0xff]
                  %295 = vst [vmem:[%s285 + $0x20] sm:$0xff] %v294
                  %v296 = vld [vmem:[%s284 + $0x48] sm:$0xff]
                  %297 = vst [vmem:[%s285 + $0x28] sm:$0xff] %v296
                  %v298 = vld [vmem:[%s284 + $0x60] sm:$0xff]
                  %299 = vst [vmem:[%s285 + $0x30] sm:$0xff] %v298
                  %v300 = vld [vmem:[%s284 + $0x68] sm:$0xff]
                  %301 = vst [vmem:[%s285 + $0x38] sm:$0xff] %v300
                  %v302 = vld [vmem:[%s284 + $0x80] sm:$0xff]
                  %303 = vst [vmem:[%s285 + $0x40] sm:$0xff] %v302
                  %v304 = vld [vmem:[%s284 + $0x88] sm:$0xff]
                  %305 = vst [vmem:[%s285 + $0x48] sm:$0xff] %v304
                  %v306 = vld [vmem:[%s284 + $0xa0] sm:$0xff]
                  %307 = vst [vmem:[%s285 + $0x50] sm:$0xff] %v306
                  %v308 = vld [vmem:[%s284 + $0xa8] sm:$0xff]
                  %309 = vst [vmem:[%s285 + $0x58] sm:$0xff] %v308
                  %v310 = vld [vmem:[%s284 + $0xc0] sm:$0xff]
                  %311 = vst [vmem:[%s285 + $0x60] sm:$0xff] %v310
                  %v312 = vld [vmem:[%s284 + $0xc8] sm:$0xff]
                  %313 = vst [vmem:[%s285 + $0x68] sm:$0xff] %v312
                  %v314 = vld [vmem:[%s284 + $0xe0] sm:$0xff]
                  %315 = vst [vmem:[%s285 + $0x70] sm:$0xff] %v314
                  %v316 = vld [vmem:[%s284 + $0xe8] sm:$0xff]
                  %317 = vst [vmem:[%s285 + $0x78] sm:$0xff] %v316
                $region52: #{tlstm_block_forward.5} parent=46 // loop_footer
                  %s283 = sadd.s32 1, %s279
                $region53: #{tlstm_block_forward.5} parent=46 // loop_footer_branch
                  %278 = sbr.rel target = $region49
                $region54: #{tlstm_block_forward.5} parent=46 // loop_exit
                  _
              $region47: #{tlstm_block_forward.5} parent=31 // pred_fallthru
                _
              // Predicated region
              $region55: #{tlstm_block_forward.5} parent=31 // pred_check
                _
              $region56: #{tlstm_block_forward.5} parent=31 // pred_check_branch
                %319 = sbr.rel target = $region58
              $region57: #{tlstm_block_forward.5} parent=31 // pred_region
                _
              $region58: #{tlstm_block_forward.5} parent=31 // pred_fallthru
                _
            $region32: #{tlstm_block_forward.5} parent=27 // pred_fallthru
              _
            // Predicated region
            $region33: #{tlstm_block_forward.5} parent=27 // pred_check
              _
            $region34: #{tlstm_block_forward.5} parent=27 // pred_check_branch
              %233 = sbr.rel target = $region36
            $region35: #{tlstm_block_forward.5} parent=27 // pred_region
              %s235 = ssub.s32 256, 1
              loop: start=0, step=1, limit=1
              $region37: #{tlstm_block_forward.5} parent=35 // loop_pre_header
                _
              $region38: #{tlstm_block_forward.5} parent=35 // loop_header
                %s237 = sphi 0, %s241
                %p238 = scmp.ge.s32.totalorder %s237, 1
                %s242 = sphi %s227, %s227
                %s243 = sphi %s224, %s224
              $region39: #{tlstm_block_forward.5} parent=35 // loop_header_branch
                %240 = sbr.rel (%p238) target = $region43
              $region40: #{tlstm_block_forward.5} parent=35 // loop_body
                %v244 = vld [vmem:[%s242] sm:%s235]
                %245 = vst [vmem:[%s243] sm:%s235] %v244
                %v246 = vld [vmem:[%s242 + $0x8] sm:%s235]
                %247 = vst [vmem:[%s243 + $0x8] sm:%s235] %v246
                %v248 = vld [vmem:[%s242 + $0x20] sm:%s235]
                %249 = vst [vmem:[%s243 + $0x10] sm:%s235] %v248
                %v250 = vld [vmem:[%s242 + $0x28] sm:%s235]
                %251 = vst [vmem:[%s243 + $0x18] sm:%s235] %v250
                %v252 = vld [vmem:[%s242 + $0x40] sm:%s235]
                %253 = vst [vmem:[%s243 + $0x20] sm:%s235] %v252
                %v254 = vld [vmem:[%s242 + $0x48] sm:%s235]
                %255 = vst [vmem:[%s243 + $0x28] sm:%s235] %v254
                %v256 = vld [vmem:[%s242 + $0x60] sm:%s235]
                %257 = vst [vmem:[%s243 + $0x30] sm:%s235] %v256
                %v258 = vld [vmem:[%s242 + $0x68] sm:%s235]
                %259 = vst [vmem:[%s243 + $0x38] sm:%s235] %v258
                %v260 = vld [vmem:[%s242 + $0x80] sm:%s235]
                %261 = vst [vmem:[%s243 + $0x40] sm:%s235] %v260
                %v262 = vld [vmem:[%s242 + $0x88] sm:%s235]
                %263 = vst [vmem:[%s243 + $0x48] sm:%s235] %v262
                %v264 = vld [vmem:[%s242 + $0xa0] sm:%s235]
                %265 = vst [vmem:[%s243 + $0x50] sm:%s235] %v264
                %v266 = vld [vmem:[%s242 + $0xa8] sm:%s235]
                %267 = vst [vmem:[%s243 + $0x58] sm:%s235] %v266
                %v268 = vld [vmem:[%s242 + $0xc0] sm:%s235]
                %269 = vst [vmem:[%s243 + $0x60] sm:%s235] %v268
                %v270 = vld [vmem:[%s242 + $0xc8] sm:%s235]
                %271 = vst [vmem:[%s243 + $0x68] sm:%s235] %v270
                %v272 = vld [vmem:[%s242 + $0xe0] sm:%s235]
                %273 = vst [vmem:[%s243 + $0x70] sm:%s235] %v272
                %v274 = vld [vmem:[%s242 + $0xe8] sm:%s235]
                %275 = vst [vmem:[%s243 + $0x78] sm:%s235] %v274
              $region41: #{tlstm_block_forward.5} parent=35 // loop_footer
                %s241 = sadd.s32 1, %s237
              $region42: #{tlstm_block_forward.5} parent=35 // loop_footer_branch
                %236 = sbr.rel target = $region38
              $region43: #{tlstm_block_forward.5} parent=35 // loop_exit
                _
            $region36: #{tlstm_block_forward.5} parent=27 // pred_fallthru
              _
          $region28: #{tlstm_block_forward.5} parent=23 // pred_fallthru
            _
          %320 = vnop
        $region24: #{tlstm_block_forward.5} parent=19 // pred_fallthru
          _
        // Predicated region
        $region59: #{tlstm_block_forward.5} parent=19 // pred_check
          %p321 = pneg %p86
        $region60: #{tlstm_block_forward.5} parent=19 // pred_check_branch
          %323 = sbr.rel (%p321) target = $region62
        $region61: #{tlstm_block_forward.5} parent=19 // pred_region
          %s324 = smul.u32 2, %s19
          %p325 = scmp.lt.s32.totalorder %s324, 3
          %s326 = scalar_select %p325, %s324, 3
          %s327 = smul.addr %s326, 8
          %s328 = scalar_lea.vmem %s2, %s327
          %s329 = smul.u32 2, %s19
        $region62: #{tlstm_block_forward.5} parent=19 // pred_fallthru
          _
        // Predicated region
        $region63: #{tlstm_block_forward.5} parent=19 // pred_check
          %p330 = pneg %p112
        $region64: #{tlstm_block_forward.5} parent=19 // pred_check_branch
          %332 = sbr.rel (%p330) target = $region66
        $region65: #{tlstm_block_forward.5} parent=19 // pred_region
          %s333 = smul.u32 2, %s19
          %p334 = scmp.lt.s32.totalorder %s333, 3
          %s335 = scalar_select %p334, %s333, 3
          %s336 = smul.addr %s335, 8
          %s337 = scalar_lea.vmem %s3, %s336
          %s338 = smul.u32 2, %s19
        $region66: #{tlstm_block_forward.5} parent=19 // pred_fallthru
          _
      $region20: #{tlstm_block_forward.5} parent=5 // pred_fallthru
        _
      %p339 = scmp.le.s32.totalorder 1, %s19
      %p340 = scmp.lt.s32.totalorder %s19, 3
      %p341 = pnand %p339, %p340
      %p342 = pneg %p341
      // Predicated region
      $region67: #{tlstm_block_forward.5} parent=5 // pred_check
        _
      $region68: #{tlstm_block_forward.5} parent=5 // pred_check_branch
        %344 = sbr.rel (%p341) target = $region70
      $region69: #{tlstm_block_forward.5} parent=5 // pred_region
        %s345 = ssub.s32 %s19, 1
        %s346 = sand.u32 %s32, 1
        %s347 = sand.u32 %s32, 1
        %s348 = smul.addr %s347, 128
        %s349 = scalar_lea.vmem [#allocation2], %s348
        // Predicated region
        $region71: #{tlstm_block_forward.5} parent=69 // pred_check
          %p350 = pneg %p45
        $region72: #{tlstm_block_forward.5} parent=69 // pred_check_branch
          %352 = sbr.rel (%p350) target = $region74
        $region73: #{tlstm_block_forward.5} parent=69 // pred_region
          _
        $region74: #{tlstm_block_forward.5} parent=69 // pred_fallthru
          _
        %s353 = sand.u32 %s32, 1
        %s354 = sand.u32 %s32, 1
        %s355 = smul.addr %s354, 128
        %s356 = scalar_lea.vmem [#allocation2], %s355
        %p357 = pneg %p45
        %p358 = pneg %p42
        %p359 = pneg %p66
        %p360 = pneg %p63
        %s361 = smul.u32 2, %s24
        %p362 = scmp.lt.s32.totalorder %s361, 3
        %s363 = scalar_select %p362, %s361, 3
        %s364 = smul.addr %s363, 8
        %s365 = scalar_lea.vmem %s2, %s364
        %p366 = pneg %p92
        %p367 = pneg %p89
        %s368 = smul.u32 2, %s24
        %p369 = scmp.lt.s32.totalorder %s368, 3
        %s370 = scalar_select %p369, %s368, 3
        %s371 = smul.addr %s370, 8
        %s372 = scalar_lea.vmem %s3, %s371
        %p373 = pneg %p118
        %p374 = pneg %p115
        %p375 = pneg %p144
        %p376 = pneg %p141
        %s377 = sand.u32 %s131, 1
        %s378 = sand.u32 %s131, 1
        %s379 = smul.addr %s378, 128
        %s380 = scalar_lea.vmem [#allocation3], %s379
        %p381 = pneg %p170
        %p382 = pneg %p167
        %s383 = sand.u32 %s157, 1
        %s384 = scalar_lea.sflag [#allocation5], %s383
        %s385 = sand.u32 %s157, 1
        %s386 = smul.addr %s385, 16
        %s387 = scalar_lea.vmem [#allocation4], %s386
        %p388 = pneg %p196
        %p389 = pneg %p193
        %s390 = sand.u32 %s183, 1
        %s391 = scalar_lea.sflag [#allocation7], %s390
        %s392 = sand.u32 %s183, 1
        %s393 = smul.addr %s392, 16
        %s394 = scalar_lea.vmem [#allocation6], %s393
        %s395 = smul.u32 2, %s24
        %s396 = smul.u32 2, %s24
        %p397 = scmp.lt.s32.totalorder %s396, 3
        %s398 = scalar_select %p397, %s396, 3
        %s399 = smul.addr %s398, 8
        %s400 = scalar_lea.vmem %s2, %s399
        %s401 = smul.u32 2, %s24
        %s402 = smul.u32 2, %s24
        %p403 = scmp.lt.s32.totalorder %s402, 3
        %s404 = scalar_select %p403, %s402, 3
        %s405 = smul.addr %s404, 8
        %s406 = scalar_lea.vmem %s3, %s405
        %s407 = smul.u32 2, %s24
        %s408 = smul.u32 2, %s24
        %s409 = smul.u32 2, %s24
        %s410 = smul.u32 2, %s24
        %v412 = vld [vmem:[%s400] sm:$0xff]
        %v413 = vld [vmem:[%s400 + $0x8] sm:$0xff]
        %v414 = vld [vmem:[%s406] sm:$0xff]
        %v415 = vld [vmem:[%s406 + $0x8] sm:$0xff]
        %v416 = vld [vmem:[%s349] sm:$0xff]
        %v417 = vld [vmem:[%s349 + $0x8] sm:$0xff]
        %v418 = vpack.c.bf16 %v413, %v412
        %v419 = vld [vmem:[%s1] sm:$0xf]
        %v420 = vld [vmem:[%s1 + $0x4] sm:$0xf]
        %v421 = vld [vmem:[%s1 + $0x8] sm:$0xf]
        %v422 = vld [vmem:[%s1 + $0xc] sm:$0xf]
        %v427 = vunpack.c.l.b16 %v419
        %v428 = vunpack.c.l.b16 %v420
        %v429 = vunpack.c.l.b16 %v421
        %v430 = vunpack.c.l.b16 %v422
        %v431 = vpack.c.b16 %v428, %v427
        %v432 = vpack.c.b16 %v430, %v429
        %vm435 = vcmask 261120
        %v437 = vsel %vm435, %v418, 0
        %439 = vmatpush.bf16.msra.mxu0 0
        %440 = vmatpush.bf16.msra.mxu0 0
        %441 = vmatpush.bf16.msra.mxu0 0
        %442 = vmatpush.bf16.msra.mxu0 0
        %443 = vmatpush.bf16.msra.mxu0 0
        %444 = vmatpush.bf16.msra.mxu0 0
        %445 = vmatpush.bf16.msra.mxu0 %v432
        %446 = vmatpush.bf16.msra.mxu0 %v431
        %447 = vmatmul.bf16.gmra.mxu0 %v437
        %v448 = vpop.f32.mrf.mxu0
        %v449 = vadd.f32 0.0, %v448
        %v450 = vpop.f32.mrf.mxu0
        %v451 = vadd.f32 0.0, %v450
        %452 = vdwg.mxu0
        %v453 = vadd.f32 %v416, %v449
        %v454 = vadd.f32 %v417, %v451
        %v455 = vxor.u32 %v453, 2147483648
        %v456 = vxor.u32 %v454, 2147483648
        %v457 = vmul.f32 %v455, 1.442695
        %v458 = vpow.pop %v457
        %v459 = vmul.f32 %v456, 1.442695
        %v460 = vpow.pop %v459
        %v461 = vadd.f32 %v458, 1.0
        %v462 = vadd.f32 %v460, 1.0
        %v463 = vrcp.pop %v461
        %v464 = vmul.f32 %v461, %v463
        %v465 = vsub.f32 1.0, %v464
        %v466 = vmul.f32 %v463, %v465
        %v467 = vadd.f32 %v463, %v466
        %vm468 = vweird.f32 %v461
        %vm469 = vweird.f32 %v463
        %vm470 = vmor %vm468, %vm469
        %v471 = vsel %vm470, %v463, %v467
        %v472 = vand.u32 2147483647, %v461
        %vm473 = vcmp.eq.f32.partialorder %v472, 8.507059e+37
        %v474 = vand.u32 %v461, 2147483648
        %v475 = vor.u32 1.1754944e-38, %v474
        %v476 = vsel %vm473, %v475, %v471
        %v477 = vmul.f32 1.0, %v476
        %v478 = vrcp.pop %v462
        %v479 = vmul.f32 %v462, %v478
        %v480 = vsub.f32 1.0, %v479
        %v481 = vmul.f32 %v478, %v480
        %v482 = vadd.f32 %v478, %v481
        %vm483 = vweird.f32 %v462
        %vm484 = vweird.f32 %v478
        %vm485 = vmor %vm483, %vm484
        %v486 = vsel %vm485, %v478, %v482
        %v487 = vand.u32 2147483647, %v462
        %vm488 = vcmp.eq.f32.partialorder %v487, 8.507059e+37
        %v489 = vand.u32 %v462, 2147483648
        %v490 = vor.u32 1.1754944e-38, %v489
        %v491 = vsel %vm488, %v490, %v486
        %v492 = vmul.f32 1.0, %v491
        %v493 = vtanh.pop %v453
        %v494 = vtanh.pop %v454
        %497 = vrot.lane.b32.xlu0 %v414, 32
        %v498 = vpop.permute.xlu0 %497
        %499 = vrot.lane.b32.xlu0 %v415, 32
        %v500 = vpop.permute.xlu0 %499
        %v503 = vmul.f32 %v477, %v498
        %v504 = vmul.f32 %v492, %v500
        %507 = vrot.lane.b32.xlu0 %v493, 64
        %v508 = vpop.permute.xlu0 %507
        %509 = vrot.lane.b32.xlu0 %v494, 64
        %v510 = vpop.permute.xlu0 %509
        %v513 = vmul.f32 %v477, %v508
        %v514 = vmul.f32 %v492, %v510
        %517 = vrot.lane.b32.xlu0 %v513, 32
        %v518 = vpop.permute.xlu0 %517
        %519 = vrot.lane.b32.xlu0 %v514, 32
        %v520 = vpop.permute.xlu0 %519
        %v523 = vadd.f32 %v503, %v518
        %v524 = vadd.f32 %v504, %v520
        %v525 = vtanh.pop %v523
        %v526 = vtanh.pop %v524
        %529 = vrot.lane.b32.xlu0 %v525, 64
        %v530 = vpop.permute.xlu0 %529
        %531 = vrot.lane.b32.xlu0 %v526, 64
        %v532 = vpop.permute.xlu0 %531
        %v535 = vmul.f32 %v477, %v530
        %v536 = vmul.f32 %v492, %v532
        %539 = vrot.lane.b32.xlu0 %v535, 32
        %v540 = vpop.permute.xlu0 %539
        %541 = vrot.lane.b32.xlu0 %v536, 32
        %v542 = vpop.permute.xlu0 %541
        %545 = vst.msk [vmem:[%s380] sm:$0xff] %vm435, %v540
        %546 = vst.msk [vmem:[%s380 + $0x8] sm:$0xff] %vm435, %v542
        %s547 = scalar_lea.vmem %s349, 16 [#allocation2]
        %v548 = vld [vmem:[%s547] sm:$0xff]
        %v549 = vld [vmem:[%s547 + $0x8] sm:$0xff]
        %v550 = vpack.c.bf16 %v536, %v535
        %v551 = vld [vmem:[%s1] sm:$0xf]
        %v552 = vld [vmem:[%s1 + $0x4] sm:$0xf]
        %v553 = vld [vmem:[%s1 + $0x8] sm:$0xf]
        %v554 = vld [vmem:[%s1 + $0xc] sm:$0xf]
        %556 = vrot.lane.b32.xlu0 %v550, 32
        %v557 = vpop.permute.xlu0 %556
        %v562 = vunpack.c.l.b16 %v551
        %v563 = vunpack.c.l.b16 %v552
        %v564 = vunpack.c.l.b16 %v553
        %v565 = vunpack.c.l.b16 %v554
        %v566 = vpack.c.b16 %v563, %v562
        %v567 = vpack.c.b16 %v565, %v564
        %v571 = vsel %vm435, %v557, 0
        %573 = vmatpush.bf16.msra.mxu0 0
        %574 = vmatpush.bf16.msra.mxu0 0
        %575 = vmatpush.bf16.msra.mxu0 0
        %576 = vmatpush.bf16.msra.mxu0 0
        %577 = vmatpush.bf16.msra.mxu0 0
        %578 = vmatpush.bf16.msra.mxu0 0
        %579 = vmatpush.bf16.msra.mxu0 %v567
        %580 = vmatpush.bf16.msra.mxu0 %v566
        %581 = vmatmul.bf16.gmra.mxu0 %v571
        %v582 = vpop.f32.mrf.mxu0
        %v583 = vadd.f32 0.0, %v582
        %v584 = vpop.f32.mrf.mxu0
        %v585 = vadd.f32 0.0, %v584
        %586 = vdwg.mxu0
        %v587 = vadd.f32 %v548, %v583
        %v588 = vadd.f32 %v549, %v585
        %v589 = vxor.u32 %v587, 2147483648
        %v590 = vxor.u32 %v588, 2147483648
        %v591 = vmul.f32 %v589, 1.442695
        %v592 = vpow.pop %v591
        %v593 = vmul.f32 %v590, 1.442695
        %v594 = vpow.pop %v593
        %v595 = vadd.f32 %v592, 1.0
        %v596 = vadd.f32 %v594, 1.0
        %v597 = vrcp.pop %v595
        %v598 = vmul.f32 %v595, %v597
        %v599 = vsub.f32 1.0, %v598
        %v600 = vmul.f32 %v597, %v599
        %v601 = vadd.f32 %v597, %v600
        %vm602 = vweird.f32 %v595
        %vm603 = vweird.f32 %v597
        %vm604 = vmor %vm602, %vm603
        %v605 = vsel %vm604, %v597, %v601
        %v606 = vand.u32 2147483647, %v595
        %vm607 = vcmp.eq.f32.partialorder %v606, 8.507059e+37
        %v608 = vand.u32 %v595, 2147483648
        %v609 = vor.u32 1.1754944e-38, %v608
        %v610 = vsel %vm607, %v609, %v605
        %v611 = vmul.f32 1.0, %v610
        %v612 = vrcp.pop %v596
        %v613 = vmul.f32 %v596, %v612
        %v614 = vsub.f32 1.0, %v613
        %v615 = vmul.f32 %v612, %v614
        %v616 = vadd.f32 %v612, %v615
        %vm617 = vweird.f32 %v596
        %vm618 = vweird.f32 %v612
        %vm619 = vmor %vm617, %vm618
        %v620 = vsel %vm619, %v612, %v616
        %v621 = vand.u32 2147483647, %v596
        %vm622 = vcmp.eq.f32.partialorder %v621, 8.507059e+37
        %v623 = vand.u32 %v596, 2147483648
        %v624 = vor.u32 1.1754944e-38, %v623
        %v625 = vsel %vm622, %v624, %v620
        %v626 = vmul.f32 1.0, %v625
        %v627 = vtanh.pop %v587
        %v628 = vtanh.pop %v588
        %v629 = vmul.f32 %v611, %v523
        %v630 = vmul.f32 %v626, %v524
        %633 = vrot.lane.b32.xlu0 %v627, 64
        %v634 = vpop.permute.xlu0 %633
        %635 = vrot.lane.b32.xlu0 %v628, 64
        %v636 = vpop.permute.xlu0 %635
        %v639 = vmul.f32 %v611, %v634
        %v640 = vmul.f32 %v626, %v636
        %643 = vrot.lane.b32.xlu0 %v639, 32
        %v644 = vpop.permute.xlu0 %643
        %645 = vrot.lane.b32.xlu0 %v640, 32
        %v646 = vpop.permute.xlu0 %645
        %v649 = vadd.f32 %v629, %v644
        %v650 = vadd.f32 %v630, %v646
        %v651 = vtanh.pop %v649
        %v652 = vtanh.pop %v650
        %655 = vrot.lane.b32.xlu0 %v651, 64
        %v656 = vpop.permute.xlu0 %655
        %657 = vrot.lane.b32.xlu0 %v652, 64
        %v658 = vpop.permute.xlu0 %657
        %v661 = vmul.f32 %v611, %v656
        %v662 = vmul.f32 %v626, %v658
        %665 = vrot.lane.b32.xlu0 %v661, 32
        %v666 = vpop.permute.xlu0 %665
        %667 = vrot.lane.b32.xlu0 %v662, 32
        %v668 = vpop.permute.xlu0 %667
        %s671 = scalar_lea.vmem %s380, 16 [#allocation3]
        %672 = vst.msk [vmem:[%s671] sm:$0xff] %vm435, %v666
        %673 = vst.msk [vmem:[%s671 + $0x8] sm:$0xff] %vm435, %v668
        %s674 = scalar_lea.vmem %s349, 32 [#allocation2]
        %v675 = vld [vmem:[%s674] sm:$0xff]
        %v676 = vld [vmem:[%s674 + $0x8] sm:$0xff]
        %v677 = vpack.c.bf16 %v662, %v661
        %v678 = vld [vmem:[%s1] sm:$0xf]
        %v679 = vld [vmem:[%s1 + $0x4] sm:$0xf]
        %v680 = vld [vmem:[%s1 + $0x8] sm:$0xf]
        %v681 = vld [vmem:[%s1 + $0xc] sm:$0xf]
        %683 = vrot.lane.b32.xlu0 %v677, 32
        %v684 = vpop.permute.xlu0 %683
        %v689 = vunpack.c.l.b16 %v678
        %v690 = vunpack.c.l.b16 %v679
        %v691 = vunpack.c.l.b16 %v680
        %v692 = vunpack.c.l.b16 %v681
        %v693 = vpack.c.b16 %v690, %v689
        %v694 = vpack.c.b16 %v692, %v691
        %v698 = vsel %vm435, %v684, 0
        %700 = vmatpush.bf16.msra.mxu0 0
        %701 = vmatpush.bf16.msra.mxu0 0
        %702 = vmatpush.bf16.msra.mxu0 0
        %703 = vmatpush.bf16.msra.mxu0 0
        %704 = vmatpush.bf16.msra.mxu0 0
        %705 = vmatpush.bf16.msra.mxu0 0
        %706 = vmatpush.bf16.msra.mxu0 %v694
        %707 = vmatpush.bf16.msra.mxu0 %v693
        %708 = vmatmul.bf16.gmra.mxu0 %v698
        %v709 = vpop.f32.mrf.mxu0
        %v710 = vadd.f32 0.0, %v709
        %v711 = vpop.f32.mrf.mxu0
        %v712 = vadd.f32 0.0, %v711
        %713 = vdwg.mxu0
        %v714 = vadd.f32 %v675, %v710
        %v715 = vadd.f32 %v676, %v712
        %v716 = vxor.u32 %v714, 2147483648
        %v717 = vxor.u32 %v715, 2147483648
        %v718 = vmul.f32 %v716, 1.442695
        %v719 = vpow.pop %v718
        %v720 = vmul.f32 %v717, 1.442695
        %v721 = vpow.pop %v720
        %v722 = vadd.f32 %v719, 1.0
        %v723 = vadd.f32 %v721, 1.0
        %v724 = vrcp.pop %v722
        %v725 = vmul.f32 %v722, %v724
        %v726 = vsub.f32 1.0, %v725
        %v727 = vmul.f32 %v724, %v726
        %v728 = vadd.f32 %v724, %v727
        %vm729 = vweird.f32 %v722
        %vm730 = vweird.f32 %v724
        %vm731 = vmor %vm729, %vm730
        %v732 = vsel %vm731, %v724, %v728
        %v733 = vand.u32 2147483647, %v722
        %vm734 = vcmp.eq.f32.partialorder %v733, 8.507059e+37
        %v735 = vand.u32 %v722, 2147483648
        %v736 = vor.u32 1.1754944e-38, %v735
        %v737 = vsel %vm734, %v736, %v732
        %v738 = vmul.f32 1.0, %v737
        %v739 = vrcp.pop %v723
        %v740 = vmul.f32 %v723, %v739
        %v741 = vsub.f32 1.0, %v740
        %v742 = vmul.f32 %v739, %v741
        %v743 = vadd.f32 %v739, %v742
        %vm744 = vweird.f32 %v723
        %vm745 = vweird.f32 %v739
        %vm746 = vmor %vm744, %vm745
        %v747 = vsel %vm746, %v739, %v743
        %v748 = vand.u32 2147483647, %v723
        %vm749 = vcmp.eq.f32.partialorder %v748, 8.507059e+37
        %v750 = vand.u32 %v723, 2147483648
        %v751 = vor.u32 1.1754944e-38, %v750
        %v752 = vsel %vm749, %v751, %v747
        %v753 = vmul.f32 1.0, %v752
        %v754 = vtanh.pop %v714
        %v755 = vtanh.pop %v715
        %v756 = vmul.f32 %v738, %v649
        %v757 = vmul.f32 %v753, %v650
        %760 = vrot.lane.b32.xlu0 %v754, 64
        %v761 = vpop.permute.xlu0 %760
        %762 = vrot.lane.b32.xlu0 %v755, 64
        %v763 = vpop.permute.xlu0 %762
        %v766 = vmul.f32 %v738, %v761
        %v767 = vmul.f32 %v753, %v763
        %770 = vrot.lane.b32.xlu0 %v766, 32
        %v771 = vpop.permute.xlu0 %770
        %772 = vrot.lane.b32.xlu0 %v767, 32
        %v773 = vpop.permute.xlu0 %772
        %v776 = vadd.f32 %v756, %v771
        %v777 = vadd.f32 %v757, %v773
        %v778 = vtanh.pop %v776
        %v779 = vtanh.pop %v777
        %782 = vrot.lane.b32.xlu0 %v778, 64
        %v783 = vpop.permute.xlu0 %782
        %784 = vrot.lane.b32.xlu0 %v779, 64
        %v785 = vpop.permute.xlu0 %784
        %v788 = vmul.f32 %v738, %v783
        %v789 = vmul.f32 %v753, %v785
        %792 = vrot.lane.b32.xlu0 %v788, 32
        %v793 = vpop.permute.xlu0 %792
        %794 = vrot.lane.b32.xlu0 %v789, 32
        %v795 = vpop.permute.xlu0 %794
        %s798 = scalar_lea.vmem %s380, 32 [#allocation3]
        %799 = vst.msk [vmem:[%s798] sm:$0xff] %vm435, %v793
        %800 = vst.msk [vmem:[%s798 + $0x8] sm:$0xff] %vm435, %v795
        %s801 = scalar_lea.vmem %s349, 48 [#allocation2]
        %v802 = vld [vmem:[%s801] sm:$0xff]
        %v803 = vld [vmem:[%s801 + $0x8] sm:$0xff]
        %v804 = vpack.c.bf16 %v789, %v788
        %v805 = vld [vmem:[%s1] sm:$0xf]
        %v806 = vld [vmem:[%s1 + $0x4] sm:$0xf]
        %v807 = vld [vmem:[%s1 + $0x8] sm:$0xf]
        %v808 = vld [vmem:[%s1 + $0xc] sm:$0xf]
        %810 = vrot.lane.b32.xlu0 %v804, 32
        %v811 = vpop.permute.xlu0 %810
        %v816 = vunpack.c.l.b16 %v805
        %v817 = vunpack.c.l.b16 %v806
        %v818 = vunpack.c.l.b16 %v807
        %v819 = vunpack.c.l.b16 %v808
        %v820 = vpack.c.b16 %v817, %v816
        %v821 = vpack.c.b16 %v819, %v818
        %v825 = vsel %vm435, %v811, 0
        %827 = vmatpush.bf16.msra.mxu0 0
        %828 = vmatpush.bf16.msra.mxu0 0
        %829 = vmatpush.bf16.msra.mxu0 0
        %830 = vmatpush.bf16.msra.mxu0 0
        %831 = vmatpush.bf16.msra.mxu0 0
        %832 = vmatpush.bf16.msra.mxu0 0
        %833 = vmatpush.bf16.msra.mxu0 %v821
        %834 = vmatpush.bf16.msra.mxu0 %v820
        %835 = vmatmul.bf16.gmra.mxu0 %v825
        %v836 = vpop.f32.mrf.mxu0
        %v837 = vadd.f32 0.0, %v836
        %v838 = vpop.f32.mrf.mxu0
        %v839 = vadd.f32 0.0, %v838
        %840 = vdwg.mxu0
        %v841 = vadd.f32 %v802, %v837
        %v842 = vadd.f32 %v803, %v839
        %v843 = vxor.u32 %v841, 2147483648
        %v844 = vxor.u32 %v842, 2147483648
        %v845 = vmul.f32 %v843, 1.442695
        %v846 = vpow.pop %v845
        %v847 = vmul.f32 %v844, 1.442695
        %v848 = vpow.pop %v847
        %v849 = vadd.f32 %v846, 1.0
        %v850 = vadd.f32 %v848, 1.0
        %v851 = vrcp.pop %v849
        %v852 = vmul.f32 %v849, %v851
        %v853 = vsub.f32 1.0, %v852
        %v854 = vmul.f32 %v851, %v853
        %v855 = vadd.f32 %v851, %v854
        %vm856 = vweird.f32 %v849
        %vm857 = vweird.f32 %v851
        %vm858 = vmor %vm856, %vm857
        %v859 = vsel %vm858, %v851, %v855
        %v860 = vand.u32 2147483647, %v849
        %vm861 = vcmp.eq.f32.partialorder %v860, 8.507059e+37
        %v862 = vand.u32 %v849, 2147483648
        %v863 = vor.u32 1.1754944e-38, %v862
        %v864 = vsel %vm861, %v863, %v859
        %v865 = vmul.f32 1.0, %v864
        %v866 = vrcp.pop %v850
        %v867 = vmul.f32 %v850, %v866
        %v868 = vsub.f32 1.0, %v867
        %v869 = vmul.f32 %v866, %v868
        %v870 = vadd.f32 %v866, %v869
        %vm871 = vweird.f32 %v850
        %vm872 = vweird.f32 %v866
        %vm873 = vmor %vm871, %vm872
        %v874 = vsel %vm873, %v866, %v870
        %v875 = vand.u32 2147483647, %v850
        %vm876 = vcmp.eq.f32.partialorder %v875, 8.507059e+37
        %v877 = vand.u32 %v850, 2147483648
        %v878 = vor.u32 1.1754944e-38, %v877
        %v879 = vsel %vm876, %v878, %v874
        %v880 = vmul.f32 1.0, %v879
        %v881 = vtanh.pop %v841
        %v882 = vtanh.pop %v842
        %v883 = vmul.f32 %v865, %v776
        %v884 = vmul.f32 %v880, %v777
        %887 = vrot.lane.b32.xlu0 %v881, 64
        %v888 = vpop.permute.xlu0 %887
        %889 = vrot.lane.b32.xlu0 %v882, 64
        %v890 = vpop.permute.xlu0 %889
        %v893 = vmul.f32 %v865, %v888
        %v894 = vmul.f32 %v880, %v890
        %897 = vrot.lane.b32.xlu0 %v893, 32
        %v898 = vpop.permute.xlu0 %897
        %899 = vrot.lane.b32.xlu0 %v894, 32
        %v900 = vpop.permute.xlu0 %899
        %v903 = vadd.f32 %v883, %v898
        %v904 = vadd.f32 %v884, %v900
        %v905 = vtanh.pop %v903
        %v906 = vtanh.pop %v904
        %909 = vrot.lane.b32.xlu0 %v905, 64
        %v910 = vpop.permute.xlu0 %909
        %911 = vrot.lane.b32.xlu0 %v906, 64
        %v912 = vpop.permute.xlu0 %911
        %v915 = vmul.f32 %v865, %v910
        %v916 = vmul.f32 %v880, %v912
        %919 = vrot.lane.b32.xlu0 %v915, 32
        %v920 = vpop.permute.xlu0 %919
        %921 = vrot.lane.b32.xlu0 %v916, 32
        %v922 = vpop.permute.xlu0 %921
        %s925 = scalar_lea.vmem %s380, 48 [#allocation3]
        %926 = vst.msk [vmem:[%s925] sm:$0xff] %vm435, %v920
        %927 = vst.msk [vmem:[%s925 + $0x8] sm:$0xff] %vm435, %v922
        %s928 = scalar_lea.vmem %s349, 64 [#allocation2]
        %v929 = vld [vmem:[%s928] sm:$0xff]
        %v930 = vld [vmem:[%s928 + $0x8] sm:$0xff]
        %v931 = vpack.c.bf16 %v916, %v915
        %v932 = vld [vmem:[%s1] sm:$0xf]
        %v933 = vld [vmem:[%s1 + $0x4] sm:$0xf]
        %v934 = vld [vmem:[%s1 + $0x8] sm:$0xf]
        %v935 = vld [vmem:[%s1 + $0xc] sm:$0xf]
        %937 = vrot.lane.b32.xlu0 %v931, 32
        %v938 = vpop.permute.xlu0 %937
        %v943 = vunpack.c.l.b16 %v932
        %v944 = vunpack.c.l.b16 %v933
        %v945 = vunpack.c.l.b16 %v934
        %v946 = vunpack.c.l.b16 %v935
        %v947 = vpack.c.b16 %v944, %v943
        %v948 = vpack.c.b16 %v946, %v945
        %v952 = vsel %vm435, %v938, 0
        %954 = vmatpush.bf16.msra.mxu0 0
        %955 = vmatpush.bf16.msra.mxu0 0
        %956 = vmatpush.bf16.msra.mxu0 0
        %957 = vmatpush.bf16.msra.mxu0 0
        %958 = vmatpush.bf16.msra.mxu0 0
        %959 = vmatpush.bf16.msra.mxu0 0
        %960 = vmatpush.bf16.msra.mxu0 %v948
        %961 = vmatpush.bf16.msra.mxu0 %v947
        %962 = vmatmul.bf16.gmra.mxu0 %v952
        %v963 = vpop.f32.mrf.mxu0
        %v964 = vadd.f32 0.0, %v963
        %v965 = vpop.f32.mrf.mxu0
        %v966 = vadd.f32 0.0, %v965
        %967 = vdwg.mxu0
        %v968 = vadd.f32 %v929, %v964
        %v969 = vadd.f32 %v930, %v966
        %v970 = vxor.u32 %v968, 2147483648
        %v971 = vxor.u32 %v969, 2147483648
        %v972 = vmul.f32 %v970, 1.442695
        %v973 = vpow.pop %v972
        %v974 = vmul.f32 %v971, 1.442695
        %v975 = vpow.pop %v974
        %v976 = vadd.f32 %v973, 1.0
        %v977 = vadd.f32 %v975, 1.0
        %v978 = vrcp.pop %v976
        %v979 = vmul.f32 %v976, %v978
        %v980 = vsub.f32 1.0, %v979
        %v981 = vmul.f32 %v978, %v980
        %v982 = vadd.f32 %v978, %v981
        %vm983 = vweird.f32 %v976
        %vm984 = vweird.f32 %v978
        %vm985 = vmor %vm983, %vm984
        %v986 = vsel %vm985, %v978, %v982
        %v987 = vand.u32 2147483647, %v976
        %vm988 = vcmp.eq.f32.partialorder %v987, 8.507059e+37
        %v989 = vand.u32 %v976, 2147483648
        %v990 = vor.u32 1.1754944e-38, %v989
        %v991 = vsel %vm988, %v990, %v986
        %v992 = vmul.f32 1.0, %v991
        %v993 = vrcp.pop %v977
        %v994 = vmul.f32 %v977, %v993
        %v995 = vsub.f32 1.0, %v994
        %v996 = vmul.f32 %v993, %v995
        %v997 = vadd.f32 %v993, %v996
        %vm998 = vweird.f32 %v977
        %vm999 = vweird.f32 %v993
        %vm1000 = vmor %vm998, %vm999
        %v1001 = vsel %vm1000, %v993, %v997
        %v1002 = vand.u32 2147483647, %v977
        %vm1003 = vcmp.eq.f32.partialorder %v1002, 8.507059e+37
        %v1004 = vand.u32 %v977, 2147483648
        %v1005 = vor.u32 1.1754944e-38, %v1004
        %v1006 = vsel %vm1003, %v1005, %v1001
        %v1007 = vmul.f32 1.0, %v1006
        %v1008 = vtanh.pop %v968
        %v1009 = vtanh.pop %v969
        %v1010 = vmul.f32 %v992, %v903
        %v1011 = vmul.f32 %v1007, %v904
        %1014 = vrot.lane.b32.xlu0 %v1008, 64
        %v1015 = vpop.permute.xlu0 %1014
        %1016 = vrot.lane.b32.xlu0 %v1009, 64
        %v1017 = vpop.permute.xlu0 %1016
        %v1020 = vmul.f32 %v992, %v1015
        %v1021 = vmul.f32 %v1007, %v1017
        %1024 = vrot.lane.b32.xlu0 %v1020, 32
        %v1025 = vpop.permute.xlu0 %1024
        %1026 = vrot.lane.b32.xlu0 %v1021, 32
        %v1027 = vpop.permute.xlu0 %1026
        %v1030 = vadd.f32 %v1010, %v1025
        %v1031 = vadd.f32 %v1011, %v1027
        %v1032 = vtanh.pop %v1030
        %v1033 = vtanh.pop %v1031
        %1036 = vrot.lane.b32.xlu0 %v1032, 64
        %v1037 = vpop.permute.xlu0 %1036
        %1038 = vrot.lane.b32.xlu0 %v1033, 64
        %v1039 = vpop.permute.xlu0 %1038
        %v1042 = vmul.f32 %v992, %v1037
        %v1043 = vmul.f32 %v1007, %v1039
        %1046 = vrot.lane.b32.xlu0 %v1042, 32
        %v1047 = vpop.permute.xlu0 %1046
        %1048 = vrot.lane.b32.xlu0 %v1043, 32
        %v1049 = vpop.permute.xlu0 %1048
        %s1052 = scalar_lea.vmem %s380, 64 [#allocation3]
        %1053 = vst.msk [vmem:[%s1052] sm:$0xff] %vm435, %v1047
        %1054 = vst.msk [vmem:[%s1052 + $0x8] sm:$0xff] %vm435, %v1049
        %s1055 = scalar_lea.vmem %s349, 80 [#allocation2]
        %v1056 = vld [vmem:[%s1055] sm:$0xff]
        %v1057 = vld [vmem:[%s1055 + $0x8] sm:$0xff]
        %v1058 = vpack.c.bf16 %v1043, %v1042
        %v1059 = vld [vmem:[%s1] sm:$0xf]
        %v1060 = vld [vmem:[%s1 + $0x4] sm:$0xf]
        %v1061 = vld [vmem:[%s1 + $0x8] sm:$0xf]
        %v1062 = vld [vmem:[%s1 + $0xc] sm:$0xf]
        %1064 = vrot.lane.b32.xlu0 %v1058, 32
        %v1065 = vpop.permute.xlu0 %1064
        %v1070 = vunpack.c.l.b16 %v1059
        %v1071 = vunpack.c.l.b16 %v1060
        %v1072 = vunpack.c.l.b16 %v1061
        %v1073 = vunpack.c.l.b16 %v1062
        %v1074 = vpack.c.b16 %v1071, %v1070
        %v1075 = vpack.c.b16 %v1073, %v1072
        %v1079 = vsel %vm435, %v1065, 0
        %1081 = vmatpush.bf16.msra.mxu0 0
        %1082 = vmatpush.bf16.msra.mxu0 0
        %1083 = vmatpush.bf16.msra.mxu0 0
        %1084 = vmatpush.bf16.msra.mxu0 0
        %1085 = vmatpush.bf16.msra.mxu0 0
        %1086 = vmatpush.bf16.msra.mxu0 0
        %1087 = vmatpush.bf16.msra.mxu0 %v1075
        %1088 = vmatpush.bf16.msra.mxu0 %v1074
        %1089 = vmatmul.bf16.gmra.mxu0 %v1079
        %v1090 = vpop.f32.mrf.mxu0
        %v1091 = vadd.f32 0.0, %v1090
        %v1092 = vpop.f32.mrf.mxu0
        %v1093 = vadd.f32 0.0, %v1092
        %1094 = vdwg.mxu0
        %v1095 = vadd.f32 %v1056, %v1091
        %v1096 = vadd.f32 %v1057, %v1093
        %v1097 = vxor.u32 %v1095, 2147483648
        %v1098 = vxor.u32 %v1096, 2147483648
        %v1099 = vmul.f32 %v1097, 1.442695
        %v1100 = vpow.pop %v1099
        %v1101 = vmul.f32 %v1098, 1.442695
        %v1102 = vpow.pop %v1101
        %v1103 = vadd.f32 %v1100, 1.0
        %v1104 = vadd.f32 %v1102, 1.0
        %v1105 = vrcp.pop %v1103
        %v1106 = vmul.f32 %v1103, %v1105
        %v1107 = vsub.f32 1.0, %v1106
        %v1108 = vmul.f32 %v1105, %v1107
        %v1109 = vadd.f32 %v1105, %v1108
        %vm1110 = vweird.f32 %v1103
        %vm1111 = vweird.f32 %v1105
        %vm1112 = vmor %vm1110, %vm1111
        %v1113 = vsel %vm1112, %v1105, %v1109
        %v1114 = vand.u32 2147483647, %v1103
        %vm1115 = vcmp.eq.f32.partialorder %v1114, 8.507059e+37
        %v1116 = vand.u32 %v1103, 2147483648
        %v1117 = vor.u32 1.1754944e-38, %v1116
        %v1118 = vsel %vm1115, %v1117, %v1113
        %v1119 = vmul.f32 1.0, %v1118
        %v1120 = vrcp.pop %v1104
        %v1121 = vmul.f32 %v1104, %v1120
        %v1122 = vsub.f32 1.0, %v1121
        %v1123 = vmul.f32 %v1120, %v1122
        %v1124 = vadd.f32 %v1120, %v1123
        %vm1125 = vweird.f32 %v1104
        %vm1126 = vweird.f32 %v1120
        %vm1127 = vmor %vm1125, %vm1126
        %v1128 = vsel %vm1127, %v1120, %v1124
        %v1129 = vand.u32 2147483647, %v1104
        %vm1130 = vcmp.eq.f32.partialorder %v1129, 8.507059e+37
        %v1131 = vand.u32 %v1104, 2147483648
        %v1132 = vor.u32 1.1754944e-38, %v1131
        %v1133 = vsel %vm1130, %v1132, %v1128
        %v1134 = vmul.f32 1.0, %v1133
        %v1135 = vtanh.pop %v1095
        %v1136 = vtanh.pop %v1096
        %v1137 = vmul.f32 %v1119, %v1030
        %v1138 = vmul.f32 %v1134, %v1031
        %1141 = vrot.lane.b32.xlu0 %v1135, 64
        %v1142 = vpop.permute.xlu0 %1141
        %1143 = vrot.lane.b32.xlu0 %v1136, 64
        %v1144 = vpop.permute.xlu0 %1143
        %v1147 = vmul.f32 %v1119, %v1142
        %v1148 = vmul.f32 %v1134, %v1144
        %1151 = vrot.lane.b32.xlu0 %v1147, 32
        %v1152 = vpop.permute.xlu0 %1151
        %1153 = vrot.lane.b32.xlu0 %v1148, 32
        %v1154 = vpop.permute.xlu0 %1153
        %v1157 = vadd.f32 %v1137, %v1152
        %v1158 = vadd.f32 %v1138, %v1154
        %v1159 = vtanh.pop %v1157
        %v1160 = vtanh.pop %v1158
        %1163 = vrot.lane.b32.xlu0 %v1159, 64
        %v1164 = vpop.permute.xlu0 %1163
        %1165 = vrot.lane.b32.xlu0 %v1160, 64
        %v1166 = vpop.permute.xlu0 %1165
        %v1169 = vmul.f32 %v1119, %v1164
        %v1170 = vmul.f32 %v1134, %v1166
        %1173 = vrot.lane.b32.xlu0 %v1169, 32
        %v1174 = vpop.permute.xlu0 %1173
        %1175 = vrot.lane.b32.xlu0 %v1170, 32
        %v1176 = vpop.permute.xlu0 %1175
        %s1179 = scalar_lea.vmem %s380, 80 [#allocation3]
        %1180 = vst.msk [vmem:[%s1179] sm:$0xff] %vm435, %v1174
        %1181 = vst.msk [vmem:[%s1179 + $0x8] sm:$0xff] %vm435, %v1176
        %s1182 = scalar_lea.vmem %s349, 96 [#allocation2]
        %v1183 = vld [vmem:[%s1182] sm:$0xff]
        %v1184 = vld [vmem:[%s1182 + $0x8] sm:$0xff]
        %v1185 = vpack.c.bf16 %v1170, %v1169
        %v1186 = vld [vmem:[%s1] sm:$0xf]
        %v1187 = vld [vmem:[%s1 + $0x4] sm:$0xf]
        %v1188 = vld [vmem:[%s1 + $0x8] sm:$0xf]
        %v1189 = vld [vmem:[%s1 + $0xc] sm:$0xf]
        %1191 = vrot.lane.b32.xlu0 %v1185, 32
        %v1192 = vpop.permute.xlu0 %1191
        %v1197 = vunpack.c.l.b16 %v1186
        %v1198 = vunpack.c.l.b16 %v1187
        %v1199 = vunpack.c.l.b16 %v1188
        %v1200 = vunpack.c.l.b16 %v1189
        %v1201 = vpack.c.b16 %v1198, %v1197
        %v1202 = vpack.c.b16 %v1200, %v1199
        %v1206 = vsel %vm435, %v1192, 0
        %1208 = vmatpush.bf16.msra.mxu0 0
        %1209 = vmatpush.bf16.msra.mxu0 0
        %1210 = vmatpush.bf16.msra.mxu0 0
        %1211 = vmatpush.bf16.msra.mxu0 0
        %1212 = vmatpush.bf16.msra.mxu0 0
        %1213 = vmatpush.bf16.msra.mxu0 0
        %1214 = vmatpush.bf16.msra.mxu0 %v1202
        %1215 = vmatpush.bf16.msra.mxu0 %v1201
        %1216 = vmatmul.bf16.gmra.mxu0 %v1206
        %v1217 = vpop.f32.mrf.mxu0
        %v1218 = vadd.f32 0.0, %v1217
        %v1219 = vpop.f32.mrf.mxu0
        %v1220 = vadd.f32 0.0, %v1219
        %1221 = vdwg.mxu0
        %v1222 = vadd.f32 %v1183, %v1218
        %v1223 = vadd.f32 %v1184, %v1220
        %v1224 = vxor.u32 %v1222, 2147483648
        %v1225 = vxor.u32 %v1223, 2147483648
        %v1226 = vmul.f32 %v1224, 1.442695
        %v1227 = vpow.pop %v1226
        %v1228 = vmul.f32 %v1225, 1.442695
        %v1229 = vpow.pop %v1228
        %v1230 = vadd.f32 %v1227, 1.0
        %v1231 = vadd.f32 %v1229, 1.0
        %v1232 = vrcp.pop %v1230
        %v1233 = vmul.f32 %v1230, %v1232
        %v1234 = vsub.f32 1.0, %v1233
        %v1235 = vmul.f32 %v1232, %v1234
        %v1236 = vadd.f32 %v1232, %v1235
        %vm1237 = vweird.f32 %v1230
        %vm1238 = vweird.f32 %v1232
        %vm1239 = vmor %vm1237, %vm1238
        %v1240 = vsel %vm1239, %v1232, %v1236
        %v1241 = vand.u32 2147483647, %v1230
        %vm1242 = vcmp.eq.f32.partialorder %v1241, 8.507059e+37
        %v1243 = vand.u32 %v1230, 2147483648
        %v1244 = vor.u32 1.1754944e-38, %v1243
        %v1245 = vsel %vm1242, %v1244, %v1240
        %v1246 = vmul.f32 1.0, %v1245
        %v1247 = vrcp.pop %v1231
        %v1248 = vmul.f32 %v1231, %v1247
        %v1249 = vsub.f32 1.0, %v1248
        %v1250 = vmul.f32 %v1247, %v1249
        %v1251 = vadd.f32 %v1247, %v1250
        %vm1252 = vweird.f32 %v1231
        %vm1253 = vweird.f32 %v1247
        %vm1254 = vmor %vm1252, %vm1253
        %v1255 = vsel %vm1254, %v1247, %v1251
        %v1256 = vand.u32 2147483647, %v1231
        %vm1257 = vcmp.eq.f32.partialorder %v1256, 8.507059e+37
        %v1258 = vand.u32 %v1231, 2147483648
        %v1259 = vor.u32 1.1754944e-38, %v1258
        %v1260 = vsel %vm1257, %v1259, %v1255
        %v1261 = vmul.f32 1.0, %v1260
        %v1262 = vtanh.pop %v1222
        %v1263 = vtanh.pop %v1223
        %v1264 = vmul.f32 %v1246, %v1157
        %v1265 = vmul.f32 %v1261, %v1158
        %1268 = vrot.lane.b32.xlu0 %v1262, 64
        %v1269 = vpop.permute.xlu0 %1268
        %1270 = vrot.lane.b32.xlu0 %v1263, 64
        %v1271 = vpop.permute.xlu0 %1270
        %v1274 = vmul.f32 %v1246, %v1269
        %v1275 = vmul.f32 %v1261, %v1271
        %1278 = vrot.lane.b32.xlu0 %v1274, 32
        %v1279 = vpop.permute.xlu0 %1278
        %1280 = vrot.lane.b32.xlu0 %v1275, 32
        %v1281 = vpop.permute.xlu0 %1280
        %v1284 = vadd.f32 %v1264, %v1279
        %v1285 = vadd.f32 %v1265, %v1281
        %v1286 = vtanh.pop %v1284
        %v1287 = vtanh.pop %v1285
        %1290 = vrot.lane.b32.xlu0 %v1286, 64
        %v1291 = vpop.permute.xlu0 %1290
        %1292 = vrot.lane.b32.xlu0 %v1287, 64
        %v1293 = vpop.permute.xlu0 %1292
        %v1296 = vmul.f32 %v1246, %v1291
        %v1297 = vmul.f32 %v1261, %v1293
        %1300 = vrot.lane.b32.xlu0 %v1296, 32
        %v1301 = vpop.permute.xlu0 %1300
        %1302 = vrot.lane.b32.xlu0 %v1297, 32
        %v1303 = vpop.permute.xlu0 %1302
        %s1306 = scalar_lea.vmem %s380, 96 [#allocation3]
        %1307 = vst.msk [vmem:[%s1306] sm:$0xff] %vm435, %v1301
        %1308 = vst.msk [vmem:[%s1306 + $0x8] sm:$0xff] %vm435, %v1303
        %s1309 = scalar_lea.vmem %s349, 112 [#allocation2]
        %v1310 = vld [vmem:[%s1309] sm:$0xff]
        %v1311 = vld [vmem:[%s1309 + $0x8] sm:$0xff]
        %v1312 = vpack.c.bf16 %v1297, %v1296
        %v1313 = vld [vmem:[%s1] sm:$0xf]
        %v1314 = vld [vmem:[%s1 + $0x4] sm:$0xf]
        %v1315 = vld [vmem:[%s1 + $0x8] sm:$0xf]
        %v1316 = vld [vmem:[%s1 + $0xc] sm:$0xf]
        %1318 = vrot.lane.b32.xlu0 %v1312, 32
        %v1319 = vpop.permute.xlu0 %1318
        %v1324 = vunpack.c.l.b16 %v1313
        %v1325 = vunpack.c.l.b16 %v1314
        %v1326 = vunpack.c.l.b16 %v1315
        %v1327 = vunpack.c.l.b16 %v1316
        %v1328 = vpack.c.b16 %v1325, %v1324
        %v1329 = vpack.c.b16 %v1327, %v1326
        %v1333 = vsel %vm435, %v1319, 0
        %1335 = vmatpush.bf16.msra.mxu0 0
        %1336 = vmatpush.bf16.msra.mxu0 0
        %1337 = vmatpush.bf16.msra.mxu0 0
        %1338 = vmatpush.bf16.msra.mxu0 0
        %1339 = vmatpush.bf16.msra.mxu0 0
        %1340 = vmatpush.bf16.msra.mxu0 0
        %1341 = vmatpush.bf16.msra.mxu0 %v1329
        %1342 = vmatpush.bf16.msra.mxu0 %v1328
        %1343 = vmatmul.bf16.gmra.mxu0 %v1333
        %v1344 = vpop.f32.mrf.mxu0
        %v1345 = vadd.f32 0.0, %v1344
        %v1346 = vpop.f32.mrf.mxu0
        %v1347 = vadd.f32 0.0, %v1346
        %1348 = vdwg.mxu0
        %v1349 = vadd.f32 %v1310, %v1345
        %v1350 = vadd.f32 %v1311, %v1347
        %v1351 = vxor.u32 %v1349, 2147483648
        %v1352 = vxor.u32 %v1350, 2147483648
        %v1353 = vmul.f32 %v1351, 1.442695
        %v1354 = vpow.pop %v1353
        %v1355 = vmul.f32 %v1352, 1.442695
        %v1356 = vpow.pop %v1355
        %v1357 = vadd.f32 %v1354, 1.0
        %v1358 = vadd.f32 %v1356, 1.0
        %v1359 = vrcp.pop %v1357
        %v1360 = vmul.f32 %v1357, %v1359
        %v1361 = vsub.f32 1.0, %v1360
        %v1362 = vmul.f32 %v1359, %v1361
        %v1363 = vadd.f32 %v1359, %v1362
        %vm1364 = vweird.f32 %v1357
        %vm1365 = vweird.f32 %v1359
        %vm1366 = vmor %vm1364, %vm1365
        %v1367 = vsel %vm1366, %v1359, %v1363
        %v1368 = vand.u32 2147483647, %v1357
        %vm1369 = vcmp.eq.f32.partialorder %v1368, 8.507059e+37
        %v1370 = vand.u32 %v1357, 2147483648
        %v1371 = vor.u32 1.1754944e-38, %v1370
        %v1372 = vsel %vm1369, %v1371, %v1367
        %v1373 = vmul.f32 1.0, %v1372
        %v1374 = vrcp.pop %v1358
        %v1375 = vmul.f32 %v1358, %v1374
        %v1376 = vsub.f32 1.0, %v1375
        %v1377 = vmul.f32 %v1374, %v1376
        %v1378 = vadd.f32 %v1374, %v1377
        %vm1379 = vweird.f32 %v1358
        %vm1380 = vweird.f32 %v1374
        %vm1381 = vmor %vm1379, %vm1380
        %v1382 = vsel %vm1381, %v1374, %v1378
        %v1383 = vand.u32 2147483647, %v1358
        %vm1384 = vcmp.eq.f32.partialorder %v1383, 8.507059e+37
        %v1385 = vand.u32 %v1358, 2147483648
        %v1386 = vor.u32 1.1754944e-38, %v1385
        %v1387 = vsel %vm1384, %v1386, %v1382
        %v1388 = vmul.f32 1.0, %v1387
        %v1389 = vtanh.pop %v1349
        %v1390 = vtanh.pop %v1350
        %v1391 = vmul.f32 %v1373, %v1284
        %v1392 = vmul.f32 %v1388, %v1285
        %1395 = vrot.lane.b32.xlu0 %v1389, 64
        %v1396 = vpop.permute.xlu0 %1395
        %1397 = vrot.lane.b32.xlu0 %v1390, 64
        %v1398 = vpop.permute.xlu0 %1397
        %v1401 = vmul.f32 %v1373, %v1396
        %v1402 = vmul.f32 %v1388, %v1398
        %1405 = vrot.lane.b32.xlu0 %v1401, 32
        %v1406 = vpop.permute.xlu0 %1405
        %1407 = vrot.lane.b32.xlu0 %v1402, 32
        %v1408 = vpop.permute.xlu0 %1407
        %v1411 = vadd.f32 %v1391, %v1406
        %v1412 = vadd.f32 %v1392, %v1408
        %v1413 = vtanh.pop %v1411
        %v1414 = vtanh.pop %v1412
        %1417 = vrot.lane.b32.xlu0 %v1413, 64
        %v1418 = vpop.permute.xlu0 %1417
        %1419 = vrot.lane.b32.xlu0 %v1414, 64
        %v1420 = vpop.permute.xlu0 %1419
        %v1423 = vmul.f32 %v1373, %v1418
        %v1424 = vmul.f32 %v1388, %v1420
        %1427 = vrot.lane.b32.xlu0 %v1423, 32
        %v1428 = vpop.permute.xlu0 %1427
        %1429 = vrot.lane.b32.xlu0 %v1424, 32
        %v1430 = vpop.permute.xlu0 %1429
        %s1433 = scalar_lea.vmem %s380, 112 [#allocation3]
        %1434 = vst.msk [vmem:[%s1433] sm:$0xff] %vm435, %v1428
        %1435 = vst.msk [vmem:[%s1433 + $0x8] sm:$0xff] %vm435, %v1430
        %1436 = vst.msk [vmem:[%s387] sm:$0xff] %vm435, %v1428
        %1437 = vst.msk [vmem:[%s387 + $0x8] sm:$0xff] %vm435, %v1430
        %1440 = vrot.lane.b32.xlu0 %v1411, 96
        %v1441 = vpop.permute.xlu0 %1440
        %1442 = vrot.lane.b32.xlu0 %v1412, 96
        %v1443 = vpop.permute.xlu0 %1442
        %1446 = vst.msk [vmem:[%s394] sm:$0xff] %vm435, %v1441
        %1447 = vst.msk [vmem:[%s394 + $0x8] sm:$0xff] %vm435, %v1443
        %s1448 = sand.u32 %s131, 1
        %s1449 = sand.u32 %s131, 1
        %s1450 = smul.addr %s1449, 128
        %s1451 = scalar_lea.vmem [#allocation3], %s1450
        %s1452 = sand.u32 %s157, 1
        %s1453 = scalar_lea.sflag [#allocation5], %s1452
        %s1454 = sand.u32 %s157, 1
        %s1455 = smul.addr %s1454, 16
        %s1456 = scalar_lea.vmem [#allocation4], %s1455
        %s1457 = sand.u32 %s183, 1
        %s1458 = scalar_lea.sflag [#allocation7], %s1457
        %s1459 = sand.u32 %s183, 1
        %s1460 = smul.addr %s1459, 16
        %s1461 = scalar_lea.vmem [#allocation6], %s1460
        // Predicated region
        $region75: #{tlstm_block_forward.5} parent=69 // pred_check
          %p1462 = pneg %p141
        $region76: #{tlstm_block_forward.5} parent=69 // pred_check_branch
          %1464 = sbr.rel (%p1462) target = $region78
        $region77: #{tlstm_block_forward.5} parent=69 // pred_region
          %s1465 = smul.u32 2, %s24
          %s1466 = smul.addr %s1465, 8
          %s1467 = scalar_lea.vmem %s4, %s1466
          // Predicated region
          $region79: #{tlstm_block_forward.5} parent=77 // pred_check
            _
          $region80: #{tlstm_block_forward.5} parent=77 // pred_check_branch
            %1469 = sbr.rel (0) target = $region82
          $region81: #{tlstm_block_forward.5} parent=77 // pred_region
            // Predicated region
            $region83: #{tlstm_block_forward.5} parent=81 // pred_check
              _
            $region84: #{tlstm_block_forward.5} parent=81 // pred_check_branch
              %1471 = sbr.rel (0) target = $region86
            $region85: #{tlstm_block_forward.5} parent=81 // pred_region
              // Predicated region
              $region98: #{tlstm_block_forward.5} parent=85 // pred_check
                _
              $region99: #{tlstm_block_forward.5} parent=85 // pred_check_branch
                %1517 = sbr.rel (0) target = $region101
              $region100: #{tlstm_block_forward.5} parent=85 // pred_region
                loop: start=0, step=1, limit=1
                $region102: #{tlstm_block_forward.5} parent=100 // loop_pre_header
                  _
                $region103: #{tlstm_block_forward.5} parent=100 // loop_header
                  %s1519 = sphi 0, %s1523
                  %p1520 = scmp.ge.s32.totalorder %s1519, 1
                  %s1524 = sphi %s1451, %s1451
                  %s1525 = sphi %s1467, %s1467
                $region104: #{tlstm_block_forward.5} parent=100 // loop_header_branch
                  %1522 = sbr.rel (%p1520) target = $region108
                $region105: #{tlstm_block_forward.5} parent=100 // loop_body
                  %v1526 = vld [vmem:[%s1524] sm:$0xff]
                  %1527 = vst [vmem:[%s1525] sm:$0xff] %v1526
                  %v1528 = vld [vmem:[%s1524 + $0x8] sm:$0xff]
                  %1529 = vst [vmem:[%s1525 + $0x8] sm:$0xff] %v1528
                  %v1530 = vld [vmem:[%s1524 + $0x10] sm:$0xff]
                  %1531 = vst [vmem:[%s1525 + $0x20] sm:$0xff] %v1530
                  %v1532 = vld [vmem:[%s1524 + $0x18] sm:$0xff]
                  %1533 = vst [vmem:[%s1525 + $0x28] sm:$0xff] %v1532
                  %v1534 = vld [vmem:[%s1524 + $0x20] sm:$0xff]
                  %1535 = vst [vmem:[%s1525 + $0x40] sm:$0xff] %v1534
                  %v1536 = vld [vmem:[%s1524 + $0x28] sm:$0xff]
                  %1537 = vst [vmem:[%s1525 + $0x48] sm:$0xff] %v1536
                  %v1538 = vld [vmem:[%s1524 + $0x30] sm:$0xff]
                  %1539 = vst [vmem:[%s1525 + $0x60] sm:$0xff] %v1538
                  %v1540 = vld [vmem:[%s1524 + $0x38] sm:$0xff]
                  %1541 = vst [vmem:[%s1525 + $0x68] sm:$0xff] %v1540
                  %v1542 = vld [vmem:[%s1524 + $0x40] sm:$0xff]
                  %1543 = vst [vmem:[%s1525 + $0x80] sm:$0xff] %v1542
                  %v1544 = vld [vmem:[%s1524 + $0x48] sm:$0xff]
                  %1545 = vst [vmem:[%s1525 + $0x88] sm:$0xff] %v1544
                  %v1546 = vld [vmem:[%s1524 + $0x50] sm:$0xff]
                  %1547 = vst [vmem:[%s1525 + $0xa0] sm:$0xff] %v1546
                  %v1548 = vld [vmem:[%s1524 + $0x58] sm:$0xff]
                  %1549 = vst [vmem:[%s1525 + $0xa8] sm:$0xff] %v1548
                  %v1550 = vld [vmem:[%s1524 + $0x60] sm:$0xff]
                  %1551 = vst [vmem:[%s1525 + $0xc0] sm:$0xff] %v1550
                  %v1552 = vld [vmem:[%s1524 + $0x68] sm:$0xff]
                  %1553 = vst [vmem:[%s1525 + $0xc8] sm:$0xff] %v1552
                  %v1554 = vld [vmem:[%s1524 + $0x70] sm:$0xff]
                  %1555 = vst [vmem:[%s1525 + $0xe0] sm:$0xff] %v1554
                  %v1556 = vld [vmem:[%s1524 + $0x78] sm:$0xff]
                  %1557 = vst [vmem:[%s1525 + $0xe8] sm:$0xff] %v1556
                $region106: #{tlstm_block_forward.5} parent=100 // loop_footer
                  %s1523 = sadd.s32 1, %s1519
                $region107: #{tlstm_block_forward.5} parent=100 // loop_footer_branch
                  %1518 = sbr.rel target = $region103
                $region108: #{tlstm_block_forward.5} parent=100 // loop_exit
                  _
              $region101: #{tlstm_block_forward.5} parent=85 // pred_fallthru
                _
              // Predicated region
              $region109: #{tlstm_block_forward.5} parent=85 // pred_check
                _
              $region110: #{tlstm_block_forward.5} parent=85 // pred_check_branch
                %1559 = sbr.rel target = $region112
              $region111: #{tlstm_block_forward.5} parent=85 // pred_region
                _
              $region112: #{tlstm_block_forward.5} parent=85 // pred_fallthru
                _
            $region86: #{tlstm_block_forward.5} parent=81 // pred_fallthru
              _
            // Predicated region
            $region87: #{tlstm_block_forward.5} parent=81 // pred_check
              _
            $region88: #{tlstm_block_forward.5} parent=81 // pred_check_branch
              %1473 = sbr.rel target = $region90
            $region89: #{tlstm_block_forward.5} parent=81 // pred_region
              %s1475 = ssub.s32 256, 1
              loop: start=0, step=1, limit=1
              $region91: #{tlstm_block_forward.5} parent=89 // loop_pre_header
                _
              $region92: #{tlstm_block_forward.5} parent=89 // loop_header
                %s1477 = sphi 0, %s1481
                %p1478 = scmp.ge.s32.totalorder %s1477, 1
                %s1482 = sphi %s1451, %s1451
                %s1483 = sphi %s1467, %s1467
              $region93: #{tlstm_block_forward.5} parent=89 // loop_header_branch
                %1480 = sbr.rel (%p1478) target = $region97
              $region94: #{tlstm_block_forward.5} parent=89 // loop_body
                %v1484 = vld [vmem:[%s1482] sm:%s1475]
                %1485 = vst [vmem:[%s1483] sm:%s1475] %v1484
                %v1486 = vld [vmem:[%s1482 + $0x8] sm:%s1475]
                %1487 = vst [vmem:[%s1483 + $0x8] sm:%s1475] %v1486
                %v1488 = vld [vmem:[%s1482 + $0x10] sm:%s1475]
                %1489 = vst [vmem:[%s1483 + $0x20] sm:%s1475] %v1488
                %v1490 = vld [vmem:[%s1482 + $0x18] sm:%s1475]
                %1491 = vst [vmem:[%s1483 + $0x28] sm:%s1475] %v1490
                %v1492 = vld [vmem:[%s1482 + $0x20] sm:%s1475]
                %1493 = vst [vmem:[%s1483 + $0x40] sm:%s1475] %v1492
                %v1494 = vld [vmem:[%s1482 + $0x28] sm:%s1475]
                %1495 = vst [vmem:[%s1483 + $0x48] sm:%s1475] %v1494
                %v1496 = vld [vmem:[%s1482 + $0x30] sm:%s1475]
                %1497 = vst [vmem:[%s1483 + $0x60] sm:%s1475] %v1496
                %v1498 = vld [vmem:[%s1482 + $0x38] sm:%s1475]
                %1499 = vst [vmem:[%s1483 + $0x68] sm:%s1475] %v1498
                %v1500 = vld [vmem:[%s1482 + $0x40] sm:%s1475]
                %1501 = vst [vmem:[%s1483 + $0x80] sm:%s1475] %v1500
                %v1502 = vld [vmem:[%s1482 + $0x48] sm:%s1475]
                %1503 = vst [vmem:[%s1483 + $0x88] sm:%s1475] %v1502
                %v1504 = vld [vmem:[%s1482 + $0x50] sm:%s1475]
                %1505 = vst [vmem:[%s1483 + $0xa0] sm:%s1475] %v1504
                %v1506 = vld [vmem:[%s1482 + $0x58] sm:%s1475]
                %1507 = vst [vmem:[%s1483 + $0xa8] sm:%s1475] %v1506
                %v1508 = vld [vmem:[%s1482 + $0x60] sm:%s1475]
                %1509 = vst [vmem:[%s1483 + $0xc0] sm:%s1475] %v1508
                %v1510 = vld [vmem:[%s1482 + $0x68] sm:%s1475]
                %1511 = vst [vmem:[%s1483 + $0xc8] sm:%s1475] %v1510
                %v1512 = vld [vmem:[%s1482 + $0x70] sm:%s1475]
                %1513 = vst [vmem:[%s1483 + $0xe0] sm:%s1475] %v1512
                %v1514 = vld [vmem:[%s1482 + $0x78] sm:%s1475]
                %1515 = vst [vmem:[%s1483 + $0xe8] sm:%s1475] %v1514
              $region95: #{tlstm_block_forward.5} parent=89 // loop_footer
                %s1481 = sadd.s32 1, %s1477
              $region96: #{tlstm_block_forward.5} parent=89 // loop_footer_branch
                %1476 = sbr.rel target = $region92
              $region97: #{tlstm_block_forward.5} parent=89 // loop_exit
                _
            $region90: #{tlstm_block_forward.5} parent=81 // pred_fallthru
              _
          $region82: #{tlstm_block_forward.5} parent=77 // pred_fallthru
            _
          %1560 = vnop
        $region78: #{tlstm_block_forward.5} parent=69 // pred_fallthru
          _
        // Predicated region
        $region113: #{tlstm_block_forward.5} parent=69 // pred_check
          %p1561 = pneg %p167
        $region114: #{tlstm_block_forward.5} parent=69 // pred_check_branch
          %1563 = sbr.rel (%p1561) target = $region116
        $region115: #{tlstm_block_forward.5} parent=69 // pred_region
          %s1564 = smul.u32 2, %s24
          %1566 = vsyncadd %s1453, 0
          %s1567 = smul.addr %s1564, 8
          %s1568 = scalar_lea.hbm %s5, %s1567
          %s1569 = sshll.u32 %s1456, 4
          %s1570 = int_to_ptr.vmem [resolvable:$true] %s1569
          %s1571 = sshll.u32 %s1568, 4
          %s1572 = int_to_ptr.hbm [resolvable:$true] %s1571
          %1577 = dma.vmem_to_hbm [thread:$0]  %s1570, 256, %s1572, %s1453, 128, 128, 8
        $region116: #{tlstm_block_forward.5} parent=69 // pred_fallthru
          _
        // Predicated region
        $region117: #{tlstm_block_forward.5} parent=69 // pred_check
          %p1578 = pneg %p193
        $region118: #{tlstm_block_forward.5} parent=69 // pred_check_branch
          %1580 = sbr.rel (%p1578) target = $region120
        $region119: #{tlstm_block_forward.5} parent=69 // pred_region
          %s1581 = smul.u32 2, %s24
          %1583 = vsyncadd %s1458, 0
          %s1584 = smul.addr %s1581, 8
          %s1585 = scalar_lea.hbm %s6, %s1584
          %s1586 = sshll.u32 %s1461, 4
          %s1587 = int_to_ptr.vmem [resolvable:$true] %s1586
          %s1588 = sshll.u32 %s1585, 4
          %s1589 = int_to_ptr.hbm [resolvable:$true] %s1588
          %1594 = dma.vmem_to_hbm [thread:$0]  %s1587, 256, %s1589, %s1458, 128, 128, 8
        $region120: #{tlstm_block_forward.5} parent=69 // pred_fallthru
          _
      $region70: #{tlstm_block_forward.5} parent=5 // pred_fallthru
        _
      %p1595 = scmp.le.s32.totalorder 2, %s19
      // Predicated region
      $region121: #{tlstm_block_forward.5} parent=5 // pred_check
        %p1596 = pneg %p1595
      $region122: #{tlstm_block_forward.5} parent=5 // pred_check_branch
        %1598 = sbr.rel (%p1596) target = $region124
      $region123: #{tlstm_block_forward.5} parent=5 // pred_region
        %s1599 = ssub.s32 %s19, 2
        // Predicated region
        $region125: #{tlstm_block_forward.5} parent=123 // pred_check
          %p1600 = pneg %p147
        $region126: #{tlstm_block_forward.5} parent=123 // pred_check_branch
          %1602 = sbr.rel (%p1600) target = $region128
        $region127: #{tlstm_block_forward.5} parent=123 // pred_region
          %s1603 = sand.u32 %s132, 1
          %s1604 = sand.u32 %s132, 1
          %s1605 = smul.addr %s1604, 128
          %s1606 = scalar_lea.vmem [#allocation3], %s1605
        $region128: #{tlstm_block_forward.5} parent=123 // pred_fallthru
          _
        // Predicated region
        $region129: #{tlstm_block_forward.5} parent=123 // pred_check
          %p1607 = pneg %p173
        $region130: #{tlstm_block_forward.5} parent=123 // pred_check_branch
          %1609 = sbr.rel (%p1607) target = $region132
        $region131: #{tlstm_block_forward.5} parent=123 // pred_region
          %s1610 = sand.u32 %s158, 1
          %s1611 = scalar_lea.sflag [#allocation5], %s1610
          %s1612 = sand.u32 %s158, 1
          %s1613 = smul.addr %s1612, 16
          %s1614 = scalar_lea.vmem [#allocation4], %s1613
          %1616 = dma.done %s1611, 256
        $region132: #{tlstm_block_forward.5} parent=123 // pred_fallthru
          _
        // Predicated region
        $region133: #{tlstm_block_forward.5} parent=123 // pred_check
          %p1617 = pneg %p199
        $region134: #{tlstm_block_forward.5} parent=123 // pred_check_branch
          %1619 = sbr.rel (%p1617) target = $region136
        $region135: #{tlstm_block_forward.5} parent=123 // pred_region
          %s1620 = sand.u32 %s184, 1
          %s1621 = scalar_lea.sflag [#allocation7], %s1620
          %s1622 = sand.u32 %s184, 1
          %s1623 = smul.addr %s1622, 16
          %s1624 = scalar_lea.vmem [#allocation6], %s1623
          %1626 = dma.done %s1621, 256
        $region136: #{tlstm_block_forward.5} parent=123 // pred_fallthru
          _
      $region124: #{tlstm_block_forward.5} parent=5 // pred_fallthru
        _
    $region6: #{tlstm_block_forward.5} parent=1 // loop_footer
      %s23 = sadd.s32 1, %s19
    $region7: #{tlstm_block_forward.5} parent=1 // loop_footer_branch
      %18 = sbr.rel target = $region3
    $region8: #{tlstm_block_forward.5} parent=1 // loop_exit
      _
    %1627 = vsyncpa [#allocation5], 1
    %s1628 = scalar_lea.sflag [#allocation5], 1
    %1629 = vsyncpa %s1628, 1
    %1630 = vsyncpa [#allocation7], 1
    %s1631 = scalar_lea.sflag [#allocation7], 1
    %1632 = vsyncpa %s1631, 1

</llo_original>
